<compile_context>
chip_gen: v5e
topology: v5e:2x2
jax: 0.10.0
libtpu: 0.0.40
codegen_flags: <defaults>
</compile_context>

<pallas_src>
import math
import functools

import jax
import jax.numpy as jnp
from jax.experimental import pallas as pl
from jax.experimental.pallas import tpu as pltpu


# --------------------------------------------------------------------------
# Shared multi-head attention core (operates on already-projected q/k/v).
# --------------------------------------------------------------------------
def _attend_and_project(q, k, v, wo_ref, bo_ref, o_ref, attn_ref, *,
                        block_b, L, S, n_heads, d_k, d_v,
                        compute_dtype, approx_recip):
    """q: (bb*L, H*dk) f32, k: (bb*S, H*dk) f32, v: (bb*S, H*dv) f32.
    The softmax scale is already folded into q.  Writes o_ref (bb, L, d_model)
    and optionally attn_ref (H, bb, L, S)."""
    head_outs = []
    for h in range(n_heads):
        # Static lane slices; the reshapes only split the major (row) axis.
        qh = q[:, h * d_k:(h + 1) * d_k].reshape(block_b, L, d_k)
        kh = k[:, h * d_k:(h + 1) * d_k].reshape(block_b, S, d_k)
        vh = v[:, h * d_v:(h + 1) * d_v].reshape(block_b, S, d_v)

        # Batched over the whole batch block (leading batch dim) -> one MXU
        # stream per head instead of block_b tiny matmuls.
        s = jnp.einsum('bld,bsd->bls', qh.astype(compute_dtype),
                       kh.astype(compute_dtype),
                       preferred_element_type=jnp.float32)        # (bb, L, S)

        # Softmax entirely in f32 (v5e has no bf16 VPU/EUP).
        m = jnp.max(s, axis=-1, keepdims=True)
        e = jnp.exp(s - m)
        denom = jnp.sum(e, axis=-1, keepdims=True)
        p = e * pl.reciprocal(denom, approx=approx_recip)

        if attn_ref is not None:
            attn_ref[h] = p.astype(attn_ref.dtype)                # 1 store/head

        head_outs.append(jnp.einsum('bls,bsd->bld', p.astype(compute_dtype),
                                    vh.astype(compute_dtype),
                                    preferred_element_type=jnp.float32))

    o = jnp.concatenate(head_outs, axis=-1)                       # (bb, L, H*dv)
    o = o.reshape(block_b * L, n_heads * d_v).astype(compute_dtype)
    out = (jnp.dot(o, wo_ref[...], preferred_element_type=jnp.float32)
           + bo_ref[...])                                         # (bb*L, d_model)
    o_ref[...] = out.reshape(block_b, L, -1).astype(o_ref.dtype)


# --------------------------------------------------------------------------
# Self-attention kernel (PatchTST encoder: q = k = v): single activation
# input, fused [Wq*scale | Wk | Wv] projection matmul.
# --------------------------------------------------------------------------
def _self_attn_kernel(x_ref, wqkv_ref, bqkv_ref, wo_ref, bo_ref,
                      o_ref, *attn_refs, block_b, L, n_heads, d_k, d_v,
                      compute_dtype, output_attention, approx_recip):
    d_model = x_ref.shape[-1]
    Nq = n_heads * d_k
    x = x_ref[...].reshape(block_b * L, d_model)
    qkv = (jnp.dot(x, wqkv_ref[...], preferred_element_type=jnp.float32)
           + bqkv_ref[...])                                       # (bb*L, 2Nq+Nv)
    _attend_and_project(qkv[:, :Nq], qkv[:, Nq:2 * Nq], qkv[:, 2 * Nq:],
                        wo_ref, bo_ref, o_ref,
                        attn_refs[0] if output_attention else None,
                        block_b=block_b, L=L, S=L, n_heads=n_heads,
                        d_k=d_k, d_v=d_v, compute_dtype=compute_dtype,
                        approx_recip=approx_recip)


# --------------------------------------------------------------------------
# General (cross) attention kernel: distinct q / k / v activations.
# --------------------------------------------------------------------------
def _cross_attn_kernel(xq_ref, xk_ref, xv_ref, wq_ref, bq_ref, wk_ref, bk_ref,
                       wv_ref, bv_ref, wo_ref, bo_ref, o_ref, *attn_refs,
                       block_b, L, S, n_heads, d_k, d_v, compute_dtype,
                       output_attention, approx_recip):
    d_model = xq_ref.shape[-1]
    xq = xq_ref[...].reshape(block_b * L, d_model)
    xk = xk_ref[...].reshape(block_b * S, d_model)
    xv = xv_ref[...].reshape(block_b * S, d_model)
    q = jnp.dot(xq, wq_ref[...], preferred_element_type=jnp.float32) + bq_ref[...]
    k = jnp.dot(xk, wk_ref[...], preferred_element_type=jnp.float32) + bk_ref[...]
    v = jnp.dot(xv, wv_ref[...], preferred_element_type=jnp.float32) + bv_ref[...]
    _attend_and_project(q, k, v, wo_ref, bo_ref, o_ref,
                        attn_refs[0] if output_attention else None,
                        block_b=block_b, L=L, S=S, n_heads=n_heads,
                        d_k=d_k, d_v=d_v, compute_dtype=compute_dtype,
                        approx_recip=approx_recip)


# --------------------------------------------------------------------------
# Block-size / VMEM heuristics.
# --------------------------------------------------------------------------
def _vmem_estimate(bb, L, S, d_model, Nq, Nv, H, output_attention, self_attn,
                   act_itemsize, out_itemsize):
    n_proj = 2 * Nq + Nv
    acts = 2 * bb * L * d_model * act_itemsize              # x (double-buffered)
    if not self_attn:
        acts += 2 * 2 * bb * S * d_model * act_itemsize     # xk, xv
    outs = 2 * bb * L * d_model * out_itemsize
    attn = 2 * H * bb * L * S * 4 if output_attention else 0
    weights = (2 * (d_model * n_proj + Nv * d_model) * act_itemsize
               + 2 * 4 * (n_proj + d_model))
    temps = 4 * (bb * L * n_proj + bb * S * n_proj + 4 * bb * L * S
                 + 2 * bb * L * Nv)
    return acts + outs + attn + weights + temps


def _pick_block_b(B, L, S, d_model, Nq, Nv, H, output_attention, self_attn,
                  act_itemsize, out_itemsize):
    target_rows = 256   # fill the 256-wide MXU M dim (v6e/v7x); >=128 for v5e
    bb = max(1, min(B, pl.cdiv(target_rows, max(L, 1))))
    if bb >= B and B * L >= 2 * target_rows:
        bb = pl.cdiv(B, 2)   # keep >=2 grid steps so both v7x TCs get work
    budget = 40 * 1024 * 1024   # headroom under v7x's 64 MiB physical VMEM
    while bb > 1 and _vmem_estimate(bb, L, S, d_model, Nq, Nv, H,
                                    output_attention, self_attn,
                                    act_itemsize, out_itemsize) > budget:
        bb -= 1
    return bb


# --------------------------------------------------------------------------
# AttentionLayer wrapper (single pallas_call).
# --------------------------------------------------------------------------
def attention_layer_forward(params, queries, keys=None, values=None,
                            attn_mask=None, tau=None, delta=None, *,
                            output_attention=False,
                            compute_dtype=jnp.float32, out_dtype=None,
                            block_b=None):
    """queries: (B, L, d_model); keys/values: (B, S, d_model) or None for
    self-attention.  Returns (out (B, L, d_model), attn (B, H, L, S) or None)."""
    if attn_mask is not None:
        # PatchTST encoder uses FullAttention(mask_flag=False).
        raise NotImplementedError("attn_mask is not supported (mask_flag=False)")
    del tau, delta  # unused by FullAttention

    if keys is None:
        keys = queries
    if values is None:
        values = keys
    self_attn = (keys is queries) and (values is queries)

    B, L, d_model = queries.shape
    _, S, _ = keys.shape
    H = params["n_heads"]
    d_k = params["wq"].shape[1] // H
    d_v = params["wv"].shape[1] // H
    Nq, Nv = H * d_k, H * d_v
    scale = 1.0 / math.sqrt(d_k)

    cdt = jnp.dtype(compute_dtype)
    odt = jnp.dtype(out_dtype) if out_dtype is not None else queries.dtype
    approx = (cdt == jnp.bfloat16)

    if block_b is None:
        bb = _pick_block_b(B, L, S, d_model, Nq, Nv, H, output_attention,
                           self_attn, cdt.itemsize, odt.itemsize)
    else:
        bb = max(1, min(int(block_b), B))
    vmem_est = _vmem_estimate(bb, L, S, d_model, Nq, Nv, H, output_attention,
                              self_attn, cdt.itemsize, odt.itemsize)
    grid = (pl.cdiv(B, bb),)

    wo = params["wo"].astype(cdt)
    bo = params["bo"].reshape(1, d_model).astype(jnp.float32)

    if self_attn:
        # Fold the softmax scale into Wq/bq and fuse the three projections.
        wqkv = jnp.concatenate([params["wq"] * scale, params["wk"],
                                params["wv"]], axis=1).astype(cdt)
        bqkv = jnp.concatenate([params["bq"] * scale, params["bk"],
                                params["bv"]]).reshape(1, 2 * Nq + Nv
                                                       ).astype(jnp.float32)
        x = queries.astype(cdt)
        kernel = functools.partial(
            _self_attn_kernel, block_b=bb, L=L, n_heads=H, d_k=d_k, d_v=d_v,
            compute_dtype=cdt, output_attention=output_attention,
            approx_recip=approx)
        in_specs = [
            pl.BlockSpec((bb, L, d_model), lambda b: (b, 0, 0)),      # x
            pl.BlockSpec((d_model, 2 * Nq + Nv), lambda b: (0, 0)),   # wqkv
            pl.BlockSpec((1, 2 * Nq + Nv), lambda b: (0, 0)),         # bqkv
            pl.BlockSpec((Nv, d_model), lambda b: (0, 0)),            # wo
            pl.BlockSpec((1, d_model), lambda b: (0, 0)),             # bo
        ]
        args = (x, wqkv, bqkv, wo, bo)
    else:
        wq = (params["wq"] * scale).astype(cdt)
        bq = (params["bq"] * scale).reshape(1, Nq).astype(jnp.float32)
        wk = params["wk"].astype(cdt)
        bk = params["bk"].reshape(1, Nq).astype(jnp.float32)
        wv = params["wv"].astype(cdt)
        bv = params["bv"].reshape(1, Nv).astype(jnp.float32)
        xq = queries.astype(cdt)
        xk = keys.astype(cdt)
        xv = values.astype(cdt)
        kernel = functools.partial(
            _cross_attn_kernel, block_b=bb, L=L, S=S, n_heads=H, d_k=d_k,
            d_v=d_v, compute_dtype=cdt, output_attention=output_attention,
            approx_recip=approx)
        in_specs = [
            pl.BlockSpec((bb, L, d_model), lambda b: (b, 0, 0)),      # xq
            pl.BlockSpec((bb, S, d_model), lambda b: (b, 0, 0)),      # xk
            pl.BlockSpec((bb, S, d_model), lambda b: (b, 0, 0)),      # xv
            pl.BlockSpec((d_model, Nq), lambda b: (0, 0)),            # wq
            pl.BlockSpec((1, Nq), lambda b: (0, 0)),                  # bq
            pl.BlockSpec((d_model, Nq), lambda b: (0, 0)),            # wk
            pl.BlockSpec((1, Nq), lambda b: (0, 0)),                  # bk
            pl.BlockSpec((d_model, Nv), lambda b: (0, 0)),            # wv
            pl.BlockSpec((1, Nv), lambda b: (0, 0)),                  # bv
            pl.BlockSpec((Nv, d_model), lambda b: (0, 0)),            # wo
            pl.BlockSpec((1, d_model), lambda b: (0, 0)),             # bo
        ]
        args = (xq, xk, xv, wq, bq, wk, bk, wv, bv, wo, bo)

    if output_attention:
        out_shape = (jax.ShapeDtypeStruct((B, L, d_model), odt),
                     jax.ShapeDtypeStruct((H, B, L, S), jnp.float32))
        out_specs = (pl.BlockSpec((bb, L, d_model), lambda b: (b, 0, 0)),
                     pl.BlockSpec((H, bb, L, S), lambda b: (0, b, 0, 0)))
    else:
        out_shape = jax.ShapeDtypeStruct((B, L, d_model), odt)
        out_specs = pl.BlockSpec((bb, L, d_model), lambda b: (b, 0, 0))

    # Advisory cost estimate for XLA scheduling around the custom call.
    proj_flops = (2 * B * L * d_model * (2 * Nq + Nv) if self_attn
                  else 2 * B * (L * d_model * Nq + S * d_model * (Nq + Nv)))
    flops = (proj_flops + 2 * B * H * L * S * (d_k + d_v)
             + 2 * B * L * Nv * d_model)
    bytes_accessed = (cdt.itemsize * (B * L + (0 if self_attn else 2 * B * S)) * d_model
                      + cdt.itemsize * (d_model * (2 * Nq + Nv) + Nv * d_model)
                      + odt.itemsize * B * L * d_model
                      + (4 * B * H * L * S if output_attention else 0))
    cost = pl.CostEstimate(flops=flops, transcendentals=B * H * L * S,
                           bytes_accessed=bytes_accessed)

    result = pl.pallas_call(
        kernel,
        out_shape=out_shape,
        grid_spec=pltpu.PrefetchScalarGridSpec(
            num_scalar_prefetch=0,
            grid=grid,
            in_specs=in_specs,
            out_specs=out_specs,
        ),
        compiler_params=pltpu.CompilerParams(
            dimension_semantics=("parallel",),
            vmem_limit_bytes=min(64 * 1024 * 1024,
                                 max(32 * 1024 * 1024, int(1.5 * vmem_est))),
        ),
        cost_estimate=cost,
    )(*args)

    if output_attention:
        out, attn_hmajor = result
        # Kernel emits (H, B, L, S) so each head is one contiguous block store;
        # restore the reference (B, H, L, S) layout outside the kernel.
        return out, jnp.transpose(attn_hmajor, (1, 0, 2, 3))
    return result, None


# --------------------------------------------------------------------------
# Deterministic parameter init (PyTorch nn.Linear default: U(-1/sqrt(in), ..))
# --------------------------------------------------------------------------
def init_params(key, d_model, n_heads, d_keys=None, d_values=None):
    d_keys = d_keys or d_model // n_heads
    d_values = d_values or d_model // n_heads
    ks = jax.random.split(key, 8)

    def lin(kw, kb, fan_in, fan_out):
        bound = 1.0 / math.sqrt(fan_in)
        w = jax.random.uniform(kw, (fan_in, fan_out), jnp.float32, -bound, bound)
        b = jax.random.uniform(kb, (fan_out,), jnp.float32, -bound, bound)
        return w, b

    wq, bq = lin(ks[0], ks[1], d_model, d_keys * n_heads)
    wk, bk = lin(ks[2], ks[3], d_model, d_keys * n_heads)
    wv, bv = lin(ks[4], ks[5], d_model, d_values * n_heads)
    wo, bo = lin(ks[6], ks[7], d_values * n_heads, d_model)
    return {
        "n_heads": n_heads,
        "wq": wq, "bq": bq, "wk": wk, "bk": bk,
        "wv": wv, "bv": bv, "wo": wo, "bo": bo,
    }


# --------------------------------------------------------------------------
# Pure-JAX reference (for correctness check of the Pallas path)
# --------------------------------------------------------------------------
def attention_layer_ref(params, queries, keys, values):
    B, L, d_model = queries.shape
    _, S, _ = keys.shape
    H = params["n_heads"]
    q = (queries @ params["wq"] + params["bq"]).reshape(B, L, H, -1)
    k = (keys @ params["wk"] + params["bk"]).reshape(B, S, H, -1)
    v = (values @ params["wv"] + params["bv"]).reshape(B, S, H, -1)
    E = q.shape[-1]
    scores = jnp.einsum("blhe,bshe->bhls", q, k)
    attn = jax.nn.softmax(scores / math.sqrt(E), axis=-1)
    out = jnp.einsum("bhls,bshd->blhd", attn, v).reshape(B, L, -1)
    return out @ params["wo"] + params["bo"], attn


if __name__ == "__main__":
    # PatchTST encoder-like shapes: B = batch * n_vars patch sequences,
    # L = number of patches, d_model model width.
    B, L, d_model, n_heads = 6, 12, 32, 4

    key = jax.random.PRNGKey(0)
    kp, kx = jax.random.split(key, 2)
    params = init_params(kp, d_model, n_heads)
    x = jax.random.normal(kx, (B, L, d_model), jnp.float32)

    out_ref, attn_ref = attention_layer_ref(params, x, x, x)

    # 1) Self-attention fast path (PatchTST encoder), f32, attention returned.
    out1, attn1 = attention_layer_forward(params, x, output_attention=True,
                                          compute_dtype=jnp.float32)
    out1, attn1 = jax.block_until_ready((out1, attn1))
    assert out1.shape == (B, L, d_model)
    assert attn1.shape == (B, n_heads, L, L)
    assert jnp.allclose(out1, out_ref, atol=1e-4, rtol=1e-4)
    assert jnp.allclose(attn1, attn_ref, atol=1e-4, rtol=1e-4)

    # 2) Batch-blocked grid with a padded last block (block_b does not divide B).
    out2, attn2 = attention_layer_forward(params, x, output_attention=False,
                                          compute_dtype=jnp.float32, block_b=4)
    out2 = jax.block_until_ready(out2)
    assert attn2 is None
    assert jnp.allclose(out2, out_ref, atol=1e-4, rtol=1e-4)

    # 3) bf16 MXU-input path (f32 softmax/accumulation), bf16 output writeback.
    out3, _ = attention_layer_forward(params, x, output_attention=False,
                                      compute_dtype=jnp.bfloat16,
                                      out_dtype=jnp.bfloat16)
    out3 = jax.block_until_ready(out3)
    assert float(jnp.max(jnp.abs(out3.astype(jnp.float32) - out_ref))) < 2e-1

    # 4) General (cross) attention path with distinct q/k/v and S != L.
    S = 8
    kq2, kk2, kv2 = jax.random.split(jax.random.PRNGKey(1), 3)
    q2 = jax.random.normal(kq2, (B, L, d_model), jnp.float32)
    k2 = jax.random.normal(kk2, (B, S, d_model), jnp.float32)
    v2 = jax.random.normal(kv2, (B, S, d_model), jnp.float32)
    out4_ref, _ = attention_layer_ref(params, q2, k2, v2)
    out4, _ = attention_layer_forward(params, q2, k2, v2,
                                      output_attention=False,
                                      compute_dtype=jnp.float32)
    out4 = jax.block_until_ready(out4)
    assert jnp.allclose(out4, out4_ref, atol=1e-4, rtol=1e-4)

    print("KERNEL_OK")
</pallas_src>

<mosaic_0001>
module attributes {stable_mosaic.version = 11 : i64} {
  func.func @_self_attn_kernel(%arg0: i32, %arg1: memref<6x12x32xf32, #tpu.memory_space<vmem>>, %arg2: memref<32x96xf32, #tpu.memory_space<vmem>>, %arg3: memref<1x96xf32, #tpu.memory_space<vmem>>, %arg4: memref<32x32xf32, #tpu.memory_space<vmem>>, %arg5: memref<1x32xf32, #tpu.memory_space<vmem>>, %arg6: memref<6x12x32xf32, #tpu.memory_space<vmem>>, %arg7: memref<4x6x12x12xf32, #tpu.memory_space<vmem>>) attributes {dimension_semantics = [#tpu.dimension_semantics<parallel>], iteration_bounds = array<i64: 1>, scalar_prefetch = 0 : i64, scratch_operands = 0 : i64, tpu.core_type = #tpu.core_type<tc>, window_params = [{transform_indices = @transform_0, window_bounds = array<i64: 6, 12, 32>}, {pipeline_mode = #tpu.pipeline_mode<synchronous>, transform_indices = @transform_1, window_bounds = array<i64: 32, 96>}, {pipeline_mode = #tpu.pipeline_mode<synchronous>, transform_indices = @transform_2, window_bounds = array<i64: 1, 96>}, {pipeline_mode = #tpu.pipeline_mode<synchronous>, transform_indices = @transform_3, window_bounds = array<i64: 32, 32>}, {pipeline_mode = #tpu.pipeline_mode<synchronous>, transform_indices = @transform_4, window_bounds = array<i64: 1, 32>}, {transform_indices = @transform_5, window_bounds = array<i64: 6, 12, 32>}, {transform_indices = @transform_6, window_bounds = array<i64: 4, 6, 12, 12>}]} {
    %c0 = arith.constant 0 : index
    %c0_0 = arith.constant 0 : index
    %c0_1 = arith.constant 0 : index
    %0 = vector.load %arg1[%c0, %c0_0, %c0_1] : memref<6x12x32xf32, #tpu.memory_space<vmem>>, vector<6x12x32xf32>
    %1 = vector.shape_cast %0 : vector<6x12x32xf32> to vector<72x32xf32>
    %c0_2 = arith.constant 0 : index
    %c0_3 = arith.constant 0 : index
    %2 = vector.load %arg2[%c0_2, %c0_3] : memref<32x96xf32, #tpu.memory_space<vmem>>, vector<32x96xf32>
    %cst = arith.constant dense<0.000000e+00> : vector<72x96xf32>
    %3 = tpu.matmul %1, %2, %cst {dimension_numbers = #tpu.dot_dimension_numbers<[1], [0], [0], [1], [0, 0, 1, 1], [], []>} : vector<72x32xf32>, vector<32x96xf32>, vector<72x96xf32> -> vector<72x96xf32>
    %c0_4 = arith.constant 0 : index
    %c0_5 = arith.constant 0 : index
    %4 = vector.load %arg3[%c0_4, %c0_5] : memref<1x96xf32, #tpu.memory_space<vmem>>, vector<1x96xf32>
    %5 = vector.broadcast %4 : vector<1x96xf32> to vector<72x96xf32>
    %6 = arith.addf %3, %5 : vector<72x96xf32>
    %7 = vector.extract_strided_slice %6 {offsets = [0, 0], sizes = [72, 32], strides = [1, 1]} : vector<72x96xf32> to vector<72x32xf32>
    %8 = vector.extract_strided_slice %6 {offsets = [0, 32], sizes = [72, 32], strides = [1, 1]} : vector<72x96xf32> to vector<72x32xf32>
    %9 = vector.extract_strided_slice %6 {offsets = [0, 64], sizes = [72, 32], strides = [1, 1]} : vector<72x96xf32> to vector<72x32xf32>
    %10 = vector.extract_strided_slice %7 {offsets = [0, 0], sizes = [72, 8], strides = [1, 1]} : vector<72x32xf32> to vector<72x8xf32>
    %11 = vector.shape_cast %10 : vector<72x8xf32> to vector<6x12x8xf32>
    %12 = vector.extract_strided_slice %8 {offsets = [0, 0], sizes = [72, 8], strides = [1, 1]} : vector<72x32xf32> to vector<72x8xf32>
    %13 = vector.shape_cast %12 : vector<72x8xf32> to vector<6x12x8xf32>
    %14 = vector.extract_strided_slice %9 {offsets = [0, 0], sizes = [72, 8], strides = [1, 1]} : vector<72x32xf32> to vector<72x8xf32>
    %15 = vector.shape_cast %14 : vector<72x8xf32> to vector<6x12x8xf32>
    "tpu.trace_start"() <{level = 10 : i32, message = "bld,bsd->bls"}> : () -> ()
    %cst_6 = arith.constant dense<0.000000e+00> : vector<6x12x12xf32>
    %16 = tpu.matmul %11, %13, %cst_6 {dimension_numbers = #tpu.dot_dimension_numbers<[2], [2], [1], [1], [0, 0, 0, 1, 1, 1], [0], [0]>} : vector<6x12x8xf32>, vector<6x12x8xf32>, vector<6x12x12xf32> -> vector<6x12x12xf32>
    "tpu.trace_stop"() : () -> ()
    %cst_7 = arith.constant dense<0xFF800000> : vector<6x12xf32>
    %17 = vector.multi_reduction <maximumf>, %16, %cst_7 [2] : vector<6x12x12xf32> to vector<6x12xf32>
    %18 = vector.shape_cast %17 : vector<6x12xf32> to vector<6x12x1xf32>
    %19 = vector.broadcast %18 : vector<6x12x1xf32> to vector<6x12x12xf32>
    %20 = arith.subf %16, %19 : vector<6x12x12xf32>
    %21 = math.exp %20 : vector<6x12x12xf32>
    %cst_8 = arith.constant dense<0.000000e+00> : vector<6x12xf32>
    %22 = vector.multi_reduction <add>, %21, %cst_8 [2] : vector<6x12x12xf32> to vector<6x12xf32>
    %23 = vector.shape_cast %22 : vector<6x12xf32> to vector<6x12x1xf32>
    %24 = tpu.reciprocal %23 : vector<6x12x1xf32> -> vector<6x12x1xf32>
    %25 = vector.broadcast %24 : vector<6x12x1xf32> to vector<6x12x12xf32>
    %26 = arith.mulf %21, %25 : vector<6x12x12xf32>
    %c0_9 = arith.constant 0 : index
    %c0_10 = arith.constant 0 : index
    %c0_11 = arith.constant 0 : index
    %c0_12 = arith.constant 0 : index
    %27 = vector.load %arg7[%c0_9, %c0_10, %c0_11, %c0_12] : memref<4x6x12x12xf32, #tpu.memory_space<vmem>>, vector<1x6x12x12xf32>
    %28 = vector.shape_cast %27 : vector<1x6x12x12xf32> to vector<6x12x12xf32>
    %29 = vector.shape_cast %26 : vector<6x12x12xf32> to vector<1x6x12x12xf32>
    tpu.vector_store %arg7[%c0_9, %c0_10, %c0_11, %c0_12], %29 {strides = array<i32>} : memref<4x6x12x12xf32, #tpu.memory_space<vmem>>, vector<1x6x12x12xf32>,
    "tpu.trace_start"() <{level = 10 : i32, message = "bls,bsd->bld"}> : () -> ()
    %cst_13 = arith.constant dense<0.000000e+00> : vector<6x12x8xf32>
    %30 = tpu.matmul %26, %15, %cst_13 {dimension_numbers = #tpu.dot_dimension_numbers<[2], [1], [1], [2], [0, 0, 0, 1, 1, 2], [0], [0]>} : vector<6x12x12xf32>, vector<6x12x8xf32>, vector<6x12x8xf32> -> vector<6x12x8xf32>
    "tpu.trace_stop"() : () -> ()
    %31 = vector.extract_strided_slice %7 {offsets = [0, 8], sizes = [72, 8], strides = [1, 1]} : vector<72x32xf32> to vector<72x8xf32>
    %32 = vector.shape_cast %31 : vector<72x8xf32> to vector<6x12x8xf32>
    %33 = vector.extract_strided_slice %8 {offsets = [0, 8], sizes = [72, 8], strides = [1, 1]} : vector<72x32xf32> to vector<72x8xf32>
    %34 = vector.shape_cast %33 : vector<72x8xf32> to vector<6x12x8xf32>
    %35 = vector.extract_strided_slice %9 {offsets = [0, 8], sizes = [72, 8], strides = [1, 1]} : vector<72x32xf32> to vector<72x8xf32>
    %36 = vector.shape_cast %35 : vector<72x8xf32> to vector<6x12x8xf32>
    "tpu.trace_start"() <{level = 10 : i32, message = "bld,bsd->bls"}> : () -> ()
    %cst_14 = arith.constant dense<0.000000e+00> : vector<6x12x12xf32>
    %37 = tpu.matmul %32, %34, %cst_14 {dimension_numbers = #tpu.dot_dimension_numbers<[2], [2], [1], [1], [0, 0, 0, 1, 1, 1], [0], [0]>} : vector<6x12x8xf32>, vector<6x12x8xf32>, vector<6x12x12xf32> -> vector<6x12x12xf32>
    "tpu.trace_stop"() : () -> ()
    %cst_15 = arith.constant dense<0xFF800000> : vector<6x12xf32>
    %38 = vector.multi_reduction <maximumf>, %37, %cst_15 [2] : vector<6x12x12xf32> to vector<6x12xf32>
    %39 = vector.shape_cast %38 : vector<6x12xf32> to vector<6x12x1xf32>
    %40 = vector.broadcast %39 : vector<6x12x1xf32> to vector<6x12x12xf32>
    %41 = arith.subf %37, %40 : vector<6x12x12xf32>
    %42 = math.exp %41 : vector<6x12x12xf32>
    %cst_16 = arith.constant dense<0.000000e+00> : vector<6x12xf32>
    %43 = vector.multi_reduction <add>, %42, %cst_16 [2] : vector<6x12x12xf32> to vector<6x12xf32>
    %44 = vector.shape_cast %43 : vector<6x12xf32> to vector<6x12x1xf32>
    %45 = tpu.reciprocal %44 : vector<6x12x1xf32> -> vector<6x12x1xf32>
    %46 = vector.broadcast %45 : vector<6x12x1xf32> to vector<6x12x12xf32>
    %47 = arith.mulf %42, %46 : vector<6x12x12xf32>
    %c1 = arith.constant 1 : index
    %c0_17 = arith.constant 0 : index
    %c0_18 = arith.constant 0 : index
    %c0_19 = arith.constant 0 : index
    %48 = vector.load %arg7[%c1, %c0_17, %c0_18, %c0_19] : memref<4x6x12x12xf32, #tpu.memory_space<vmem>>, vector<1x6x12x12xf32>
    %49 = vector.shape_cast %48 : vector<1x6x12x12xf32> to vector<6x12x12xf32>
    %50 = vector.shape_cast %47 : vector<6x12x12xf32> to vector<1x6x12x12xf32>
    tpu.vector_store %arg7[%c1, %c0_17, %c0_18, %c0_19], %50 {strides = array<i32>} : memref<4x6x12x12xf32, #tpu.memory_space<vmem>>, vector<1x6x12x12xf32>,
    "tpu.trace_start"() <{level = 10 : i32, message = "bls,bsd->bld"}> : () -> ()
    %cst_20 = arith.constant dense<0.000000e+00> : vector<6x12x8xf32>
    %51 = tpu.matmul %47, %36, %cst_20 {dimension_numbers = #tpu.dot_dimension_numbers<[2], [1], [1], [2], [0, 0, 0, 1, 1, 2], [0], [0]>} : vector<6x12x12xf32>, vector<6x12x8xf32>, vector<6x12x8xf32> -> vector<6x12x8xf32>
    "tpu.trace_stop"() : () -> ()
    %52 = vector.extract_strided_slice %7 {offsets = [0, 16], sizes = [72, 8], strides = [1, 1]} : vector<72x32xf32> to vector<72x8xf32>
    %53 = vector.shape_cast %52 : vector<72x8xf32> to vector<6x12x8xf32>
    %54 = vector.extract_strided_slice %8 {offsets = [0, 16], sizes = [72, 8], strides = [1, 1]} : vector<72x32xf32> to vector<72x8xf32>
    %55 = vector.shape_cast %54 : vector<72x8xf32> to vector<6x12x8xf32>
    %56 = vector.extract_strided_slice %9 {offsets = [0, 16], sizes = [72, 8], strides = [1, 1]} : vector<72x32xf32> to vector<72x8xf32>
    %57 = vector.shape_cast %56 : vector<72x8xf32> to vector<6x12x8xf32>
    "tpu.trace_start"() <{level = 10 : i32, message = "bld,bsd->bls"}> : () -> ()
    %cst_21 = arith.constant dense<0.000000e+00> : vector<6x12x12xf32>
    %58 = tpu.matmul %53, %55, %cst_21 {dimension_numbers = #tpu.dot_dimension_numbers<[2], [2], [1], [1], [0, 0, 0, 1, 1, 1], [0], [0]>} : vector<6x12x8xf32>, vector<6x12x8xf32>, vector<6x12x12xf32> -> vector<6x12x12xf32>
    "tpu.trace_stop"() : () -> ()
    %cst_22 = arith.constant dense<0xFF800000> : vector<6x12xf32>
    %59 = vector.multi_reduction <maximumf>, %58, %cst_22 [2] : vector<6x12x12xf32> to vector<6x12xf32>
    %60 = vector.shape_cast %59 : vector<6x12xf32> to vector<6x12x1xf32>
    %61 = vector.broadcast %60 : vector<6x12x1xf32> to vector<6x12x12xf32>
    %62 = arith.subf %58, %61 : vector<6x12x12xf32>
    %63 = math.exp %62 : vector<6x12x12xf32>
    %cst_23 = arith.constant dense<0.000000e+00> : vector<6x12xf32>
    %64 = vector.multi_reduction <add>, %63, %cst_23 [2] : vector<6x12x12xf32> to vector<6x12xf32>
    %65 = vector.shape_cast %64 : vector<6x12xf32> to vector<6x12x1xf32>
    %66 = tpu.reciprocal %65 : vector<6x12x1xf32> -> vector<6x12x1xf32>
    %67 = vector.broadcast %66 : vector<6x12x1xf32> to vector<6x12x12xf32>
    %68 = arith.mulf %63, %67 : vector<6x12x12xf32>
    %c2 = arith.constant 2 : index
    %c0_24 = arith.constant 0 : index
    %c0_25 = arith.constant 0 : index
    %c0_26 = arith.constant 0 : index
    %69 = vector.load %arg7[%c2, %c0_24, %c0_25, %c0_26] : memref<4x6x12x12xf32, #tpu.memory_space<vmem>>, vector<1x6x12x12xf32>
    %70 = vector.shape_cast %69 : vector<1x6x12x12xf32> to vector<6x12x12xf32>
    %71 = vector.shape_cast %68 : vector<6x12x12xf32> to vector<1x6x12x12xf32>
    tpu.vector_store %arg7[%c2, %c0_24, %c0_25, %c0_26], %71 {strides = array<i32>} : memref<4x6x12x12xf32, #tpu.memory_space<vmem>>, vector<1x6x12x12xf32>,
    "tpu.trace_start"() <{level = 10 : i32, message = "bls,bsd->bld"}> : () -> ()
    %cst_27 = arith.constant dense<0.000000e+00> : vector<6x12x8xf32>
    %72 = tpu.matmul %68, %57, %cst_27 {dimension_numbers = #tpu.dot_dimension_numbers<[2], [1], [1], [2], [0, 0, 0, 1, 1, 2], [0], [0]>} : vector<6x12x12xf32>, vector<6x12x8xf32>, vector<6x12x8xf32> -> vector<6x12x8xf32>
    "tpu.trace_stop"() : () -> ()
    %73 = vector.extract_strided_slice %7 {offsets = [0, 24], sizes = [72, 8], strides = [1, 1]} : vector<72x32xf32> to vector<72x8xf32>
    %74 = vector.shape_cast %73 : vector<72x8xf32> to vector<6x12x8xf32>
    %75 = vector.extract_strided_slice %8 {offsets = [0, 24], sizes = [72, 8], strides = [1, 1]} : vector<72x32xf32> to vector<72x8xf32>
    %76 = vector.shape_cast %75 : vector<72x8xf32> to vector<6x12x8xf32>
    %77 = vector.extract_strided_slice %9 {offsets = [0, 24], sizes = [72, 8], strides = [1, 1]} : vector<72x32xf32> to vector<72x8xf32>
    %78 = vector.shape_cast %77 : vector<72x8xf32> to vector<6x12x8xf32>
    "tpu.trace_start"() <{level = 10 : i32, message = "bld,bsd->bls"}> : () -> ()
    %cst_28 = arith.constant dense<0.000000e+00> : vector<6x12x12xf32>
    %79 = tpu.matmul %74, %76, %cst_28 {dimension_numbers = #tpu.dot_dimension_numbers<[2], [2], [1], [1], [0, 0, 0, 1, 1, 1], [0], [0]>} : vector<6x12x8xf32>, vector<6x12x8xf32>, vector<6x12x12xf32> -> vector<6x12x12xf32>
    "tpu.trace_stop"() : () -> ()
    %cst_29 = arith.constant dense<0xFF800000> : vector<6x12xf32>
    %80 = vector.multi_reduction <maximumf>, %79, %cst_29 [2] : vector<6x12x12xf32> to vector<6x12xf32>
    %81 = vector.shape_cast %80 : vector<6x12xf32> to vector<6x12x1xf32>
    %82 = vector.broadcast %81 : vector<6x12x1xf32> to vector<6x12x12xf32>
    %83 = arith.subf %79, %82 : vector<6x12x12xf32>
    %84 = math.exp %83 : vector<6x12x12xf32>
    %cst_30 = arith.constant dense<0.000000e+00> : vector<6x12xf32>
    %85 = vector.multi_reduction <add>, %84, %cst_30 [2] : vector<6x12x12xf32> to vector<6x12xf32>
    %86 = vector.shape_cast %85 : vector<6x12xf32> to vector<6x12x1xf32>
    %87 = tpu.reciprocal %86 : vector<6x12x1xf32> -> vector<6x12x1xf32>
    %88 = vector.broadcast %87 : vector<6x12x1xf32> to vector<6x12x12xf32>
    %89 = arith.mulf %84, %88 : vector<6x12x12xf32>
    %c3 = arith.constant 3 : index
    %c0_31 = arith.constant 0 : index
    %c0_32 = arith.constant 0 : index
    %c0_33 = arith.constant 0 : index
    %90 = vector.load %arg7[%c3, %c0_31, %c0_32, %c0_33] : memref<4x6x12x12xf32, #tpu.memory_space<vmem>>, vector<1x6x12x12xf32>
    %91 = vector.shape_cast %90 : vector<1x6x12x12xf32> to vector<6x12x12xf32>
    %92 = vector.shape_cast %89 : vector<6x12x12xf32> to vector<1x6x12x12xf32>
    tpu.vector_store %arg7[%c3, %c0_31, %c0_32, %c0_33], %92 {strides = array<i32>} : memref<4x6x12x12xf32, #tpu.memory_space<vmem>>, vector<1x6x12x12xf32>,
    "tpu.trace_start"() <{level = 10 : i32, message = "bls,bsd->bld"}> : () -> ()
    %cst_34 = arith.constant dense<0.000000e+00> : vector<6x12x8xf32>
    %93 = tpu.matmul %89, %78, %cst_34 {dimension_numbers = #tpu.dot_dimension_numbers<[2], [1], [1], [2], [0, 0, 0, 1, 1, 2], [0], [0]>} : vector<6x12x12xf32>, vector<6x12x8xf32>, vector<6x12x8xf32> -> vector<6x12x8xf32>
    "tpu.trace_stop"() : () -> ()
    %94 = tpu.concatenate %30, %51, %72, %93 in 2 : vector<6x12x8xf32>, vector<6x12x8xf32>, vector<6x12x8xf32>, vector<6x12x8xf32> -> vector<6x12x32xf32>
    %95 = vector.shape_cast %94 : vector<6x12x32xf32> to vector<72x32xf32>
    %c0_35 = arith.constant 0 : index
    %c0_36 = arith.constant 0 : index
    %96 = vector.load %arg4[%c0_35, %c0_36] : memref<32x32xf32, #tpu.memory_space<vmem>>, vector<32x32xf32>
    %cst_37 = arith.constant dense<0.000000e+00> : vector<72x32xf32>
    %97 = tpu.matmul %95, %96, %cst_37 {dimension_numbers = #tpu.dot_dimension_numbers<[1], [0], [0], [1], [0, 0, 1, 1], [], []>} : vector<72x32xf32>, vector<32x32xf32>, vector<72x32xf32> -> vector<72x32xf32>
    %c0_38 = arith.constant 0 : index
    %c0_39 = arith.constant 0 : index
    %98 = vector.load %arg5[%c0_38, %c0_39] : memref<1x32xf32, #tpu.memory_space<vmem>>, vector<1x32xf32>
    %99 = vector.broadcast %98 : vector<1x32xf32> to vector<72x32xf32>
    %100 = arith.addf %97, %99 : vector<72x32xf32>
    %101 = vector.shape_cast %100 : vector<72x32xf32> to vector<6x12x32xf32>
    %c0_40 = arith.constant 0 : index
    %c0_41 = arith.constant 0 : index
    %c0_42 = arith.constant 0 : index
    %102 = vector.load %arg6[%c0_40, %c0_41, %c0_42] : memref<6x12x32xf32, #tpu.memory_space<vmem>>, vector<6x12x32xf32>
    tpu.vector_store %arg6[%c0_40, %c0_41, %c0_42], %101 {strides = array<i32>} : memref<6x12x32xf32, #tpu.memory_space<vmem>>, vector<6x12x32xf32>,
    return
  }
  func.func @transform_0(%arg0: i32) -> (i32, i32, i32) {
    %c0_i32 = arith.constant 0 : i32
    %c0_i32_0 = arith.constant 0 : i32
    %c0_i32_1 = arith.constant 0 : i32
    return %arg0, %c0_i32, %c0_i32_0 : i32, i32, i32
  }
  func.func @transform_1(%arg0: i32) -> (i32, i32) {
    %c0_i32 = arith.constant 0 : i32
    %c0_i32_0 = arith.constant 0 : i32
    %c0_i32_1 = arith.constant 0 : i32
    return %c0_i32, %c0_i32_0 : i32, i32
  }
  func.func @transform_2(%arg0: i32) -> (i32, i32) {
    %c0_i32 = arith.constant 0 : i32
    %c0_i32_0 = arith.constant 0 : i32
    %c0_i32_1 = arith.constant 0 : i32
    return %c0_i32, %c0_i32_0 : i32, i32
  }
  func.func @transform_3(%arg0: i32) -> (i32, i32) {
    %c0_i32 = arith.constant 0 : i32
    %c0_i32_0 = arith.constant 0 : i32
    %c0_i32_1 = arith.constant 0 : i32
    return %c0_i32, %c0_i32_0 : i32, i32
  }
  func.func @transform_4(%arg0: i32) -> (i32, i32) {
    %c0_i32 = arith.constant 0 : i32
    %c0_i32_0 = arith.constant 0 : i32
    %c0_i32_1 = arith.constant 0 : i32
    return %c0_i32, %c0_i32_0 : i32, i32
  }
  func.func @transform_5(%arg0: i32) -> (i32, i32, i32) {
    %c0_i32 = arith.constant 0 : i32
    %c0_i32_0 = arith.constant 0 : i32
    %c0_i32_1 = arith.constant 0 : i32
    return %arg0, %c0_i32, %c0_i32_0 : i32, i32, i32
  }
  func.func @transform_6(%arg0: i32) -> (i32, i32, i32, i32) {
    %c0_i32 = arith.constant 0 : i32
    %c0_i32_0 = arith.constant 0 : i32
    %c0_i32_1 = arith.constant 0 : i32
    %c0_i32_2 = arith.constant 0 : i32
    return %c0_i32, %arg0, %c0_i32_0, %c0_i32_1 : i32, i32, i32, i32
  }
}

</mosaic_0001>

<llo_original>
// kernel: tpu_custom_call.1
$region0: #{tpu_custom_call.1}
  #allocation0 [shape = 'u32[]', space=smem, size = 0x4, offset = 0x4, fixed_abs, tag = 'smem constant byte address 0x4 - core index']
  #allocation1 [shape = 'u32[72,128]{1,0:T(1,128)}', space=vmem, size = 0x9000, scoped, tag = 'internal scratch']
  %s0 = inlined_call_operand.hbm [shape: f32[6,12,32], index: 0, kind: input, shape index: {}]
  %s1 = inlined_call_operand.hbm [shape: f32[32,96], index: 1, kind: input, shape index: {}]
  %s2 = inlined_call_operand.vmem [shape: f32[1,96], index: 2, kind: input, shape index: {}]
  %s3 = inlined_call_operand.hbm [shape: f32[32,32], index: 3, kind: input, shape index: {}]
  %s4 = inlined_call_operand.vmem [shape: f32[1,32], index: 4, kind: input, shape index: {}]
  %s5 = inlined_call_operand.hbm [shape: f32[6,12,32], index: 5, kind: output, shape index: {0}]
  %s6 = inlined_call_operand.vmem [shape: f32[4,6,12,12], index: 6, kind: output, shape index: {1}]
  %7 = xla_tuple %s5, %s6
  %s8 = sld [smem:[#allocation0]]
  $region50: #{tpu_custom_call.1} parent=0
    _
  %s10 = ssub.s32 1, %s8
  %s11 = scalar_select 0, %s10, %s8
  $region1: #{tpu_custom_call.1} parent=0
    #allocation2 [shape = 'u8[49152]{0}', space=vmem, size = 0xc000, scoped, tag = 'input window, operand 0, single buffered']
    #allocation3 [shape = 's32[1]{0}', space=sflag, size = 0x4, scoped, tag = 'scoped memory for tpu_custom_call.1']
    #allocation4 [shape = 's32[1]{0}', space=sflag, size = 0x4, scoped, tag = 'scoped memory for tpu_custom_call.1']
    #allocation5 [shape = 'u8[16384]{0}', space=vmem, size = 0x4000, scoped, tag = 'input window, operand 1, single buffered']
    #allocation6 [shape = 's32[1]{0}', space=sflag, size = 0x4, scoped, tag = 'scoped memory for tpu_custom_call.1']
    #allocation7 [shape = 'u8[16384]{0}', space=vmem, size = 0x4000, scoped, tag = 'input window, operand 3, single buffered']
    #allocation8 [shape = 'u8[49152]{0}', space=vmem, size = 0xc000, scoped, tag = 'output window, operand 0, single buffered']
    %12 = vsyncpa [#allocation3], 0
    %13 = vsyncpa [#allocation6], 0
    %14 = vsyncpa [#allocation4], 0
    // Predicated region
    $region2: #{tpu_custom_call.1} parent=1 // pred_check
      _
    $region3: #{tpu_custom_call.1} parent=1 // pred_check_branch
      %16 = sbr.rel (0) target = $region5
    $region4: #{tpu_custom_call.1} parent=1 // pred_region
      %18 = vsyncadd [#allocation3], 0
      %s19 = sshll.u32 %s0, 4
      %s20 = int_to_ptr.hbm [resolvable:$true] %s19
      %s21 = sshll.u32 [#allocation2], 4
      %s22 = int_to_ptr.vmem [resolvable:$true] %s21
      %27 = dma.hbm_to_vmem [thread:$0]  %s20, 1536, %s22, [#allocation3], 128, 128, 8
    $region5: #{tpu_custom_call.1} parent=1 // pred_fallthru
      _
    // Predicated region
    $region6: #{tpu_custom_call.1} parent=1 // pred_check
      _
    $region7: #{tpu_custom_call.1} parent=1 // pred_check_branch
      %29 = sbr.rel (0) target = $region9
    $region8: #{tpu_custom_call.1} parent=1 // pred_region
      %31 = vsyncadd [#allocation6], 0
      %s32 = sshll.u32 %s1, 4
      %s33 = int_to_ptr.hbm [resolvable:$true] %s32
      %s34 = sshll.u32 [#allocation5], 4
      %s35 = int_to_ptr.vmem [resolvable:$true] %s34
      %40 = dma.hbm_to_vmem [thread:$0]  %s33, 512, %s35, [#allocation6], 128, 128, 8
    $region9: #{tpu_custom_call.1} parent=1 // pred_fallthru
      _
    // Predicated region
    $region10: #{tpu_custom_call.1} parent=1 // pred_check
      _
    $region11: #{tpu_custom_call.1} parent=1 // pred_check_branch
      %42 = sbr.rel (0) target = $region13
    $region12: #{tpu_custom_call.1} parent=1 // pred_region
      _
    $region13: #{tpu_custom_call.1} parent=1 // pred_fallthru
      _
    // Predicated region
    $region14: #{tpu_custom_call.1} parent=1 // pred_check
      _
    $region15: #{tpu_custom_call.1} parent=1 // pred_check_branch
      %44 = sbr.rel (0) target = $region17
    $region16: #{tpu_custom_call.1} parent=1 // pred_region
      %46 = vsyncadd [#allocation6], 0
      %s47 = sshll.u32 %s3, 4
      %s48 = int_to_ptr.hbm [resolvable:$true] %s47
      %s49 = sshll.u32 [#allocation7], 4
      %s50 = int_to_ptr.vmem [resolvable:$true] %s49
      %55 = dma.hbm_to_vmem [thread:$0]  %s48, 512, %s50, [#allocation6], 128, 128, 8
    $region17: #{tpu_custom_call.1} parent=1 // pred_fallthru
      _
    // Predicated region
    $region18: #{tpu_custom_call.1} parent=1 // pred_check
      _
    $region19: #{tpu_custom_call.1} parent=1 // pred_check_branch
      %57 = sbr.rel (0) target = $region21
    $region20: #{tpu_custom_call.1} parent=1 // pred_region
      _
    $region21: #{tpu_custom_call.1} parent=1 // pred_fallthru
      _
    // Predicated region
    $region22: #{tpu_custom_call.1} parent=1 // pred_check
      _
    $region23: #{tpu_custom_call.1} parent=1 // pred_check_branch
      %59 = sbr.rel (0) target = $region25
    $region24: #{tpu_custom_call.1} parent=1 // pred_region
      %61 = dma.done [#allocation3], 1536
    $region25: #{tpu_custom_call.1} parent=1 // pred_fallthru
      _
    // Predicated region
    $region26: #{tpu_custom_call.1} parent=1 // pred_check
      _
    $region27: #{tpu_custom_call.1} parent=1 // pred_check_branch
      %63 = sbr.rel (0) target = $region29
    $region28: #{tpu_custom_call.1} parent=1 // pred_region
      %65 = dma.done [#allocation6], 512
    $region29: #{tpu_custom_call.1} parent=1 // pred_fallthru
      _
    // Predicated region
    $region30: #{tpu_custom_call.1} parent=1 // pred_check
      _
    $region31: #{tpu_custom_call.1} parent=1 // pred_check_branch
      %67 = sbr.rel (0) target = $region33
    $region32: #{tpu_custom_call.1} parent=1 // pred_region
      %69 = dma.done [#allocation6], 512
    $region33: #{tpu_custom_call.1} parent=1 // pred_fallthru
      _
    %v70 = vld [vmem:[#allocation2] sm:$0xff]
    %v71 = vld [vmem:[#allocation2 + $0x8] sm:$0xf]
    %v72 = vld [vmem:[#allocation2 + $0x10] sm:$0xff]
    %v73 = vld [vmem:[#allocation2 + $0x18] sm:$0xf]
    %v74 = vld [vmem:[#allocation2 + $0x20] sm:$0xff]
    %v75 = vld [vmem:[#allocation2 + $0x28] sm:$0xf]
    %v76 = vld [vmem:[#allocation2 + $0x30] sm:$0xff]
    %v77 = vld [vmem:[#allocation2 + $0x38] sm:$0xf]
    %v78 = vld [vmem:[#allocation2 + $0x40] sm:$0xff]
    %v79 = vld [vmem:[#allocation2 + $0x48] sm:$0xf]
    %v80 = vld [vmem:[#allocation2 + $0x50] sm:$0xff]
    %v81 = vld [vmem:[#allocation2 + $0x58] sm:$0xf]
    %v94 = vrot.slane %v70, 4
    %v95 = vrot.slane %v72, 4
    %v96 = vrot.slane %v74, 4
    %v97 = vrot.slane %v76, 4
    %v98 = vrot.slane %v78, 4
    %v99 = vrot.slane %v80, 4
    %v100 = vld [vmem:[#allocation5] sm:$0xff]
    %v101 = vld [vmem:[#allocation5 + $0x8] sm:$0xff]
    %v102 = vld [vmem:[#allocation5 + $0x10] sm:$0xff]
    %v103 = vld [vmem:[#allocation5 + $0x18] sm:$0xff]
    %v104 = vld [vmem:[%s2] sm:$0x1]
    %v106 = vperm.slane %v104, 0
    %108 = vst [vmem:[#allocation1] ss:$2 sm:$0xff] %v70
    %s109 = scalar_lea.vmem [#allocation1], 1
    %110 = vst [vmem:[%s109] ss:$2 sm:$0xff] %v94
    %s111 = scalar_lea.vmem [#allocation1], 16
    %112 = vst [vmem:[%s111] ss:$2 sm:$0xff] %v71
    %s113 = scalar_lea.vmem [#allocation1], 17
    %114 = vst [vmem:[%s113] ss:$2 sm:$0xff] %v72
    %s115 = scalar_lea.vmem [#allocation1], 32
    %116 = vst [vmem:[%s115] ss:$2 sm:$0xff] %v95
    %s117 = scalar_lea.vmem [#allocation1], 33
    %118 = vst [vmem:[%s117] ss:$2 sm:$0xff] %v73
    %s119 = scalar_lea.vmem [#allocation1], 48
    %120 = vst [vmem:[%s119] ss:$2 sm:$0xff] %v74
    %s121 = scalar_lea.vmem [#allocation1], 49
    %122 = vst [vmem:[%s121] ss:$2 sm:$0xff] %v96
    %v123 = vld.sshfl [vmem:[#allocation1] sm:$0xff pattern:$0x75316420]
    %v124 = vld.sshfl [vmem:[#allocation1 + $0x10] sm:$0xff pattern:$0x75316420]
    %v125 = vld.sshfl [vmem:[#allocation1 + $0x20] sm:$0xff pattern:$0x75316420]
    %v126 = vld.sshfl [vmem:[#allocation1 + $0x30] sm:$0xff pattern:$0x75316420]
    %127 = vst [vmem:[#allocation1] ss:$2 sm:$0xff] %v75
    %128 = vst [vmem:[%s109] ss:$2 sm:$0xff] %v76
    %129 = vst [vmem:[%s111] ss:$2 sm:$0xff] %v97
    %130 = vst [vmem:[%s113] ss:$2 sm:$0xff] %v77
    %131 = vst [vmem:[%s115] ss:$2 sm:$0xff] %v78
    %132 = vst [vmem:[%s117] ss:$2 sm:$0xff] %v98
    %133 = vst [vmem:[%s119] ss:$2 sm:$0xff] %v79
    %134 = vst [vmem:[%s121] ss:$2 sm:$0xff] %v80
    %v135 = vld.sshfl [vmem:[#allocation1] sm:$0xff pattern:$0x75316420]
    %v136 = vld.sshfl [vmem:[#allocation1 + $0x10] sm:$0xff pattern:$0x75316420]
    %v137 = vld.sshfl [vmem:[#allocation1 + $0x20] sm:$0xff pattern:$0x75316420]
    %v138 = vld.sshfl [vmem:[#allocation1 + $0x30] sm:$0xff pattern:$0x75316420]
    %139 = vst [vmem:[#allocation1] ss:$2 sm:$0xff] %v99
    %140 = vst [vmem:[%s109] ss:$2 sm:$0xff] %v81
    %v141 = vld.sshfl [vmem:[#allocation1] sm:$0xff pattern:$0x75316420]
    %vm142 = vcmask 261120
    %v143 = vsel %vm142, %v123, 0
    %v145 = vsel %vm142, %v124, 0
    %v147 = vsel %vm142, %v125, 0
    %v149 = vsel %vm142, %v126, 0
    %v151 = vsel %vm142, %v135, 0
    %v153 = vsel %vm142, %v136, 0
    %v155 = vsel %vm142, %v137, 0
    %v157 = vsel %vm142, %v138, 0
    %v159 = vsel %vm142, %v141, 0
    %161 = vmatpush.msra.mxu0 0.0
    %162 = vmatpush.msra.mxu0 0.0
    %163 = vmatpush.msra.mxu0 0.0
    %164 = vmatpush.msra.mxu0 0.0
    %165 = vmatpush.msra.mxu0 0.0
    %166 = vmatpush.msra.mxu0 0.0
    %167 = vmatpush.msra.mxu0 0.0
    %168 = vmatpush.msra.mxu0 0.0
    %169 = vmatpush.msra.mxu0 0.0
    %170 = vmatpush.msra.mxu0 0.0
    %171 = vmatpush.msra.mxu0 0.0
    %172 = vmatpush.msra.mxu0 0.0
    %173 = vmatpush.msra.mxu0 %v103
    %174 = vmatpush.msra.mxu0 %v102
    %175 = vmatpush.msra.mxu0 %v101
    %176 = vmatpush.msra.mxu0 %v100
    %177 = vmatmul.f32.gmra.mxu0 %v143
    %v178 = vpop.f32.mrf.mxu0
    %v179 = vadd.f32 %v106, %v178
    %180 = vmatmul.f32.gmra.mxu0 %v145
    %v181 = vpop.f32.mrf.mxu0
    %v182 = vadd.f32 %v106, %v181
    %183 = vmatmul.f32.gmra.mxu0 %v147
    %v184 = vpop.f32.mrf.mxu0
    %v185 = vadd.f32 %v106, %v184
    %186 = vmatmul.f32.gmra.mxu0 %v149
    %v187 = vpop.f32.mrf.mxu0
    %v188 = vadd.f32 %v106, %v187
    %189 = vmatmul.f32.gmra.mxu0 %v151
    %v190 = vpop.f32.mrf.mxu0
    %v191 = vadd.f32 %v106, %v190
    %192 = vmatmul.f32.gmra.mxu0 %v153
    %v193 = vpop.f32.mrf.mxu0
    %v194 = vadd.f32 %v106, %v193
    %195 = vmatmul.f32.gmra.mxu0 %v155
    %v196 = vpop.f32.mrf.mxu0
    %v197 = vadd.f32 %v106, %v196
    %198 = vmatmul.f32.gmra.mxu0 %v157
    %v199 = vpop.f32.mrf.mxu0
    %v200 = vadd.f32 %v106, %v199
    %201 = vmatmul.f32.gmra.mxu0 %v159
    %v202 = vpop.f32.mrf.mxu0
    %v203 = vadd.f32 %v106, %v202
    %204 = vdwg.mxu0
    %v214 = vrot.slane %v179, 4
    %v215 = vrot.slane %v182, 4
    %v216 = vrot.slane %v185, 4
    %v217 = vrot.slane %v188, 4
    %v218 = vrot.slane %v191, 4
    %v219 = vrot.slane %v194, 4
    %v220 = vrot.slane %v197, 4
    %v221 = vrot.slane %v200, 4
    %v222 = vrot.slane %v203, 4
    %223 = vst [vmem:[#allocation1] ss:$2 sm:$0xff] %v179
    %s224 = scalar_lea.vmem [#allocation1], 1
    %225 = vst [vmem:[%s224] ss:$2 sm:$0xff] %v214
    %s226 = scalar_lea.vmem [#allocation1], 16
    %227 = vst [vmem:[%s226] ss:$2 sm:$0xff] %v182
    %v228 = vld.sshfl [vmem:[#allocation1] sm:$0xff pattern:$0x75316420]
    %v229 = vld.sshfl [vmem:[#allocation1 + $0x10] sm:$0xff pattern:$0x75316420]
    %230 = vst [vmem:[#allocation1] ss:$2 sm:$0xff] %v179
    %s231 = scalar_lea.vmem [#allocation1], 1
    %232 = vst [vmem:[%s231] ss:$2 sm:$0xff] %v214
    %s233 = scalar_lea.vmem [#allocation1], 16
    %234 = vst [vmem:[%s233] ss:$2 sm:$0xff] %v182
    %v235 = vld.sshfl [vmem:[#allocation1] sm:$0xff pattern:$0x75316420]
    %v236 = vld.sshfl [vmem:[#allocation1 + $0x10] sm:$0xff pattern:$0x75316420]
    %237 = vrot.lane.b32.xlu0 %v235, 96
    %v238 = vpop.permute.xlu0 %237
    %239 = vrot.lane.b32.xlu0 %v236, 96
    %v240 = vpop.permute.xlu0 %239
    %vm241 = vcmask 64512
    %v242 = vsel %vm241, %v228, 0
    %v244 = vsel %vm241, %v229, 0
    %v246 = vsel %vm241, %v238, 0
    %v248 = vsel %vm241, %v240, 0
    %250 = vmatpush.xpose.msra.mxu0 0.0
    %251 = vmatpush.xpose.msra.mxu0 0.0
    %252 = vmatpush.xpose.msra.mxu0 0.0
    %253 = vmatpush.xpose.msra.mxu0 0.0
    %254 = vmatpush.xpose.msra.mxu0 0.0
    %255 = vmatpush.xpose.msra.mxu0 0.0
    %256 = vmatpush.xpose.msra.mxu0 0.0
    %257 = vmatpush.xpose.msra.mxu0 0.0
    %258 = vmatpush.xpose.msra.mxu0 0.0
    %259 = vmatpush.xpose.msra.mxu0 0.0
    %260 = vmatpush.xpose.msra.mxu0 0.0
    %261 = vmatpush.xpose.msra.mxu0 0.0
    %262 = vmatpush.xpose.msra.mxu0 0.0
    %263 = vmatpush.xpose.msra.mxu0 0.0
    %264 = vmatpush.xpose.msra.mxu0 %v248
    %265 = vmatpush.xpose.msra.mxu0 %v246
    %266 = vmatmul.f32.gmra.mxu0 %v242
    %v267 = vpop.f32.mrf.mxu0
    %v268 = vadd.f32 0.0, %v267
    %269 = vmatmul.f32.gmra.mxu0 %v244
    %v270 = vpop.f32.mrf.mxu0
    %v271 = vadd.f32 0.0, %v270
    %272 = vdwg.mxu0
    %273 = vst [vmem:[#allocation1] ss:$2 sm:$0xff] %v215
    %s274 = scalar_lea.vmem [#allocation1], 1
    %275 = vst [vmem:[%s274] ss:$2 sm:$0xff] %v185
    %s276 = scalar_lea.vmem [#allocation1], 16
    %277 = vst [vmem:[%s276] ss:$2 sm:$0xff] %v216
    %v278 = vld.sshfl [vmem:[#allocation1] sm:$0xff pattern:$0x75316420]
    %v279 = vld.sshfl [vmem:[#allocation1 + $0x10] sm:$0xff pattern:$0x75316420]
    %280 = vst [vmem:[#allocation1] ss:$2 sm:$0xff] %v215
    %s281 = scalar_lea.vmem [#allocation1], 1
    %282 = vst [vmem:[%s281] ss:$2 sm:$0xff] %v185
    %s283 = scalar_lea.vmem [#allocation1], 16
    %284 = vst [vmem:[%s283] ss:$2 sm:$0xff] %v216
    %v285 = vld.sshfl [vmem:[#allocation1] sm:$0xff pattern:$0x75316420]
    %v286 = vld.sshfl [vmem:[#allocation1 + $0x10] sm:$0xff pattern:$0x75316420]
    %287 = vrot.lane.b32.xlu0 %v285, 96
    %v288 = vpop.permute.xlu0 %287
    %289 = vrot.lane.b32.xlu0 %v286, 96
    %v290 = vpop.permute.xlu0 %289
    %v291 = vsel %vm241, %v278, 0
    %v293 = vsel %vm241, %v279, 0
    %v295 = vsel %vm241, %v288, 0
    %v297 = vsel %vm241, %v290, 0
    %299 = vmatpush.xpose.msra.mxu0 0.0
    %300 = vmatpush.xpose.msra.mxu0 0.0
    %301 = vmatpush.xpose.msra.mxu0 0.0
    %302 = vmatpush.xpose.msra.mxu0 0.0
    %303 = vmatpush.xpose.msra.mxu0 0.0
    %304 = vmatpush.xpose.msra.mxu0 0.0
    %305 = vmatpush.xpose.msra.mxu0 0.0
    %306 = vmatpush.xpose.msra.mxu0 0.0
    %307 = vmatpush.xpose.msra.mxu0 0.0
    %308 = vmatpush.xpose.msra.mxu0 0.0
    %309 = vmatpush.xpose.msra.mxu0 0.0
    %310 = vmatpush.xpose.msra.mxu0 0.0
    %311 = vmatpush.xpose.msra.mxu0 0.0
    %312 = vmatpush.xpose.msra.mxu0 0.0
    %313 = vmatpush.xpose.msra.mxu0 %v297
    %314 = vmatpush.xpose.msra.mxu0 %v295
    %315 = vmatmul.f32.gmra.mxu0 %v291
    %v316 = vpop.f32.mrf.mxu0
    %v317 = vadd.f32 0.0, %v316
    %318 = vmatmul.f32.gmra.mxu0 %v293
    %v319 = vpop.f32.mrf.mxu0
    %v320 = vadd.f32 0.0, %v319
    %321 = vdwg.mxu0
    %322 = vst [vmem:[#allocation1] ss:$2 sm:$0xff] %v188
    %s323 = scalar_lea.vmem [#allocation1], 1
    %324 = vst [vmem:[%s323] ss:$2 sm:$0xff] %v217
    %s325 = scalar_lea.vmem [#allocation1], 16
    %326 = vst [vmem:[%s325] ss:$2 sm:$0xff] %v191
    %v327 = vld.sshfl [vmem:[#allocation1] sm:$0xff pattern:$0x75316420]
    %v328 = vld.sshfl [vmem:[#allocation1 + $0x10] sm:$0xff pattern:$0x75316420]
    %329 = vst [vmem:[#allocation1] ss:$2 sm:$0xff] %v188
    %s330 = scalar_lea.vmem [#allocation1], 1
    %331 = vst [vmem:[%s330] ss:$2 sm:$0xff] %v217
    %s332 = scalar_lea.vmem [#allocation1], 16
    %333 = vst [vmem:[%s332] ss:$2 sm:$0xff] %v191
    %v334 = vld.sshfl [vmem:[#allocation1] sm:$0xff pattern:$0x75316420]
    %v335 = vld.sshfl [vmem:[#allocation1 + $0x10] sm:$0xff pattern:$0x75316420]
    %336 = vrot.lane.b32.xlu0 %v334, 96
    %v337 = vpop.permute.xlu0 %336
    %338 = vrot.lane.b32.xlu0 %v335, 96
    %v339 = vpop.permute.xlu0 %338
    %v340 = vsel %vm241, %v327, 0
    %v342 = vsel %vm241, %v328, 0
    %v344 = vsel %vm241, %v337, 0
    %v346 = vsel %vm241, %v339, 0
    %348 = vmatpush.xpose.msra.mxu0 0.0
    %349 = vmatpush.xpose.msra.mxu0 0.0
    %350 = vmatpush.xpose.msra.mxu0 0.0
    %351 = vmatpush.xpose.msra.mxu0 0.0
    %352 = vmatpush.xpose.msra.mxu0 0.0
    %353 = vmatpush.xpose.msra.mxu0 0.0
    %354 = vmatpush.xpose.msra.mxu0 0.0
    %355 = vmatpush.xpose.msra.mxu0 0.0
    %356 = vmatpush.xpose.msra.mxu0 0.0
    %357 = vmatpush.xpose.msra.mxu0 0.0
    %358 = vmatpush.xpose.msra.mxu0 0.0
    %359 = vmatpush.xpose.msra.mxu0 0.0
    %360 = vmatpush.xpose.msra.mxu0 0.0
    %361 = vmatpush.xpose.msra.mxu0 0.0
    %362 = vmatpush.xpose.msra.mxu0 %v346
    %363 = vmatpush.xpose.msra.mxu0 %v344
    %364 = vmatmul.f32.gmra.mxu0 %v340
    %v365 = vpop.f32.mrf.mxu0
    %v366 = vadd.f32 0.0, %v365
    %367 = vmatmul.f32.gmra.mxu0 %v342
    %v368 = vpop.f32.mrf.mxu0
    %v369 = vadd.f32 0.0, %v368
    %370 = vdwg.mxu0
    %371 = vst [vmem:[#allocation1] ss:$2 sm:$0xff] %v218
    %s372 = scalar_lea.vmem [#allocation1], 1
    %373 = vst [vmem:[%s372] ss:$2 sm:$0xff] %v194
    %s374 = scalar_lea.vmem [#allocation1], 16
    %375 = vst [vmem:[%s374] ss:$2 sm:$0xff] %v219
    %v376 = vld.sshfl [vmem:[#allocation1] sm:$0xff pattern:$0x75316420]
    %v377 = vld.sshfl [vmem:[#allocation1 + $0x10] sm:$0xff pattern:$0x75316420]
    %378 = vst [vmem:[#allocation1] ss:$2 sm:$0xff] %v218
    %s379 = scalar_lea.vmem [#allocation1], 1
    %380 = vst [vmem:[%s379] ss:$2 sm:$0xff] %v194
    %s381 = scalar_lea.vmem [#allocation1], 16
    %382 = vst [vmem:[%s381] ss:$2 sm:$0xff] %v219
    %v383 = vld.sshfl [vmem:[#allocation1] sm:$0xff pattern:$0x75316420]
    %v384 = vld.sshfl [vmem:[#allocation1 + $0x10] sm:$0xff pattern:$0x75316420]
    %385 = vrot.lane.b32.xlu0 %v383, 96
    %v386 = vpop.permute.xlu0 %385
    %387 = vrot.lane.b32.xlu0 %v384, 96
    %v388 = vpop.permute.xlu0 %387
    %v389 = vsel %vm241, %v376, 0
    %v391 = vsel %vm241, %v377, 0
    %v393 = vsel %vm241, %v386, 0
    %v395 = vsel %vm241, %v388, 0
    %397 = vmatpush.xpose.msra.mxu0 0.0
    %398 = vmatpush.xpose.msra.mxu0 0.0
    %399 = vmatpush.xpose.msra.mxu0 0.0
    %400 = vmatpush.xpose.msra.mxu0 0.0
    %401 = vmatpush.xpose.msra.mxu0 0.0
    %402 = vmatpush.xpose.msra.mxu0 0.0
    %403 = vmatpush.xpose.msra.mxu0 0.0
    %404 = vmatpush.xpose.msra.mxu0 0.0
    %405 = vmatpush.xpose.msra.mxu0 0.0
    %406 = vmatpush.xpose.msra.mxu0 0.0
    %407 = vmatpush.xpose.msra.mxu0 0.0
    %408 = vmatpush.xpose.msra.mxu0 0.0
    %409 = vmatpush.xpose.msra.mxu0 0.0
    %410 = vmatpush.xpose.msra.mxu0 0.0
    %411 = vmatpush.xpose.msra.mxu0 %v395
    %412 = vmatpush.xpose.msra.mxu0 %v393
    %413 = vmatmul.f32.gmra.mxu0 %v389
    %v414 = vpop.f32.mrf.mxu0
    %v415 = vadd.f32 0.0, %v414
    %416 = vmatmul.f32.gmra.mxu0 %v391
    %v417 = vpop.f32.mrf.mxu0
    %v418 = vadd.f32 0.0, %v417
    %419 = vdwg.mxu0
    %420 = vst [vmem:[#allocation1] ss:$2 sm:$0xff] %v197
    %s421 = scalar_lea.vmem [#allocation1], 1
    %422 = vst [vmem:[%s421] ss:$2 sm:$0xff] %v220
    %s423 = scalar_lea.vmem [#allocation1], 16
    %424 = vst [vmem:[%s423] ss:$2 sm:$0xff] %v200
    %v425 = vld.sshfl [vmem:[#allocation1] sm:$0xff pattern:$0x75316420]
    %v426 = vld.sshfl [vmem:[#allocation1 + $0x10] sm:$0xff pattern:$0x75316420]
    %427 = vst [vmem:[#allocation1] ss:$2 sm:$0xff] %v197
    %s428 = scalar_lea.vmem [#allocation1], 1
    %429 = vst [vmem:[%s428] ss:$2 sm:$0xff] %v220
    %s430 = scalar_lea.vmem [#allocation1], 16
    %431 = vst [vmem:[%s430] ss:$2 sm:$0xff] %v200
    %v432 = vld.sshfl [vmem:[#allocation1] sm:$0xff pattern:$0x75316420]
    %v433 = vld.sshfl [vmem:[#allocation1 + $0x10] sm:$0xff pattern:$0x75316420]
    %434 = vrot.lane.b32.xlu0 %v432, 96
    %v435 = vpop.permute.xlu0 %434
    %436 = vrot.lane.b32.xlu0 %v433, 96
    %v437 = vpop.permute.xlu0 %436
    %v438 = vsel %vm241, %v425, 0
    %v440 = vsel %vm241, %v426, 0
    %v442 = vsel %vm241, %v435, 0
    %v444 = vsel %vm241, %v437, 0
    %446 = vmatpush.xpose.msra.mxu0 0.0
    %447 = vmatpush.xpose.msra.mxu0 0.0
    %448 = vmatpush.xpose.msra.mxu0 0.0
    %449 = vmatpush.xpose.msra.mxu0 0.0
    %450 = vmatpush.xpose.msra.mxu0 0.0
    %451 = vmatpush.xpose.msra.mxu0 0.0
    %452 = vmatpush.xpose.msra.mxu0 0.0
    %453 = vmatpush.xpose.msra.mxu0 0.0
    %454 = vmatpush.xpose.msra.mxu0 0.0
    %455 = vmatpush.xpose.msra.mxu0 0.0
    %456 = vmatpush.xpose.msra.mxu0 0.0
    %457 = vmatpush.xpose.msra.mxu0 0.0
    %458 = vmatpush.xpose.msra.mxu0 0.0
    %459 = vmatpush.xpose.msra.mxu0 0.0
    %460 = vmatpush.xpose.msra.mxu0 %v444
    %461 = vmatpush.xpose.msra.mxu0 %v442
    %462 = vmatmul.f32.gmra.mxu0 %v438
    %v463 = vpop.f32.mrf.mxu0
    %v464 = vadd.f32 0.0, %v463
    %465 = vmatmul.f32.gmra.mxu0 %v440
    %v466 = vpop.f32.mrf.mxu0
    %v467 = vadd.f32 0.0, %v466
    %468 = vdwg.mxu0
    %469 = vst [vmem:[#allocation1] ss:$2 sm:$0xff] %v221
    %s470 = scalar_lea.vmem [#allocation1], 1
    %471 = vst [vmem:[%s470] ss:$2 sm:$0xff] %v203
    %s472 = scalar_lea.vmem [#allocation1], 16
    %473 = vst [vmem:[%s472] ss:$2 sm:$0xff] %v222
    %v474 = vld.sshfl [vmem:[#allocation1] sm:$0xff pattern:$0x75316420]
    %v475 = vld.sshfl [vmem:[#allocation1 + $0x10] sm:$0xff pattern:$0x75316420]
    %476 = vst [vmem:[#allocation1] ss:$2 sm:$0xff] %v221
    %s477 = scalar_lea.vmem [#allocation1], 1
    %478 = vst [vmem:[%s477] ss:$2 sm:$0xff] %v203
    %s479 = scalar_lea.vmem [#allocation1], 16
    %480 = vst [vmem:[%s479] ss:$2 sm:$0xff] %v222
    %v481 = vld.sshfl [vmem:[#allocation1] sm:$0xff pattern:$0x75316420]
    %v482 = vld.sshfl [vmem:[#allocation1 + $0x10] sm:$0xff pattern:$0x75316420]
    %483 = vrot.lane.b32.xlu0 %v481, 96
    %v484 = vpop.permute.xlu0 %483
    %485 = vrot.lane.b32.xlu0 %v482, 96
    %v486 = vpop.permute.xlu0 %485
    %v487 = vsel %vm241, %v474, 0
    %v489 = vsel %vm241, %v475, 0
    %v491 = vsel %vm241, %v484, 0
    %v493 = vsel %vm241, %v486, 0
    %495 = vmatpush.xpose.msra.mxu0 0.0
    %496 = vmatpush.xpose.msra.mxu0 0.0
    %497 = vmatpush.xpose.msra.mxu0 0.0
    %498 = vmatpush.xpose.msra.mxu0 0.0
    %499 = vmatpush.xpose.msra.mxu0 0.0
    %500 = vmatpush.xpose.msra.mxu0 0.0
    %501 = vmatpush.xpose.msra.mxu0 0.0
    %502 = vmatpush.xpose.msra.mxu0 0.0
    %503 = vmatpush.xpose.msra.mxu0 0.0
    %504 = vmatpush.xpose.msra.mxu0 0.0
    %505 = vmatpush.xpose.msra.mxu0 0.0
    %506 = vmatpush.xpose.msra.mxu0 0.0
    %507 = vmatpush.xpose.msra.mxu0 0.0
    %508 = vmatpush.xpose.msra.mxu0 0.0
    %509 = vmatpush.xpose.msra.mxu0 %v493
    %510 = vmatpush.xpose.msra.mxu0 %v491
    %511 = vmatmul.f32.gmra.mxu0 %v487
    %v512 = vpop.f32.mrf.mxu0
    %v513 = vadd.f32 0.0, %v512
    %514 = vmatmul.f32.gmra.mxu0 %v489
    %v515 = vpop.f32.mrf.mxu0
    %v516 = vadd.f32 0.0, %v515
    %517 = vdwg.mxu0
    %vm518 = vcmask 97280
    %v519 = vsel %vm518, %v268, -inf
    %520 = vmax.xlane.f32.xlu0 %v519
    %v521 = vpop.xlane.xlu0 %520
    %vm522 = vcmask 93184
    %v523 = vsel %vm522, %v271, -inf
    %524 = vmax.xlane.f32.xlu0 %v523
    %v525 = vpop.xlane.xlu0 %524
    %v526 = vsel %vm518, %v317, -inf
    %527 = vmax.xlane.f32.xlu0 %v526
    %v528 = vpop.xlane.xlu0 %527
    %v529 = vsel %vm522, %v320, -inf
    %530 = vmax.xlane.f32.xlu0 %v529
    %v531 = vpop.xlane.xlu0 %530
    %v532 = vsel %vm518, %v366, -inf
    %533 = vmax.xlane.f32.xlu0 %v532
    %v534 = vpop.xlane.xlu0 %533
    %v535 = vsel %vm522, %v369, -inf
    %536 = vmax.xlane.f32.xlu0 %v535
    %v537 = vpop.xlane.xlu0 %536
    %v538 = vsel %vm518, %v415, -inf
    %539 = vmax.xlane.f32.xlu0 %v538
    %v540 = vpop.xlane.xlu0 %539
    %v541 = vsel %vm522, %v418, -inf
    %542 = vmax.xlane.f32.xlu0 %v541
    %v543 = vpop.xlane.xlu0 %542
    %v544 = vsel %vm518, %v464, -inf
    %545 = vmax.xlane.f32.xlu0 %v544
    %v546 = vpop.xlane.xlu0 %545
    %v547 = vsel %vm522, %v467, -inf
    %548 = vmax.xlane.f32.xlu0 %v547
    %v549 = vpop.xlane.xlu0 %548
    %v550 = vsel %vm518, %v513, -inf
    %551 = vmax.xlane.f32.xlu0 %v550
    %v552 = vpop.xlane.xlu0 %551
    %v553 = vsel %vm522, %v516, -inf
    %554 = vmax.xlane.f32.xlu0 %v553
    %v555 = vpop.xlane.xlu0 %554
    %v556 = vsub.f32 %v268, %v521
    %v557 = vsub.f32 %v271, %v525
    %v558 = vsub.f32 %v317, %v528
    %v559 = vsub.f32 %v320, %v531
    %v560 = vsub.f32 %v366, %v534
    %v561 = vsub.f32 %v369, %v537
    %v562 = vsub.f32 %v415, %v540
    %v563 = vsub.f32 %v418, %v543
    %v564 = vsub.f32 %v464, %v546
    %v565 = vsub.f32 %v467, %v549
    %v566 = vsub.f32 %v513, %v552
    %v567 = vsub.f32 %v516, %v555
    %v568 = vmul.f32 %v556, 1.442695
    %v569 = vpow.pop %v568
    %v570 = vmul.f32 %v557, 1.442695
    %v571 = vpow.pop %v570
    %v572 = vmul.f32 %v558, 1.442695
    %v573 = vpow.pop %v572
    %v574 = vmul.f32 %v559, 1.442695
    %v575 = vpow.pop %v574
    %v576 = vmul.f32 %v560, 1.442695
    %v577 = vpow.pop %v576
    %v578 = vmul.f32 %v561, 1.442695
    %v579 = vpow.pop %v578
    %v580 = vmul.f32 %v562, 1.442695
    %v581 = vpow.pop %v580
    %v582 = vmul.f32 %v563, 1.442695
    %v583 = vpow.pop %v582
    %v584 = vmul.f32 %v564, 1.442695
    %v585 = vpow.pop %v584
    %v586 = vmul.f32 %v565, 1.442695
    %v587 = vpow.pop %v586
    %v588 = vmul.f32 %v566, 1.442695
    %v589 = vpow.pop %v588
    %v590 = vmul.f32 %v567, 1.442695
    %v591 = vpow.pop %v590
    %v592 = vsel %vm518, %v569, 0.0
    %593 = vadd.xlane.f32.xlu0 %v592
    %v594 = vpop.xlane.xlu0 %593
    %v595 = vsel %vm522, %v571, 0.0
    %596 = vadd.xlane.f32.xlu0 %v595
    %v597 = vpop.xlane.xlu0 %596
    %v598 = vsel %vm518, %v573, 0.0
    %599 = vadd.xlane.f32.xlu0 %v598
    %v600 = vpop.xlane.xlu0 %599
    %v601 = vsel %vm522, %v575, 0.0
    %602 = vadd.xlane.f32.xlu0 %v601
    %v603 = vpop.xlane.xlu0 %602
    %v604 = vsel %vm518, %v577, 0.0
    %605 = vadd.xlane.f32.xlu0 %v604
    %v606 = vpop.xlane.xlu0 %605
    %v607 = vsel %vm522, %v579, 0.0
    %608 = vadd.xlane.f32.xlu0 %v607
    %v609 = vpop.xlane.xlu0 %608
    %v610 = vsel %vm518, %v581, 0.0
    %611 = vadd.xlane.f32.xlu0 %v610
    %v612 = vpop.xlane.xlu0 %611
    %v613 = vsel %vm522, %v583, 0.0
    %614 = vadd.xlane.f32.xlu0 %v613
    %v615 = vpop.xlane.xlu0 %614
    %v616 = vsel %vm518, %v585, 0.0
    %617 = vadd.xlane.f32.xlu0 %v616
    %v618 = vpop.xlane.xlu0 %617
    %v619 = vsel %vm522, %v587, 0.0
    %620 = vadd.xlane.f32.xlu0 %v619
    %v621 = vpop.xlane.xlu0 %620
    %v622 = vsel %vm518, %v589, 0.0
    %623 = vadd.xlane.f32.xlu0 %v622
    %v624 = vpop.xlane.xlu0 %623
    %v625 = vsel %vm522, %v591, 0.0
    %626 = vadd.xlane.f32.xlu0 %v625
    %v627 = vpop.xlane.xlu0 %626
    %v628 = vrcp.pop %v594
    %v629 = vmul.f32 %v594, %v628
    %v630 = vsub.f32 1.0, %v629
    %v631 = vmul.f32 %v628, %v630
    %v632 = vadd.f32 %v628, %v631
    %vm633 = vweird.f32 %v594
    %vm634 = vweird.f32 %v628
    %vm635 = vmor %vm633, %vm634
    %v636 = vsel %vm635, %v628, %v632
    %v637 = vand.u32 2147483647, %v594
    %vm638 = vcmp.eq.f32.partialorder %v637, 8.507059e+37
    %v639 = vand.u32 %v594, 2147483648
    %v640 = vor.u32 1.1754944e-38, %v639
    %v641 = vsel %vm638, %v640, %v636
    %v642 = vrcp.pop %v597
    %v643 = vmul.f32 %v597, %v642
    %v644 = vsub.f32 1.0, %v643
    %v645 = vmul.f32 %v642, %v644
    %v646 = vadd.f32 %v642, %v645
    %vm647 = vweird.f32 %v597
    %vm648 = vweird.f32 %v642
    %vm649 = vmor %vm647, %vm648
    %v650 = vsel %vm649, %v642, %v646
    %v651 = vand.u32 2147483647, %v597
    %vm652 = vcmp.eq.f32.partialorder %v651, 8.507059e+37
    %v653 = vand.u32 %v597, 2147483648
    %v654 = vor.u32 1.1754944e-38, %v653
    %v655 = vsel %vm652, %v654, %v650
    %v656 = vrcp.pop %v600
    %v657 = vmul.f32 %v600, %v656
    %v658 = vsub.f32 1.0, %v657
    %v659 = vmul.f32 %v656, %v658
    %v660 = vadd.f32 %v656, %v659
    %vm661 = vweird.f32 %v600
    %vm662 = vweird.f32 %v656
    %vm663 = vmor %vm661, %vm662
    %v664 = vsel %vm663, %v656, %v660
    %v665 = vand.u32 2147483647, %v600
    %vm666 = vcmp.eq.f32.partialorder %v665, 8.507059e+37
    %v667 = vand.u32 %v600, 2147483648
    %v668 = vor.u32 1.1754944e-38, %v667
    %v669 = vsel %vm666, %v668, %v664
    %v670 = vrcp.pop %v603
    %v671 = vmul.f32 %v603, %v670
    %v672 = vsub.f32 1.0, %v671
    %v673 = vmul.f32 %v670, %v672
    %v674 = vadd.f32 %v670, %v673
    %vm675 = vweird.f32 %v603
    %vm676 = vweird.f32 %v670
    %vm677 = vmor %vm675, %vm676
    %v678 = vsel %vm677, %v670, %v674
    %v679 = vand.u32 2147483647, %v603
    %vm680 = vcmp.eq.f32.partialorder %v679, 8.507059e+37
    %v681 = vand.u32 %v603, 2147483648
    %v682 = vor.u32 1.1754944e-38, %v681
    %v683 = vsel %vm680, %v682, %v678
    %v684 = vrcp.pop %v606
    %v685 = vmul.f32 %v606, %v684
    %v686 = vsub.f32 1.0, %v685
    %v687 = vmul.f32 %v684, %v686
    %v688 = vadd.f32 %v684, %v687
    %vm689 = vweird.f32 %v606
    %vm690 = vweird.f32 %v684
    %vm691 = vmor %vm689, %vm690
    %v692 = vsel %vm691, %v684, %v688
    %v693 = vand.u32 2147483647, %v606
    %vm694 = vcmp.eq.f32.partialorder %v693, 8.507059e+37
    %v695 = vand.u32 %v606, 2147483648
    %v696 = vor.u32 1.1754944e-38, %v695
    %v697 = vsel %vm694, %v696, %v692
    %v698 = vrcp.pop %v609
    %v699 = vmul.f32 %v609, %v698
    %v700 = vsub.f32 1.0, %v699
    %v701 = vmul.f32 %v698, %v700
    %v702 = vadd.f32 %v698, %v701
    %vm703 = vweird.f32 %v609
    %vm704 = vweird.f32 %v698
    %vm705 = vmor %vm703, %vm704
    %v706 = vsel %vm705, %v698, %v702
    %v707 = vand.u32 2147483647, %v609
    %vm708 = vcmp.eq.f32.partialorder %v707, 8.507059e+37
    %v709 = vand.u32 %v609, 2147483648
    %v710 = vor.u32 1.1754944e-38, %v709
    %v711 = vsel %vm708, %v710, %v706
    %v712 = vrcp.pop %v612
    %v713 = vmul.f32 %v612, %v712
    %v714 = vsub.f32 1.0, %v713
    %v715 = vmul.f32 %v712, %v714
    %v716 = vadd.f32 %v712, %v715
    %vm717 = vweird.f32 %v612
    %vm718 = vweird.f32 %v712
    %vm719 = vmor %vm717, %vm718
    %v720 = vsel %vm719, %v712, %v716
    %v721 = vand.u32 2147483647, %v612
    %vm722 = vcmp.eq.f32.partialorder %v721, 8.507059e+37
    %v723 = vand.u32 %v612, 2147483648
    %v724 = vor.u32 1.1754944e-38, %v723
    %v725 = vsel %vm722, %v724, %v720
    %v726 = vrcp.pop %v615
    %v727 = vmul.f32 %v615, %v726
    %v728 = vsub.f32 1.0, %v727
    %v729 = vmul.f32 %v726, %v728
    %v730 = vadd.f32 %v726, %v729
    %vm731 = vweird.f32 %v615
    %vm732 = vweird.f32 %v726
    %vm733 = vmor %vm731, %vm732
    %v734 = vsel %vm733, %v726, %v730
    %v735 = vand.u32 2147483647, %v615
    %vm736 = vcmp.eq.f32.partialorder %v735, 8.507059e+37
    %v737 = vand.u32 %v615, 2147483648
    %v738 = vor.u32 1.1754944e-38, %v737
    %v739 = vsel %vm736, %v738, %v734
    %v740 = vrcp.pop %v618
    %v741 = vmul.f32 %v618, %v740
    %v742 = vsub.f32 1.0, %v741
    %v743 = vmul.f32 %v740, %v742
    %v744 = vadd.f32 %v740, %v743
    %vm745 = vweird.f32 %v618
    %vm746 = vweird.f32 %v740
    %vm747 = vmor %vm745, %vm746
    %v748 = vsel %vm747, %v740, %v744
    %v749 = vand.u32 2147483647, %v618
    %vm750 = vcmp.eq.f32.partialorder %v749, 8.507059e+37
    %v751 = vand.u32 %v618, 2147483648
    %v752 = vor.u32 1.1754944e-38, %v751
    %v753 = vsel %vm750, %v752, %v748
    %v754 = vrcp.pop %v621
    %v755 = vmul.f32 %v621, %v754
    %v756 = vsub.f32 1.0, %v755
    %v757 = vmul.f32 %v754, %v756
    %v758 = vadd.f32 %v754, %v757
    %vm759 = vweird.f32 %v621
    %vm760 = vweird.f32 %v754
    %vm761 = vmor %vm759, %vm760
    %v762 = vsel %vm761, %v754, %v758
    %v763 = vand.u32 2147483647, %v621
    %vm764 = vcmp.eq.f32.partialorder %v763, 8.507059e+37
    %v765 = vand.u32 %v621, 2147483648
    %v766 = vor.u32 1.1754944e-38, %v765
    %v767 = vsel %vm764, %v766, %v762
    %v768 = vrcp.pop %v624
    %v769 = vmul.f32 %v624, %v768
    %v770 = vsub.f32 1.0, %v769
    %v771 = vmul.f32 %v768, %v770
    %v772 = vadd.f32 %v768, %v771
    %vm773 = vweird.f32 %v624
    %vm774 = vweird.f32 %v768
    %vm775 = vmor %vm773, %vm774
    %v776 = vsel %vm775, %v768, %v772
    %v777 = vand.u32 2147483647, %v624
    %vm778 = vcmp.eq.f32.partialorder %v777, 8.507059e+37
    %v779 = vand.u32 %v624, 2147483648
    %v780 = vor.u32 1.1754944e-38, %v779
    %v781 = vsel %vm778, %v780, %v776
    %v782 = vrcp.pop %v627
    %v783 = vmul.f32 %v627, %v782
    %v784 = vsub.f32 1.0, %v783
    %v785 = vmul.f32 %v782, %v784
    %v786 = vadd.f32 %v782, %v785
    %vm787 = vweird.f32 %v627
    %vm788 = vweird.f32 %v782
    %vm789 = vmor %vm787, %vm788
    %v790 = vsel %vm789, %v782, %v786
    %v791 = vand.u32 2147483647, %v627
    %vm792 = vcmp.eq.f32.partialorder %v791, 8.507059e+37
    %v793 = vand.u32 %v627, 2147483648
    %v794 = vor.u32 1.1754944e-38, %v793
    %v795 = vsel %vm792, %v794, %v790
    %v796 = vmul.f32 %v569, %v641
    %v797 = vmul.f32 %v571, %v655
    %v798 = vmul.f32 %v573, %v669
    %v799 = vmul.f32 %v575, %v683
    %v800 = vmul.f32 %v577, %v697
    %v801 = vmul.f32 %v579, %v711
    %v802 = vmul.f32 %v581, %v725
    %v803 = vmul.f32 %v583, %v739
    %v804 = vmul.f32 %v585, %v753
    %v805 = vmul.f32 %v587, %v767
    %v806 = vmul.f32 %v589, %v781
    %v807 = vmul.f32 %v591, %v795
    %808 = vst.msk [vmem:[%s6] sm:$0xff] %vm518, %v796
    %809 = vst.msk [vmem:[%s6 + $0x8] sm:$0xf] %vm522, %v797
    %810 = vst.msk [vmem:[%s6 + $0x10] sm:$0xff] %vm518, %v798
    %811 = vst.msk [vmem:[%s6 + $0x18] sm:$0xf] %vm522, %v799
    %812 = vst.msk [vmem:[%s6 + $0x20] sm:$0xff] %vm518, %v800
    %813 = vst.msk [vmem:[%s6 + $0x28] sm:$0xf] %vm522, %v801
    %814 = vst.msk [vmem:[%s6 + $0x30] sm:$0xff] %vm518, %v802
    %815 = vst.msk [vmem:[%s6 + $0x38] sm:$0xf] %vm522, %v803
    %816 = vst.msk [vmem:[%s6 + $0x40] sm:$0xff] %vm518, %v804
    %817 = vst.msk [vmem:[%s6 + $0x48] sm:$0xf] %vm522, %v805
    %818 = vst.msk [vmem:[%s6 + $0x50] sm:$0xff] %vm518, %v806
    %819 = vst.msk [vmem:[%s6 + $0x58] sm:$0xf] %vm522, %v807
    %820 = vst [vmem:[#allocation1] ss:$2 sm:$0xff] %v179
    %s821 = scalar_lea.vmem [#allocation1], 1
    %822 = vst [vmem:[%s821] ss:$2 sm:$0xff] %v214
    %s823 = scalar_lea.vmem [#allocation1], 16
    %824 = vst [vmem:[%s823] ss:$2 sm:$0xff] %v182
    %v825 = vld.sshfl [vmem:[#allocation1] sm:$0xff pattern:$0x75316420]
    %v826 = vld.sshfl [vmem:[#allocation1 + $0x10] sm:$0xff pattern:$0x75316420]
    %827 = vrot.lane.b32.xlu0 %v825, 64
    %v828 = vpop.permute.xlu0 %827
    %829 = vrot.lane.b32.xlu0 %v826, 64
    %v830 = vpop.permute.xlu0 %829
    %v833 = vsel %vm518, %v796, 0
    %v836 = vsel %vm518, %v797, 0
    %vm838 = vcmask 1043456
    %v839 = vsel %vm838, %v830, 0
    %841 = vmatpush.msra.mxu0 0.0
    %842 = vmatpush.msra.mxu0 0.0
    %843 = vmatpush.msra.mxu0 0.0
    %844 = vmatpush.msra.mxu0 0.0
    %845 = vmatpush.msra.mxu0 0.0
    %846 = vmatpush.msra.mxu0 0.0
    %847 = vmatpush.msra.mxu0 0.0
    %848 = vmatpush.msra.mxu0 0.0
    %849 = vmatpush.msra.mxu0 0.0
    %850 = vmatpush.msra.mxu0 0.0
    %851 = vmatpush.msra.mxu0 0.0
    %852 = vmatpush.msra.mxu0 0.0
    %853 = vmatpush.msra.mxu0 0.0
    %854 = vmatpush.msra.mxu0 0.0
    %855 = vmatpush.msra.mxu0 %v839
    %856 = vmatpush.msra.mxu0 %v828
    %857 = vmatmul.f32.gmra.mxu0 %v833
    %v858 = vpop.f32.mrf.mxu0
    %v859 = vadd.f32 0.0, %v858
    %860 = vmatmul.f32.gmra.mxu0 %v836
    %v861 = vpop.f32.mrf.mxu0
    %v862 = vadd.f32 0.0, %v861
    %863 = vdwg.mxu0
    %864 = vst [vmem:[#allocation1] ss:$2 sm:$0xff] %v215
    %s865 = scalar_lea.vmem [#allocation1], 1
    %866 = vst [vmem:[%s865] ss:$2 sm:$0xff] %v185
    %s867 = scalar_lea.vmem [#allocation1], 16
    %868 = vst [vmem:[%s867] ss:$2 sm:$0xff] %v216
    %v869 = vld.sshfl [vmem:[#allocation1] sm:$0xff pattern:$0x75316420]
    %v870 = vld.sshfl [vmem:[#allocation1 + $0x10] sm:$0xff pattern:$0x75316420]
    %871 = vrot.lane.b32.xlu0 %v869, 64
    %v872 = vpop.permute.xlu0 %871
    %873 = vrot.lane.b32.xlu0 %v870, 64
    %v874 = vpop.permute.xlu0 %873
    %v877 = vsel %vm518, %v798, 0
    %v880 = vsel %vm518, %v799, 0
    %v882 = vsel %vm838, %v874, 0
    %884 = vmatpush.msra.mxu0 0.0
    %885 = vmatpush.msra.mxu0 0.0
    %886 = vmatpush.msra.mxu0 0.0
    %887 = vmatpush.msra.mxu0 0.0
    %888 = vmatpush.msra.mxu0 0.0
    %889 = vmatpush.msra.mxu0 0.0
    %890 = vmatpush.msra.mxu0 0.0
    %891 = vmatpush.msra.mxu0 0.0
    %892 = vmatpush.msra.mxu0 0.0
    %893 = vmatpush.msra.mxu0 0.0
    %894 = vmatpush.msra.mxu0 0.0
    %895 = vmatpush.msra.mxu0 0.0
    %896 = vmatpush.msra.mxu0 0.0
    %897 = vmatpush.msra.mxu0 0.0
    %898 = vmatpush.msra.mxu0 %v882
    %899 = vmatpush.msra.mxu0 %v872
    %900 = vmatmul.f32.gmra.mxu0 %v877
    %v901 = vpop.f32.mrf.mxu0
    %v902 = vadd.f32 0.0, %v901
    %903 = vmatmul.f32.gmra.mxu0 %v880
    %v904 = vpop.f32.mrf.mxu0
    %v905 = vadd.f32 0.0, %v904
    %906 = vdwg.mxu0
    %907 = vst [vmem:[#allocation1] ss:$2 sm:$0xff] %v188
    %s908 = scalar_lea.vmem [#allocation1], 1
    %909 = vst [vmem:[%s908] ss:$2 sm:$0xff] %v217
    %s910 = scalar_lea.vmem [#allocation1], 16
    %911 = vst [vmem:[%s910] ss:$2 sm:$0xff] %v191
    %v912 = vld.sshfl [vmem:[#allocation1] sm:$0xff pattern:$0x75316420]
    %v913 = vld.sshfl [vmem:[#allocation1 + $0x10] sm:$0xff pattern:$0x75316420]
    %914 = vrot.lane.b32.xlu0 %v912, 64
    %v915 = vpop.permute.xlu0 %914
    %916 = vrot.lane.b32.xlu0 %v913, 64
    %v917 = vpop.permute.xlu0 %916
    %v920 = vsel %vm518, %v800, 0
    %v923 = vsel %vm518, %v801, 0
    %v925 = vsel %vm838, %v917, 0
    %927 = vmatpush.msra.mxu0 0.0
    %928 = vmatpush.msra.mxu0 0.0
    %929 = vmatpush.msra.mxu0 0.0
    %930 = vmatpush.msra.mxu0 0.0
    %931 = vmatpush.msra.mxu0 0.0
    %932 = vmatpush.msra.mxu0 0.0
    %933 = vmatpush.msra.mxu0 0.0
    %934 = vmatpush.msra.mxu0 0.0
    %935 = vmatpush.msra.mxu0 0.0
    %936 = vmatpush.msra.mxu0 0.0
    %937 = vmatpush.msra.mxu0 0.0
    %938 = vmatpush.msra.mxu0 0.0
    %939 = vmatpush.msra.mxu0 0.0
    %940 = vmatpush.msra.mxu0 0.0
    %941 = vmatpush.msra.mxu0 %v925
    %942 = vmatpush.msra.mxu0 %v915
    %943 = vmatmul.f32.gmra.mxu0 %v920
    %v944 = vpop.f32.mrf.mxu0
    %v945 = vadd.f32 0.0, %v944
    %946 = vmatmul.f32.gmra.mxu0 %v923
    %v947 = vpop.f32.mrf.mxu0
    %v948 = vadd.f32 0.0, %v947
    %949 = vdwg.mxu0
    %950 = vst [vmem:[#allocation1] ss:$2 sm:$0xff] %v218
    %s951 = scalar_lea.vmem [#allocation1], 1
    %952 = vst [vmem:[%s951] ss:$2 sm:$0xff] %v194
    %s953 = scalar_lea.vmem [#allocation1], 16
    %954 = vst [vmem:[%s953] ss:$2 sm:$0xff] %v219
    %v955 = vld.sshfl [vmem:[#allocation1] sm:$0xff pattern:$0x75316420]
    %v956 = vld.sshfl [vmem:[#allocation1 + $0x10] sm:$0xff pattern:$0x75316420]
    %957 = vrot.lane.b32.xlu0 %v955, 64
    %v958 = vpop.permute.xlu0 %957
    %959 = vrot.lane.b32.xlu0 %v956, 64
    %v960 = vpop.permute.xlu0 %959
    %v963 = vsel %vm518, %v802, 0
    %v966 = vsel %vm518, %v803, 0
    %v968 = vsel %vm838, %v960, 0
    %970 = vmatpush.msra.mxu0 0.0
    %971 = vmatpush.msra.mxu0 0.0
    %972 = vmatpush.msra.mxu0 0.0
    %973 = vmatpush.msra.mxu0 0.0
    %974 = vmatpush.msra.mxu0 0.0
    %975 = vmatpush.msra.mxu0 0.0
    %976 = vmatpush.msra.mxu0 0.0
    %977 = vmatpush.msra.mxu0 0.0
    %978 = vmatpush.msra.mxu0 0.0
    %979 = vmatpush.msra.mxu0 0.0
    %980 = vmatpush.msra.mxu0 0.0
    %981 = vmatpush.msra.mxu0 0.0
    %982 = vmatpush.msra.mxu0 0.0
    %983 = vmatpush.msra.mxu0 0.0
    %984 = vmatpush.msra.mxu0 %v968
    %985 = vmatpush.msra.mxu0 %v958
    %986 = vmatmul.f32.gmra.mxu0 %v963
    %v987 = vpop.f32.mrf.mxu0
    %v988 = vadd.f32 0.0, %v987
    %989 = vmatmul.f32.gmra.mxu0 %v966
    %v990 = vpop.f32.mrf.mxu0
    %v991 = vadd.f32 0.0, %v990
    %992 = vdwg.mxu0
    %993 = vst [vmem:[#allocation1] ss:$2 sm:$0xff] %v197
    %s994 = scalar_lea.vmem [#allocation1], 1
    %995 = vst [vmem:[%s994] ss:$2 sm:$0xff] %v220
    %s996 = scalar_lea.vmem [#allocation1], 16
    %997 = vst [vmem:[%s996] ss:$2 sm:$0xff] %v200
    %v998 = vld.sshfl [vmem:[#allocation1] sm:$0xff pattern:$0x75316420]
    %v999 = vld.sshfl [vmem:[#allocation1 + $0x10] sm:$0xff pattern:$0x75316420]
    %1000 = vrot.lane.b32.xlu0 %v998, 64
    %v1001 = vpop.permute.xlu0 %1000
    %1002 = vrot.lane.b32.xlu0 %v999, 64
    %v1003 = vpop.permute.xlu0 %1002
    %v1006 = vsel %vm518, %v804, 0
    %v1009 = vsel %vm518, %v805, 0
    %v1011 = vsel %vm838, %v1003, 0
    %1013 = vmatpush.msra.mxu0 0.0
    %1014 = vmatpush.msra.mxu0 0.0
    %1015 = vmatpush.msra.mxu0 0.0
    %1016 = vmatpush.msra.mxu0 0.0
    %1017 = vmatpush.msra.mxu0 0.0
    %1018 = vmatpush.msra.mxu0 0.0
    %1019 = vmatpush.msra.mxu0 0.0
    %1020 = vmatpush.msra.mxu0 0.0
    %1021 = vmatpush.msra.mxu0 0.0
    %1022 = vmatpush.msra.mxu0 0.0
    %1023 = vmatpush.msra.mxu0 0.0
    %1024 = vmatpush.msra.mxu0 0.0
    %1025 = vmatpush.msra.mxu0 0.0
    %1026 = vmatpush.msra.mxu0 0.0
    %1027 = vmatpush.msra.mxu0 %v1011
    %1028 = vmatpush.msra.mxu0 %v1001
    %1029 = vmatmul.f32.gmra.mxu0 %v1006
    %v1030 = vpop.f32.mrf.mxu0
    %v1031 = vadd.f32 0.0, %v1030
    %1032 = vmatmul.f32.gmra.mxu0 %v1009
    %v1033 = vpop.f32.mrf.mxu0
    %v1034 = vadd.f32 0.0, %v1033
    %1035 = vdwg.mxu0
    %1036 = vst [vmem:[#allocation1] ss:$2 sm:$0xff] %v221
    %s1037 = scalar_lea.vmem [#allocation1], 1
    %1038 = vst [vmem:[%s1037] ss:$2 sm:$0xff] %v203
    %s1039 = scalar_lea.vmem [#allocation1], 16
    %1040 = vst [vmem:[%s1039] ss:$2 sm:$0xff] %v222
    %v1041 = vld.sshfl [vmem:[#allocation1] sm:$0xff pattern:$0x75316420]
    %v1042 = vld.sshfl [vmem:[#allocation1 + $0x10] sm:$0xff pattern:$0x75316420]
    %1043 = vrot.lane.b32.xlu0 %v1041, 64
    %v1044 = vpop.permute.xlu0 %1043
    %1045 = vrot.lane.b32.xlu0 %v1042, 64
    %v1046 = vpop.permute.xlu0 %1045
    %v1049 = vsel %vm518, %v806, 0
    %v1052 = vsel %vm518, %v807, 0
    %v1054 = vsel %vm838, %v1046, 0
    %1056 = vmatpush.msra.mxu0 0.0
    %1057 = vmatpush.msra.mxu0 0.0
    %1058 = vmatpush.msra.mxu0 0.0
    %1059 = vmatpush.msra.mxu0 0.0
    %1060 = vmatpush.msra.mxu0 0.0
    %1061 = vmatpush.msra.mxu0 0.0
    %1062 = vmatpush.msra.mxu0 0.0
    %1063 = vmatpush.msra.mxu0 0.0
    %1064 = vmatpush.msra.mxu0 0.0
    %1065 = vmatpush.msra.mxu0 0.0
    %1066 = vmatpush.msra.mxu0 0.0
    %1067 = vmatpush.msra.mxu0 0.0
    %1068 = vmatpush.msra.mxu0 0.0
    %1069 = vmatpush.msra.mxu0 0.0
    %1070 = vmatpush.msra.mxu0 %v1054
    %1071 = vmatpush.msra.mxu0 %v1044
    %1072 = vmatmul.f32.gmra.mxu0 %v1049
    %v1073 = vpop.f32.mrf.mxu0
    %v1074 = vadd.f32 0.0, %v1073
    %1075 = vmatmul.f32.gmra.mxu0 %v1052
    %v1076 = vpop.f32.mrf.mxu0
    %v1077 = vadd.f32 0.0, %v1076
    %1078 = vdwg.mxu0
    %1079 = vst [vmem:[#allocation1] ss:$2 sm:$0xff] %v179
    %s1080 = scalar_lea.vmem [#allocation1], 1
    %1081 = vst [vmem:[%s1080] ss:$2 sm:$0xff] %v214
    %s1082 = scalar_lea.vmem [#allocation1], 16
    %1083 = vst [vmem:[%s1082] ss:$2 sm:$0xff] %v182
    %v1084 = vld.sshfl [vmem:[#allocation1] sm:$0xff pattern:$0x75316420]
    %v1085 = vld.sshfl [vmem:[#allocation1 + $0x10] sm:$0xff pattern:$0x75316420]
    %1086 = vrot.lane.b32.xlu0 %v1084, 120
    %v1087 = vpop.permute.xlu0 %1086
    %1088 = vrot.lane.b32.xlu0 %v1085, 120
    %v1089 = vpop.permute.xlu0 %1088
    %1090 = vst [vmem:[#allocation1] ss:$2 sm:$0xff] %v179
    %s1091 = scalar_lea.vmem [#allocation1], 1
    %1092 = vst [vmem:[%s1091] ss:$2 sm:$0xff] %v214
    %s1093 = scalar_lea.vmem [#allocation1], 16
    %1094 = vst [vmem:[%s1093] ss:$2 sm:$0xff] %v182
    %v1095 = vld.sshfl [vmem:[#allocation1] sm:$0xff pattern:$0x75316420]
    %v1096 = vld.sshfl [vmem:[#allocation1 + $0x10] sm:$0xff pattern:$0x75316420]
    %1097 = vrot.lane.b32.xlu0 %v1095, 88
    %v1098 = vpop.permute.xlu0 %1097
    %1099 = vrot.lane.b32.xlu0 %v1096, 88
    %v1100 = vpop.permute.xlu0 %1099
    %v1101 = vsel %vm241, %v1087, 0
    %v1103 = vsel %vm241, %v1089, 0
    %v1105 = vsel %vm241, %v1098, 0
    %v1107 = vsel %vm241, %v1100, 0
    %1109 = vmatpush.xpose.msra.mxu0 0.0
    %1110 = vmatpush.xpose.msra.mxu0 0.0
    %1111 = vmatpush.xpose.msra.mxu0 0.0
    %1112 = vmatpush.xpose.msra.mxu0 0.0
    %1113 = vmatpush.xpose.msra.mxu0 0.0
    %1114 = vmatpush.xpose.msra.mxu0 0.0
    %1115 = vmatpush.xpose.msra.mxu0 0.0
    %1116 = vmatpush.xpose.msra.mxu0 0.0
    %1117 = vmatpush.xpose.msra.mxu0 0.0
    %1118 = vmatpush.xpose.msra.mxu0 0.0
    %1119 = vmatpush.xpose.msra.mxu0 0.0
    %1120 = vmatpush.xpose.msra.mxu0 0.0
    %1121 = vmatpush.xpose.msra.mxu0 0.0
    %1122 = vmatpush.xpose.msra.mxu0 0.0
    %1123 = vmatpush.xpose.msra.mxu0 %v1107
    %1124 = vmatpush.xpose.msra.mxu0 %v1105
    %1125 = vmatmul.f32.gmra.mxu0 %v1101
    %v1126 = vpop.f32.mrf.mxu0
    %v1127 = vadd.f32 0.0, %v1126
    %1128 = vmatmul.f32.gmra.mxu0 %v1103
    %v1129 = vpop.f32.mrf.mxu0
    %v1130 = vadd.f32 0.0, %v1129
    %1131 = vdwg.mxu0
    %1132 = vst [vmem:[#allocation1] ss:$2 sm:$0xff] %v215
    %s1133 = scalar_lea.vmem [#allocation1], 1
    %1134 = vst [vmem:[%s1133] ss:$2 sm:$0xff] %v185
    %s1135 = scalar_lea.vmem [#allocation1], 16
    %1136 = vst [vmem:[%s1135] ss:$2 sm:$0xff] %v216
    %v1137 = vld.sshfl [vmem:[#allocation1] sm:$0xff pattern:$0x75316420]
    %v1138 = vld.sshfl [vmem:[#allocation1 + $0x10] sm:$0xff pattern:$0x75316420]
    %1139 = vrot.lane.b32.xlu0 %v1137, 120
    %v1140 = vpop.permute.xlu0 %1139
    %1141 = vrot.lane.b32.xlu0 %v1138, 120
    %v1142 = vpop.permute.xlu0 %1141
    %1143 = vst [vmem:[#allocation1] ss:$2 sm:$0xff] %v215
    %s1144 = scalar_lea.vmem [#allocation1], 1
    %1145 = vst [vmem:[%s1144] ss:$2 sm:$0xff] %v185
    %s1146 = scalar_lea.vmem [#allocation1], 16
    %1147 = vst [vmem:[%s1146] ss:$2 sm:$0xff] %v216
    %v1148 = vld.sshfl [vmem:[#allocation1] sm:$0xff pattern:$0x75316420]
    %v1149 = vld.sshfl [vmem:[#allocation1 + $0x10] sm:$0xff pattern:$0x75316420]
    %1150 = vrot.lane.b32.xlu0 %v1148, 88
    %v1151 = vpop.permute.xlu0 %1150
    %1152 = vrot.lane.b32.xlu0 %v1149, 88
    %v1153 = vpop.permute.xlu0 %1152
    %v1154 = vsel %vm241, %v1140, 0
    %v1156 = vsel %vm241, %v1142, 0
    %v1158 = vsel %vm241, %v1151, 0
    %v1160 = vsel %vm241, %v1153, 0
    %1162 = vmatpush.xpose.msra.mxu0 0.0
    %1163 = vmatpush.xpose.msra.mxu0 0.0
    %1164 = vmatpush.xpose.msra.mxu0 0.0
    %1165 = vmatpush.xpose.msra.mxu0 0.0
    %1166 = vmatpush.xpose.msra.mxu0 0.0
    %1167 = vmatpush.xpose.msra.mxu0 0.0
    %1168 = vmatpush.xpose.msra.mxu0 0.0
    %1169 = vmatpush.xpose.msra.mxu0 0.0
    %1170 = vmatpush.xpose.msra.mxu0 0.0
    %1171 = vmatpush.xpose.msra.mxu0 0.0
    %1172 = vmatpush.xpose.msra.mxu0 0.0
    %1173 = vmatpush.xpose.msra.mxu0 0.0
    %1174 = vmatpush.xpose.msra.mxu0 0.0
    %1175 = vmatpush.xpose.msra.mxu0 0.0
    %1176 = vmatpush.xpose.msra.mxu0 %v1160
    %1177 = vmatpush.xpose.msra.mxu0 %v1158
    %1178 = vmatmul.f32.gmra.mxu0 %v1154
    %v1179 = vpop.f32.mrf.mxu0
    %v1180 = vadd.f32 0.0, %v1179
    %1181 = vmatmul.f32.gmra.mxu0 %v1156
    %v1182 = vpop.f32.mrf.mxu0
    %v1183 = vadd.f32 0.0, %v1182
    %1184 = vdwg.mxu0
    %1185 = vst [vmem:[#allocation1] ss:$2 sm:$0xff] %v188
    %s1186 = scalar_lea.vmem [#allocation1], 1
    %1187 = vst [vmem:[%s1186] ss:$2 sm:$0xff] %v217
    %s1188 = scalar_lea.vmem [#allocation1], 16
    %1189 = vst [vmem:[%s1188] ss:$2 sm:$0xff] %v191
    %v1190 = vld.sshfl [vmem:[#allocation1] sm:$0xff pattern:$0x75316420]
    %v1191 = vld.sshfl [vmem:[#allocation1 + $0x10] sm:$0xff pattern:$0x75316420]
    %1192 = vrot.lane.b32.xlu0 %v1190, 120
    %v1193 = vpop.permute.xlu0 %1192
    %1194 = vrot.lane.b32.xlu0 %v1191, 120
    %v1195 = vpop.permute.xlu0 %1194
    %1196 = vst [vmem:[#allocation1] ss:$2 sm:$0xff] %v188
    %s1197 = scalar_lea.vmem [#allocation1], 1
    %1198 = vst [vmem:[%s1197] ss:$2 sm:$0xff] %v217
    %s1199 = scalar_lea.vmem [#allocation1], 16
    %1200 = vst [vmem:[%s1199] ss:$2 sm:$0xff] %v191
    %v1201 = vld.sshfl [vmem:[#allocation1] sm:$0xff pattern:$0x75316420]
    %v1202 = vld.sshfl [vmem:[#allocation1 + $0x10] sm:$0xff pattern:$0x75316420]
    %1203 = vrot.lane.b32.xlu0 %v1201, 88
    %v1204 = vpop.permute.xlu0 %1203
    %1205 = vrot.lane.b32.xlu0 %v1202, 88
    %v1206 = vpop.permute.xlu0 %1205
    %v1207 = vsel %vm241, %v1193, 0
    %v1209 = vsel %vm241, %v1195, 0
    %v1211 = vsel %vm241, %v1204, 0
    %v1213 = vsel %vm241, %v1206, 0
    %1215 = vmatpush.xpose.msra.mxu0 0.0
    %1216 = vmatpush.xpose.msra.mxu0 0.0
    %1217 = vmatpush.xpose.msra.mxu0 0.0
    %1218 = vmatpush.xpose.msra.mxu0 0.0
    %1219 = vmatpush.xpose.msra.mxu0 0.0
    %1220 = vmatpush.xpose.msra.mxu0 0.0
    %1221 = vmatpush.xpose.msra.mxu0 0.0
    %1222 = vmatpush.xpose.msra.mxu0 0.0
    %1223 = vmatpush.xpose.msra.mxu0 0.0
    %1224 = vmatpush.xpose.msra.mxu0 0.0
    %1225 = vmatpush.xpose.msra.mxu0 0.0
    %1226 = vmatpush.xpose.msra.mxu0 0.0
    %1227 = vmatpush.xpose.msra.mxu0 0.0
    %1228 = vmatpush.xpose.msra.mxu0 0.0
    %1229 = vmatpush.xpose.msra.mxu0 %v1213
    %1230 = vmatpush.xpose.msra.mxu0 %v1211
    %1231 = vmatmul.f32.gmra.mxu0 %v1207
    %v1232 = vpop.f32.mrf.mxu0
    %v1233 = vadd.f32 0.0, %v1232
    %1234 = vmatmul.f32.gmra.mxu0 %v1209
    %v1235 = vpop.f32.mrf.mxu0
    %v1236 = vadd.f32 0.0, %v1235
    %1237 = vdwg.mxu0
    %1238 = vst [vmem:[#allocation1] ss:$2 sm:$0xff] %v218
    %s1239 = scalar_lea.vmem [#allocation1], 1
    %1240 = vst [vmem:[%s1239] ss:$2 sm:$0xff] %v194
    %s1241 = scalar_lea.vmem [#allocation1], 16
    %1242 = vst [vmem:[%s1241] ss:$2 sm:$0xff] %v219
    %v1243 = vld.sshfl [vmem:[#allocation1] sm:$0xff pattern:$0x75316420]
    %v1244 = vld.sshfl [vmem:[#allocation1 + $0x10] sm:$0xff pattern:$0x75316420]
    %1245 = vrot.lane.b32.xlu0 %v1243, 120
    %v1246 = vpop.permute.xlu0 %1245
    %1247 = vrot.lane.b32.xlu0 %v1244, 120
    %v1248 = vpop.permute.xlu0 %1247
    %1249 = vst [vmem:[#allocation1] ss:$2 sm:$0xff] %v218
    %s1250 = scalar_lea.vmem [#allocation1], 1
    %1251 = vst [vmem:[%s1250] ss:$2 sm:$0xff] %v194
    %s1252 = scalar_lea.vmem [#allocation1], 16
    %1253 = vst [vmem:[%s1252] ss:$2 sm:$0xff] %v219
    %v1254 = vld.sshfl [vmem:[#allocation1] sm:$0xff pattern:$0x75316420]
    %v1255 = vld.sshfl [vmem:[#allocation1 + $0x10] sm:$0xff pattern:$0x75316420]
    %1256 = vrot.lane.b32.xlu0 %v1254, 88
    %v1257 = vpop.permute.xlu0 %1256
    %1258 = vrot.lane.b32.xlu0 %v1255, 88
    %v1259 = vpop.permute.xlu0 %1258
    %v1260 = vsel %vm241, %v1246, 0
    %v1262 = vsel %vm241, %v1248, 0
    %v1264 = vsel %vm241, %v1257, 0
    %v1266 = vsel %vm241, %v1259, 0
    %1268 = vmatpush.xpose.msra.mxu0 0.0
    %1269 = vmatpush.xpose.msra.mxu0 0.0
    %1270 = vmatpush.xpose.msra.mxu0 0.0
    %1271 = vmatpush.xpose.msra.mxu0 0.0
    %1272 = vmatpush.xpose.msra.mxu0 0.0
    %1273 = vmatpush.xpose.msra.mxu0 0.0
    %1274 = vmatpush.xpose.msra.mxu0 0.0
    %1275 = vmatpush.xpose.msra.mxu0 0.0
    %1276 = vmatpush.xpose.msra.mxu0 0.0
    %1277 = vmatpush.xpose.msra.mxu0 0.0
    %1278 = vmatpush.xpose.msra.mxu0 0.0
    %1279 = vmatpush.xpose.msra.mxu0 0.0
    %1280 = vmatpush.xpose.msra.mxu0 0.0
    %1281 = vmatpush.xpose.msra.mxu0 0.0
    %1282 = vmatpush.xpose.msra.mxu0 %v1266
    %1283 = vmatpush.xpose.msra.mxu0 %v1264
    %1284 = vmatmul.f32.gmra.mxu0 %v1260
    %v1285 = vpop.f32.mrf.mxu0
    %v1286 = vadd.f32 0.0, %v1285
    %1287 = vmatmul.f32.gmra.mxu0 %v1262
    %v1288 = vpop.f32.mrf.mxu0
    %v1289 = vadd.f32 0.0, %v1288
    %1290 = vdwg.mxu0
    %1291 = vst [vmem:[#allocation1] ss:$2 sm:$0xff] %v197
    %s1292 = scalar_lea.vmem [#allocation1], 1
    %1293 = vst [vmem:[%s1292] ss:$2 sm:$0xff] %v220
    %s1294 = scalar_lea.vmem [#allocation1], 16
    %1295 = vst [vmem:[%s1294] ss:$2 sm:$0xff] %v200
    %v1296 = vld.sshfl [vmem:[#allocation1] sm:$0xff pattern:$0x75316420]
    %v1297 = vld.sshfl [vmem:[#allocation1 + $0x10] sm:$0xff pattern:$0x75316420]
    %1298 = vrot.lane.b32.xlu0 %v1296, 120
    %v1299 = vpop.permute.xlu0 %1298
    %1300 = vrot.lane.b32.xlu0 %v1297, 120
    %v1301 = vpop.permute.xlu0 %1300
    %1302 = vst [vmem:[#allocation1] ss:$2 sm:$0xff] %v197
    %s1303 = scalar_lea.vmem [#allocation1], 1
    %1304 = vst [vmem:[%s1303] ss:$2 sm:$0xff] %v220
    %s1305 = scalar_lea.vmem [#allocation1], 16
    %1306 = vst [vmem:[%s1305] ss:$2 sm:$0xff] %v200
    %v1307 = vld.sshfl [vmem:[#allocation1] sm:$0xff pattern:$0x75316420]
    %v1308 = vld.sshfl [vmem:[#allocation1 + $0x10] sm:$0xff pattern:$0x75316420]
    %1309 = vrot.lane.b32.xlu0 %v1307, 88
    %v1310 = vpop.permute.xlu0 %1309
    %1311 = vrot.lane.b32.xlu0 %v1308, 88
    %v1312 = vpop.permute.xlu0 %1311
    %v1313 = vsel %vm241, %v1299, 0
    %v1315 = vsel %vm241, %v1301, 0
    %v1317 = vsel %vm241, %v1310, 0
    %v1319 = vsel %vm241, %v1312, 0
    %1321 = vmatpush.xpose.msra.mxu0 0.0
    %1322 = vmatpush.xpose.msra.mxu0 0.0
    %1323 = vmatpush.xpose.msra.mxu0 0.0
    %1324 = vmatpush.xpose.msra.mxu0 0.0
    %1325 = vmatpush.xpose.msra.mxu0 0.0
    %1326 = vmatpush.xpose.msra.mxu0 0.0
    %1327 = vmatpush.xpose.msra.mxu0 0.0
    %1328 = vmatpush.xpose.msra.mxu0 0.0
    %1329 = vmatpush.xpose.msra.mxu0 0.0
    %1330 = vmatpush.xpose.msra.mxu0 0.0
    %1331 = vmatpush.xpose.msra.mxu0 0.0
    %1332 = vmatpush.xpose.msra.mxu0 0.0
    %1333 = vmatpush.xpose.msra.mxu0 0.0
    %1334 = vmatpush.xpose.msra.mxu0 0.0
    %1335 = vmatpush.xpose.msra.mxu0 %v1319
    %1336 = vmatpush.xpose.msra.mxu0 %v1317
    %1337 = vmatmul.f32.gmra.mxu0 %v1313
    %v1338 = vpop.f32.mrf.mxu0
    %v1339 = vadd.f32 0.0, %v1338
    %1340 = vmatmul.f32.gmra.mxu0 %v1315
    %v1341 = vpop.f32.mrf.mxu0
    %v1342 = vadd.f32 0.0, %v1341
    %1343 = vdwg.mxu0
    %1344 = vst [vmem:[#allocation1] ss:$2 sm:$0xff] %v221
    %s1345 = scalar_lea.vmem [#allocation1], 1
    %1346 = vst [vmem:[%s1345] ss:$2 sm:$0xff] %v203
    %s1347 = scalar_lea.vmem [#allocation1], 16
    %1348 = vst [vmem:[%s1347] ss:$2 sm:$0xff] %v222
    %v1349 = vld.sshfl [vmem:[#allocation1] sm:$0xff pattern:$0x75316420]
    %v1350 = vld.sshfl [vmem:[#allocation1 + $0x10] sm:$0xff pattern:$0x75316420]
    %1351 = vrot.lane.b32.xlu0 %v1349, 120
    %v1352 = vpop.permute.xlu0 %1351
    %1353 = vrot.lane.b32.xlu0 %v1350, 120
    %v1354 = vpop.permute.xlu0 %1353
    %1355 = vst [vmem:[#allocation1] ss:$2 sm:$0xff] %v221
    %s1356 = scalar_lea.vmem [#allocation1], 1
    %1357 = vst [vmem:[%s1356] ss:$2 sm:$0xff] %v203
    %s1358 = scalar_lea.vmem [#allocation1], 16
    %1359 = vst [vmem:[%s1358] ss:$2 sm:$0xff] %v222
    %v1360 = vld.sshfl [vmem:[#allocation1] sm:$0xff pattern:$0x75316420]
    %v1361 = vld.sshfl [vmem:[#allocation1 + $0x10] sm:$0xff pattern:$0x75316420]
    %1362 = vrot.lane.b32.xlu0 %v1360, 88
    %v1363 = vpop.permute.xlu0 %1362
    %1364 = vrot.lane.b32.xlu0 %v1361, 88
    %v1365 = vpop.permute.xlu0 %1364
    %v1366 = vsel %vm241, %v1352, 0
    %v1368 = vsel %vm241, %v1354, 0
    %v1370 = vsel %vm241, %v1363, 0
    %v1372 = vsel %vm241, %v1365, 0
    %1374 = vmatpush.xpose.msra.mxu0 0.0
    %1375 = vmatpush.xpose.msra.mxu0 0.0
    %1376 = vmatpush.xpose.msra.mxu0 0.0
    %1377 = vmatpush.xpose.msra.mxu0 0.0
    %1378 = vmatpush.xpose.msra.mxu0 0.0
    %1379 = vmatpush.xpose.msra.mxu0 0.0
    %1380 = vmatpush.xpose.msra.mxu0 0.0
    %1381 = vmatpush.xpose.msra.mxu0 0.0
    %1382 = vmatpush.xpose.msra.mxu0 0.0
    %1383 = vmatpush.xpose.msra.mxu0 0.0
    %1384 = vmatpush.xpose.msra.mxu0 0.0
    %1385 = vmatpush.xpose.msra.mxu0 0.0
    %1386 = vmatpush.xpose.msra.mxu0 0.0
    %1387 = vmatpush.xpose.msra.mxu0 0.0
    %1388 = vmatpush.xpose.msra.mxu0 %v1372
    %1389 = vmatpush.xpose.msra.mxu0 %v1370
    %1390 = vmatmul.f32.gmra.mxu0 %v1366
    %v1391 = vpop.f32.mrf.mxu0
    %v1392 = vadd.f32 0.0, %v1391
    %1393 = vmatmul.f32.gmra.mxu0 %v1368
    %v1394 = vpop.f32.mrf.mxu0
    %v1395 = vadd.f32 0.0, %v1394
    %1396 = vdwg.mxu0
    %v1397 = vsel %vm518, %v1127, -inf
    %1398 = vmax.xlane.f32.xlu0 %v1397
    %v1399 = vpop.xlane.xlu0 %1398
    %v1400 = vsel %vm522, %v1130, -inf
    %1401 = vmax.xlane.f32.xlu0 %v1400
    %v1402 = vpop.xlane.xlu0 %1401
    %v1403 = vsel %vm518, %v1180, -inf
    %1404 = vmax.xlane.f32.xlu0 %v1403
    %v1405 = vpop.xlane.xlu0 %1404
    %v1406 = vsel %vm522, %v1183, -inf
    %1407 = vmax.xlane.f32.xlu0 %v1406
    %v1408 = vpop.xlane.xlu0 %1407
    %v1409 = vsel %vm518, %v1233, -inf
    %1410 = vmax.xlane.f32.xlu0 %v1409
    %v1411 = vpop.xlane.xlu0 %1410
    %v1412 = vsel %vm522, %v1236, -inf
    %1413 = vmax.xlane.f32.xlu0 %v1412
    %v1414 = vpop.xlane.xlu0 %1413
    %v1415 = vsel %vm518, %v1286, -inf
    %1416 = vmax.xlane.f32.xlu0 %v1415
    %v1417 = vpop.xlane.xlu0 %1416
    %v1418 = vsel %vm522, %v1289, -inf
    %1419 = vmax.xlane.f32.xlu0 %v1418
    %v1420 = vpop.xlane.xlu0 %1419
    %v1421 = vsel %vm518, %v1339, -inf
    %1422 = vmax.xlane.f32.xlu0 %v1421
    %v1423 = vpop.xlane.xlu0 %1422
    %v1424 = vsel %vm522, %v1342, -inf
    %1425 = vmax.xlane.f32.xlu0 %v1424
    %v1426 = vpop.xlane.xlu0 %1425
    %v1427 = vsel %vm518, %v1392, -inf
    %1428 = vmax.xlane.f32.xlu0 %v1427
    %v1429 = vpop.xlane.xlu0 %1428
    %v1430 = vsel %vm522, %v1395, -inf
    %1431 = vmax.xlane.f32.xlu0 %v1430
    %v1432 = vpop.xlane.xlu0 %1431
    %v1433 = vsub.f32 %v1127, %v1399
    %v1434 = vsub.f32 %v1130, %v1402
    %v1435 = vsub.f32 %v1180, %v1405
    %v1436 = vsub.f32 %v1183, %v1408
    %v1437 = vsub.f32 %v1233, %v1411
    %v1438 = vsub.f32 %v1236, %v1414
    %v1439 = vsub.f32 %v1286, %v1417
    %v1440 = vsub.f32 %v1289, %v1420
    %v1441 = vsub.f32 %v1339, %v1423
    %v1442 = vsub.f32 %v1342, %v1426
    %v1443 = vsub.f32 %v1392, %v1429
    %v1444 = vsub.f32 %v1395, %v1432
    %v1445 = vmul.f32 %v1433, 1.442695
    %v1446 = vpow.pop %v1445
    %v1447 = vmul.f32 %v1434, 1.442695
    %v1448 = vpow.pop %v1447
    %v1449 = vmul.f32 %v1435, 1.442695
    %v1450 = vpow.pop %v1449
    %v1451 = vmul.f32 %v1436, 1.442695
    %v1452 = vpow.pop %v1451
    %v1453 = vmul.f32 %v1437, 1.442695
    %v1454 = vpow.pop %v1453
    %v1455 = vmul.f32 %v1438, 1.442695
    %v1456 = vpow.pop %v1455
    %v1457 = vmul.f32 %v1439, 1.442695
    %v1458 = vpow.pop %v1457
    %v1459 = vmul.f32 %v1440, 1.442695
    %v1460 = vpow.pop %v1459
    %v1461 = vmul.f32 %v1441, 1.442695
    %v1462 = vpow.pop %v1461
    %v1463 = vmul.f32 %v1442, 1.442695
    %v1464 = vpow.pop %v1463
    %v1465 = vmul.f32 %v1443, 1.442695
    %v1466 = vpow.pop %v1465
    %v1467 = vmul.f32 %v1444, 1.442695
    %v1468 = vpow.pop %v1467
    %v1469 = vsel %vm518, %v1446, 0.0
    %1470 = vadd.xlane.f32.xlu0 %v1469
    %v1471 = vpop.xlane.xlu0 %1470
    %v1472 = vsel %vm522, %v1448, 0.0
    %1473 = vadd.xlane.f32.xlu0 %v1472
    %v1474 = vpop.xlane.xlu0 %1473
    %v1475 = vsel %vm518, %v1450, 0.0
    %1476 = vadd.xlane.f32.xlu0 %v1475
    %v1477 = vpop.xlane.xlu0 %1476
    %v1478 = vsel %vm522, %v1452, 0.0
    %1479 = vadd.xlane.f32.xlu0 %v1478
    %v1480 = vpop.xlane.xlu0 %1479
    %v1481 = vsel %vm518, %v1454, 0.0
    %1482 = vadd.xlane.f32.xlu0 %v1481
    %v1483 = vpop.xlane.xlu0 %1482
    %v1484 = vsel %vm522, %v1456, 0.0
    %1485 = vadd.xlane.f32.xlu0 %v1484
    %v1486 = vpop.xlane.xlu0 %1485
    %v1487 = vsel %vm518, %v1458, 0.0
    %1488 = vadd.xlane.f32.xlu0 %v1487
    %v1489 = vpop.xlane.xlu0 %1488
    %v1490 = vsel %vm522, %v1460, 0.0
    %1491 = vadd.xlane.f32.xlu0 %v1490
    %v1492 = vpop.xlane.xlu0 %1491
    %v1493 = vsel %vm518, %v1462, 0.0
    %1494 = vadd.xlane.f32.xlu0 %v1493
    %v1495 = vpop.xlane.xlu0 %1494
    %v1496 = vsel %vm522, %v1464, 0.0
    %1497 = vadd.xlane.f32.xlu0 %v1496
    %v1498 = vpop.xlane.xlu0 %1497
    %v1499 = vsel %vm518, %v1466, 0.0
    %1500 = vadd.xlane.f32.xlu0 %v1499
    %v1501 = vpop.xlane.xlu0 %1500
    %v1502 = vsel %vm522, %v1468, 0.0
    %1503 = vadd.xlane.f32.xlu0 %v1502
    %v1504 = vpop.xlane.xlu0 %1503
    %v1505 = vrcp.pop %v1471
    %v1506 = vmul.f32 %v1471, %v1505
    %v1507 = vsub.f32 1.0, %v1506
    %v1508 = vmul.f32 %v1505, %v1507
    %v1509 = vadd.f32 %v1505, %v1508
    %vm1510 = vweird.f32 %v1471
    %vm1511 = vweird.f32 %v1505
    %vm1512 = vmor %vm1510, %vm1511
    %v1513 = vsel %vm1512, %v1505, %v1509
    %v1514 = vand.u32 2147483647, %v1471
    %vm1515 = vcmp.eq.f32.partialorder %v1514, 8.507059e+37
    %v1516 = vand.u32 %v1471, 2147483648
    %v1517 = vor.u32 1.1754944e-38, %v1516
    %v1518 = vsel %vm1515, %v1517, %v1513
    %v1519 = vrcp.pop %v1474
    %v1520 = vmul.f32 %v1474, %v1519
    %v1521 = vsub.f32 1.0, %v1520
    %v1522 = vmul.f32 %v1519, %v1521
    %v1523 = vadd.f32 %v1519, %v1522
    %vm1524 = vweird.f32 %v1474
    %vm1525 = vweird.f32 %v1519
    %vm1526 = vmor %vm1524, %vm1525
    %v1527 = vsel %vm1526, %v1519, %v1523
    %v1528 = vand.u32 2147483647, %v1474
    %vm1529 = vcmp.eq.f32.partialorder %v1528, 8.507059e+37
    %v1530 = vand.u32 %v1474, 2147483648
    %v1531 = vor.u32 1.1754944e-38, %v1530
    %v1532 = vsel %vm1529, %v1531, %v1527
    %v1533 = vrcp.pop %v1477
    %v1534 = vmul.f32 %v1477, %v1533
    %v1535 = vsub.f32 1.0, %v1534
    %v1536 = vmul.f32 %v1533, %v1535
    %v1537 = vadd.f32 %v1533, %v1536
    %vm1538 = vweird.f32 %v1477
    %vm1539 = vweird.f32 %v1533
    %vm1540 = vmor %vm1538, %vm1539
    %v1541 = vsel %vm1540, %v1533, %v1537
    %v1542 = vand.u32 2147483647, %v1477
    %vm1543 = vcmp.eq.f32.partialorder %v1542, 8.507059e+37
    %v1544 = vand.u32 %v1477, 2147483648
    %v1545 = vor.u32 1.1754944e-38, %v1544
    %v1546 = vsel %vm1543, %v1545, %v1541
    %v1547 = vrcp.pop %v1480
    %v1548 = vmul.f32 %v1480, %v1547
    %v1549 = vsub.f32 1.0, %v1548
    %v1550 = vmul.f32 %v1547, %v1549
    %v1551 = vadd.f32 %v1547, %v1550
    %vm1552 = vweird.f32 %v1480
    %vm1553 = vweird.f32 %v1547
    %vm1554 = vmor %vm1552, %vm1553
    %v1555 = vsel %vm1554, %v1547, %v1551
    %v1556 = vand.u32 2147483647, %v1480
    %vm1557 = vcmp.eq.f32.partialorder %v1556, 8.507059e+37
    %v1558 = vand.u32 %v1480, 2147483648
    %v1559 = vor.u32 1.1754944e-38, %v1558
    %v1560 = vsel %vm1557, %v1559, %v1555
    %v1561 = vrcp.pop %v1483
    %v1562 = vmul.f32 %v1483, %v1561
    %v1563 = vsub.f32 1.0, %v1562
    %v1564 = vmul.f32 %v1561, %v1563
    %v1565 = vadd.f32 %v1561, %v1564
    %vm1566 = vweird.f32 %v1483
    %vm1567 = vweird.f32 %v1561
    %vm1568 = vmor %vm1566, %vm1567
    %v1569 = vsel %vm1568, %v1561, %v1565
    %v1570 = vand.u32 2147483647, %v1483
    %vm1571 = vcmp.eq.f32.partialorder %v1570, 8.507059e+37
    %v1572 = vand.u32 %v1483, 2147483648
    %v1573 = vor.u32 1.1754944e-38, %v1572
    %v1574 = vsel %vm1571, %v1573, %v1569
    %v1575 = vrcp.pop %v1486
    %v1576 = vmul.f32 %v1486, %v1575
    %v1577 = vsub.f32 1.0, %v1576
    %v1578 = vmul.f32 %v1575, %v1577
    %v1579 = vadd.f32 %v1575, %v1578
    %vm1580 = vweird.f32 %v1486
    %vm1581 = vweird.f32 %v1575
    %vm1582 = vmor %vm1580, %vm1581
    %v1583 = vsel %vm1582, %v1575, %v1579
    %v1584 = vand.u32 2147483647, %v1486
    %vm1585 = vcmp.eq.f32.partialorder %v1584, 8.507059e+37
    %v1586 = vand.u32 %v1486, 2147483648
    %v1587 = vor.u32 1.1754944e-38, %v1586
    %v1588 = vsel %vm1585, %v1587, %v1583
    %v1589 = vrcp.pop %v1489
    %v1590 = vmul.f32 %v1489, %v1589
    %v1591 = vsub.f32 1.0, %v1590
    %v1592 = vmul.f32 %v1589, %v1591
    %v1593 = vadd.f32 %v1589, %v1592
    %vm1594 = vweird.f32 %v1489
    %vm1595 = vweird.f32 %v1589
    %vm1596 = vmor %vm1594, %vm1595
    %v1597 = vsel %vm1596, %v1589, %v1593
    %v1598 = vand.u32 2147483647, %v1489
    %vm1599 = vcmp.eq.f32.partialorder %v1598, 8.507059e+37
    %v1600 = vand.u32 %v1489, 2147483648
    %v1601 = vor.u32 1.1754944e-38, %v1600
    %v1602 = vsel %vm1599, %v1601, %v1597
    %v1603 = vrcp.pop %v1492
    %v1604 = vmul.f32 %v1492, %v1603
    %v1605 = vsub.f32 1.0, %v1604
    %v1606 = vmul.f32 %v1603, %v1605
    %v1607 = vadd.f32 %v1603, %v1606
    %vm1608 = vweird.f32 %v1492
    %vm1609 = vweird.f32 %v1603
    %vm1610 = vmor %vm1608, %vm1609
    %v1611 = vsel %vm1610, %v1603, %v1607
    %v1612 = vand.u32 2147483647, %v1492
    %vm1613 = vcmp.eq.f32.partialorder %v1612, 8.507059e+37
    %v1614 = vand.u32 %v1492, 2147483648
    %v1615 = vor.u32 1.1754944e-38, %v1614
    %v1616 = vsel %vm1613, %v1615, %v1611
    %v1617 = vrcp.pop %v1495
    %v1618 = vmul.f32 %v1495, %v1617
    %v1619 = vsub.f32 1.0, %v1618
    %v1620 = vmul.f32 %v1617, %v1619
    %v1621 = vadd.f32 %v1617, %v1620
    %vm1622 = vweird.f32 %v1495
    %vm1623 = vweird.f32 %v1617
    %vm1624 = vmor %vm1622, %vm1623
    %v1625 = vsel %vm1624, %v1617, %v1621
    %v1626 = vand.u32 2147483647, %v1495
    %vm1627 = vcmp.eq.f32.partialorder %v1626, 8.507059e+37
    %v1628 = vand.u32 %v1495, 2147483648
    %v1629 = vor.u32 1.1754944e-38, %v1628
    %v1630 = vsel %vm1627, %v1629, %v1625
    %v1631 = vrcp.pop %v1498
    %v1632 = vmul.f32 %v1498, %v1631
    %v1633 = vsub.f32 1.0, %v1632
    %v1634 = vmul.f32 %v1631, %v1633
    %v1635 = vadd.f32 %v1631, %v1634
    %vm1636 = vweird.f32 %v1498
    %vm1637 = vweird.f32 %v1631
    %vm1638 = vmor %vm1636, %vm1637
    %v1639 = vsel %vm1638, %v1631, %v1635
    %v1640 = vand.u32 2147483647, %v1498
    %vm1641 = vcmp.eq.f32.partialorder %v1640, 8.507059e+37
    %v1642 = vand.u32 %v1498, 2147483648
    %v1643 = vor.u32 1.1754944e-38, %v1642
    %v1644 = vsel %vm1641, %v1643, %v1639
    %v1645 = vrcp.pop %v1501
    %v1646 = vmul.f32 %v1501, %v1645
    %v1647 = vsub.f32 1.0, %v1646
    %v1648 = vmul.f32 %v1645, %v1647
    %v1649 = vadd.f32 %v1645, %v1648
    %vm1650 = vweird.f32 %v1501
    %vm1651 = vweird.f32 %v1645
    %vm1652 = vmor %vm1650, %vm1651
    %v1653 = vsel %vm1652, %v1645, %v1649
    %v1654 = vand.u32 2147483647, %v1501
    %vm1655 = vcmp.eq.f32.partialorder %v1654, 8.507059e+37
    %v1656 = vand.u32 %v1501, 2147483648
    %v1657 = vor.u32 1.1754944e-38, %v1656
    %v1658 = vsel %vm1655, %v1657, %v1653
    %v1659 = vrcp.pop %v1504
    %v1660 = vmul.f32 %v1504, %v1659
    %v1661 = vsub.f32 1.0, %v1660
    %v1662 = vmul.f32 %v1659, %v1661
    %v1663 = vadd.f32 %v1659, %v1662
    %vm1664 = vweird.f32 %v1504
    %vm1665 = vweird.f32 %v1659
    %vm1666 = vmor %vm1664, %vm1665
    %v1667 = vsel %vm1666, %v1659, %v1663
    %v1668 = vand.u32 2147483647, %v1504
    %vm1669 = vcmp.eq.f32.partialorder %v1668, 8.507059e+37
    %v1670 = vand.u32 %v1504, 2147483648
    %v1671 = vor.u32 1.1754944e-38, %v1670
    %v1672 = vsel %vm1669, %v1671, %v1667
    %v1673 = vmul.f32 %v1446, %v1518
    %v1674 = vmul.f32 %v1448, %v1532
    %v1675 = vmul.f32 %v1450, %v1546
    %v1676 = vmul.f32 %v1452, %v1560
    %v1677 = vmul.f32 %v1454, %v1574
    %v1678 = vmul.f32 %v1456, %v1588
    %v1679 = vmul.f32 %v1458, %v1602
    %v1680 = vmul.f32 %v1460, %v1616
    %v1681 = vmul.f32 %v1462, %v1630
    %v1682 = vmul.f32 %v1464, %v1644
    %v1683 = vmul.f32 %v1466, %v1658
    %v1684 = vmul.f32 %v1468, %v1672
    %s1685 = scalar_lea.vmem %s6, 96
    %1686 = vst.msk [vmem:[%s1685] sm:$0xff] %vm518, %v1673
    %1687 = vst.msk [vmem:[%s1685 + $0x8] sm:$0xf] %vm522, %v1674
    %1688 = vst.msk [vmem:[%s1685 + $0x10] sm:$0xff] %vm518, %v1675
    %1689 = vst.msk [vmem:[%s1685 + $0x18] sm:$0xf] %vm522, %v1676
    %1690 = vst.msk [vmem:[%s1685 + $0x20] sm:$0xff] %vm518, %v1677
    %1691 = vst.msk [vmem:[%s1685 + $0x28] sm:$0xf] %vm522, %v1678
    %1692 = vst.msk [vmem:[%s1685 + $0x30] sm:$0xff] %vm518, %v1679
    %1693 = vst.msk [vmem:[%s1685 + $0x38] sm:$0xf] %vm522, %v1680
    %1694 = vst.msk [vmem:[%s1685 + $0x40] sm:$0xff] %vm518, %v1681
    %1695 = vst.msk [vmem:[%s1685 + $0x48] sm:$0xf] %vm522, %v1682
    %1696 = vst.msk [vmem:[%s1685 + $0x50] sm:$0xff] %vm518, %v1683
    %1697 = vst.msk [vmem:[%s1685 + $0x58] sm:$0xf] %vm522, %v1684
    %1698 = vst [vmem:[#allocation1] ss:$2 sm:$0xff] %v179
    %s1699 = scalar_lea.vmem [#allocation1], 1
    %1700 = vst [vmem:[%s1699] ss:$2 sm:$0xff] %v214
    %s1701 = scalar_lea.vmem [#allocation1], 16
    %1702 = vst [vmem:[%s1701] ss:$2 sm:$0xff] %v182
    %v1703 = vld.sshfl [vmem:[#allocation1] sm:$0xff pattern:$0x75316420]
    %v1704 = vld.sshfl [vmem:[#allocation1 + $0x10] sm:$0xff pattern:$0x75316420]
    %1705 = vrot.lane.b32.xlu0 %v1703, 56
    %v1706 = vpop.permute.xlu0 %1705
    %1707 = vrot.lane.b32.xlu0 %v1704, 56
    %v1708 = vpop.permute.xlu0 %1707
    %v1711 = vsel %vm518, %v1673, 0
    %v1714 = vsel %vm518, %v1674, 0
    %v1716 = vsel %vm838, %v1708, 0
    %1718 = vmatpush.msra.mxu0 0.0
    %1719 = vmatpush.msra.mxu0 0.0
    %1720 = vmatpush.msra.mxu0 0.0
    %1721 = vmatpush.msra.mxu0 0.0
    %1722 = vmatpush.msra.mxu0 0.0
    %1723 = vmatpush.msra.mxu0 0.0
    %1724 = vmatpush.msra.mxu0 0.0
    %1725 = vmatpush.msra.mxu0 0.0
    %1726 = vmatpush.msra.mxu0 0.0
    %1727 = vmatpush.msra.mxu0 0.0
    %1728 = vmatpush.msra.mxu0 0.0
    %1729 = vmatpush.msra.mxu0 0.0
    %1730 = vmatpush.msra.mxu0 0.0
    %1731 = vmatpush.msra.mxu0 0.0
    %1732 = vmatpush.msra.mxu0 %v1716
    %1733 = vmatpush.msra.mxu0 %v1706
    %1734 = vmatmul.f32.gmra.mxu0 %v1711
    %v1735 = vpop.f32.mrf.mxu0
    %v1736 = vadd.f32 0.0, %v1735
    %1737 = vmatmul.f32.gmra.mxu0 %v1714
    %v1738 = vpop.f32.mrf.mxu0
    %v1739 = vadd.f32 0.0, %v1738
    %1740 = vdwg.mxu0
    %1741 = vst [vmem:[#allocation1] ss:$2 sm:$0xff] %v215
    %s1742 = scalar_lea.vmem [#allocation1], 1
    %1743 = vst [vmem:[%s1742] ss:$2 sm:$0xff] %v185
    %s1744 = scalar_lea.vmem [#allocation1], 16
    %1745 = vst [vmem:[%s1744] ss:$2 sm:$0xff] %v216
    %v1746 = vld.sshfl [vmem:[#allocation1] sm:$0xff pattern:$0x75316420]
    %v1747 = vld.sshfl [vmem:[#allocation1 + $0x10] sm:$0xff pattern:$0x75316420]
    %1748 = vrot.lane.b32.xlu0 %v1746, 56
    %v1749 = vpop.permute.xlu0 %1748
    %1750 = vrot.lane.b32.xlu0 %v1747, 56
    %v1751 = vpop.permute.xlu0 %1750
    %v1754 = vsel %vm518, %v1675, 0
    %v1757 = vsel %vm518, %v1676, 0
    %v1759 = vsel %vm838, %v1751, 0
    %1761 = vmatpush.msra.mxu0 0.0
    %1762 = vmatpush.msra.mxu0 0.0
    %1763 = vmatpush.msra.mxu0 0.0
    %1764 = vmatpush.msra.mxu0 0.0
    %1765 = vmatpush.msra.mxu0 0.0
    %1766 = vmatpush.msra.mxu0 0.0
    %1767 = vmatpush.msra.mxu0 0.0
    %1768 = vmatpush.msra.mxu0 0.0
    %1769 = vmatpush.msra.mxu0 0.0
    %1770 = vmatpush.msra.mxu0 0.0
    %1771 = vmatpush.msra.mxu0 0.0
    %1772 = vmatpush.msra.mxu0 0.0
    %1773 = vmatpush.msra.mxu0 0.0
    %1774 = vmatpush.msra.mxu0 0.0
    %1775 = vmatpush.msra.mxu0 %v1759
    %1776 = vmatpush.msra.mxu0 %v1749
    %1777 = vmatmul.f32.gmra.mxu0 %v1754
    %v1778 = vpop.f32.mrf.mxu0
    %v1779 = vadd.f32 0.0, %v1778
    %1780 = vmatmul.f32.gmra.mxu0 %v1757
    %v1781 = vpop.f32.mrf.mxu0
    %v1782 = vadd.f32 0.0, %v1781
    %1783 = vdwg.mxu0
    %1784 = vst [vmem:[#allocation1] ss:$2 sm:$0xff] %v188
    %s1785 = scalar_lea.vmem [#allocation1], 1
    %1786 = vst [vmem:[%s1785] ss:$2 sm:$0xff] %v217
    %s1787 = scalar_lea.vmem [#allocation1], 16
    %1788 = vst [vmem:[%s1787] ss:$2 sm:$0xff] %v191
    %v1789 = vld.sshfl [vmem:[#allocation1] sm:$0xff pattern:$0x75316420]
    %v1790 = vld.sshfl [vmem:[#allocation1 + $0x10] sm:$0xff pattern:$0x75316420]
    %1791 = vrot.lane.b32.xlu0 %v1789, 56
    %v1792 = vpop.permute.xlu0 %1791
    %1793 = vrot.lane.b32.xlu0 %v1790, 56
    %v1794 = vpop.permute.xlu0 %1793
    %v1797 = vsel %vm518, %v1677, 0
    %v1800 = vsel %vm518, %v1678, 0
    %v1802 = vsel %vm838, %v1794, 0
    %1804 = vmatpush.msra.mxu0 0.0
    %1805 = vmatpush.msra.mxu0 0.0
    %1806 = vmatpush.msra.mxu0 0.0
    %1807 = vmatpush.msra.mxu0 0.0
    %1808 = vmatpush.msra.mxu0 0.0
    %1809 = vmatpush.msra.mxu0 0.0
    %1810 = vmatpush.msra.mxu0 0.0
    %1811 = vmatpush.msra.mxu0 0.0
    %1812 = vmatpush.msra.mxu0 0.0
    %1813 = vmatpush.msra.mxu0 0.0
    %1814 = vmatpush.msra.mxu0 0.0
    %1815 = vmatpush.msra.mxu0 0.0
    %1816 = vmatpush.msra.mxu0 0.0
    %1817 = vmatpush.msra.mxu0 0.0
    %1818 = vmatpush.msra.mxu0 %v1802
    %1819 = vmatpush.msra.mxu0 %v1792
    %1820 = vmatmul.f32.gmra.mxu0 %v1797
    %v1821 = vpop.f32.mrf.mxu0
    %v1822 = vadd.f32 0.0, %v1821
    %1823 = vmatmul.f32.gmra.mxu0 %v1800
    %v1824 = vpop.f32.mrf.mxu0
    %v1825 = vadd.f32 0.0, %v1824
    %1826 = vdwg.mxu0
    %1827 = vst [vmem:[#allocation1] ss:$2 sm:$0xff] %v218
    %s1828 = scalar_lea.vmem [#allocation1], 1
    %1829 = vst [vmem:[%s1828] ss:$2 sm:$0xff] %v194
    %s1830 = scalar_lea.vmem [#allocation1], 16
    %1831 = vst [vmem:[%s1830] ss:$2 sm:$0xff] %v219
    %v1832 = vld.sshfl [vmem:[#allocation1] sm:$0xff pattern:$0x75316420]
    %v1833 = vld.sshfl [vmem:[#allocation1 + $0x10] sm:$0xff pattern:$0x75316420]
    %1834 = vrot.lane.b32.xlu0 %v1832, 56
    %v1835 = vpop.permute.xlu0 %1834
    %1836 = vrot.lane.b32.xlu0 %v1833, 56
    %v1837 = vpop.permute.xlu0 %1836
    %v1840 = vsel %vm518, %v1679, 0
    %v1843 = vsel %vm518, %v1680, 0
    %v1845 = vsel %vm838, %v1837, 0
    %1847 = vmatpush.msra.mxu0 0.0
    %1848 = vmatpush.msra.mxu0 0.0
    %1849 = vmatpush.msra.mxu0 0.0
    %1850 = vmatpush.msra.mxu0 0.0
    %1851 = vmatpush.msra.mxu0 0.0
    %1852 = vmatpush.msra.mxu0 0.0
    %1853 = vmatpush.msra.mxu0 0.0
    %1854 = vmatpush.msra.mxu0 0.0
    %1855 = vmatpush.msra.mxu0 0.0
    %1856 = vmatpush.msra.mxu0 0.0
    %1857 = vmatpush.msra.mxu0 0.0
    %1858 = vmatpush.msra.mxu0 0.0
    %1859 = vmatpush.msra.mxu0 0.0
    %1860 = vmatpush.msra.mxu0 0.0
    %1861 = vmatpush.msra.mxu0 %v1845
    %1862 = vmatpush.msra.mxu0 %v1835
    %1863 = vmatmul.f32.gmra.mxu0 %v1840
    %v1864 = vpop.f32.mrf.mxu0
    %v1865 = vadd.f32 0.0, %v1864
    %1866 = vmatmul.f32.gmra.mxu0 %v1843
    %v1867 = vpop.f32.mrf.mxu0
    %v1868 = vadd.f32 0.0, %v1867
    %1869 = vdwg.mxu0
    %1870 = vst [vmem:[#allocation1] ss:$2 sm:$0xff] %v197
    %s1871 = scalar_lea.vmem [#allocation1], 1
    %1872 = vst [vmem:[%s1871] ss:$2 sm:$0xff] %v220
    %s1873 = scalar_lea.vmem [#allocation1], 16
    %1874 = vst [vmem:[%s1873] ss:$2 sm:$0xff] %v200
    %v1875 = vld.sshfl [vmem:[#allocation1] sm:$0xff pattern:$0x75316420]
    %v1876 = vld.sshfl [vmem:[#allocation1 + $0x10] sm:$0xff pattern:$0x75316420]
    %1877 = vrot.lane.b32.xlu0 %v1875, 56
    %v1878 = vpop.permute.xlu0 %1877
    %1879 = vrot.lane.b32.xlu0 %v1876, 56
    %v1880 = vpop.permute.xlu0 %1879
    %v1883 = vsel %vm518, %v1681, 0
    %v1886 = vsel %vm518, %v1682, 0
    %v1888 = vsel %vm838, %v1880, 0
    %1890 = vmatpush.msra.mxu0 0.0
    %1891 = vmatpush.msra.mxu0 0.0
    %1892 = vmatpush.msra.mxu0 0.0
    %1893 = vmatpush.msra.mxu0 0.0
    %1894 = vmatpush.msra.mxu0 0.0
    %1895 = vmatpush.msra.mxu0 0.0
    %1896 = vmatpush.msra.mxu0 0.0
    %1897 = vmatpush.msra.mxu0 0.0
    %1898 = vmatpush.msra.mxu0 0.0
    %1899 = vmatpush.msra.mxu0 0.0
    %1900 = vmatpush.msra.mxu0 0.0
    %1901 = vmatpush.msra.mxu0 0.0
    %1902 = vmatpush.msra.mxu0 0.0
    %1903 = vmatpush.msra.mxu0 0.0
    %1904 = vmatpush.msra.mxu0 %v1888
    %1905 = vmatpush.msra.mxu0 %v1878
    %1906 = vmatmul.f32.gmra.mxu0 %v1883
    %v1907 = vpop.f32.mrf.mxu0
    %v1908 = vadd.f32 0.0, %v1907
    %1909 = vmatmul.f32.gmra.mxu0 %v1886
    %v1910 = vpop.f32.mrf.mxu0
    %v1911 = vadd.f32 0.0, %v1910
    %1912 = vdwg.mxu0
    %1913 = vst [vmem:[#allocation1] ss:$2 sm:$0xff] %v221
    %s1914 = scalar_lea.vmem [#allocation1], 1
    %1915 = vst [vmem:[%s1914] ss:$2 sm:$0xff] %v203
    %s1916 = scalar_lea.vmem [#allocation1], 16
    %1917 = vst [vmem:[%s1916] ss:$2 sm:$0xff] %v222
    %v1918 = vld.sshfl [vmem:[#allocation1] sm:$0xff pattern:$0x75316420]
    %v1919 = vld.sshfl [vmem:[#allocation1 + $0x10] sm:$0xff pattern:$0x75316420]
    %1920 = vrot.lane.b32.xlu0 %v1918, 56
    %v1921 = vpop.permute.xlu0 %1920
    %1922 = vrot.lane.b32.xlu0 %v1919, 56
    %v1923 = vpop.permute.xlu0 %1922
    %v1926 = vsel %vm518, %v1683, 0
    %v1929 = vsel %vm518, %v1684, 0
    %v1931 = vsel %vm838, %v1923, 0
    %1933 = vmatpush.msra.mxu0 0.0
    %1934 = vmatpush.msra.mxu0 0.0
    %1935 = vmatpush.msra.mxu0 0.0
    %1936 = vmatpush.msra.mxu0 0.0
    %1937 = vmatpush.msra.mxu0 0.0
    %1938 = vmatpush.msra.mxu0 0.0
    %1939 = vmatpush.msra.mxu0 0.0
    %1940 = vmatpush.msra.mxu0 0.0
    %1941 = vmatpush.msra.mxu0 0.0
    %1942 = vmatpush.msra.mxu0 0.0
    %1943 = vmatpush.msra.mxu0 0.0
    %1944 = vmatpush.msra.mxu0 0.0
    %1945 = vmatpush.msra.mxu0 0.0
    %1946 = vmatpush.msra.mxu0 0.0
    %1947 = vmatpush.msra.mxu0 %v1931
    %1948 = vmatpush.msra.mxu0 %v1921
    %1949 = vmatmul.f32.gmra.mxu0 %v1926
    %v1950 = vpop.f32.mrf.mxu0
    %v1951 = vadd.f32 0.0, %v1950
    %1952 = vmatmul.f32.gmra.mxu0 %v1929
    %v1953 = vpop.f32.mrf.mxu0
    %v1954 = vadd.f32 0.0, %v1953
    %1955 = vdwg.mxu0
    %1956 = vst [vmem:[#allocation1] ss:$2 sm:$0xff] %v179
    %s1957 = scalar_lea.vmem [#allocation1], 1
    %1958 = vst [vmem:[%s1957] ss:$2 sm:$0xff] %v214
    %s1959 = scalar_lea.vmem [#allocation1], 16
    %1960 = vst [vmem:[%s1959] ss:$2 sm:$0xff] %v182
    %v1961 = vld.sshfl [vmem:[#allocation1] sm:$0xff pattern:$0x75316420]
    %v1962 = vld.sshfl [vmem:[#allocation1 + $0x10] sm:$0xff pattern:$0x75316420]
    %1963 = vrot.lane.b32.xlu0 %v1961, 112
    %v1964 = vpop.permute.xlu0 %1963
    %1965 = vrot.lane.b32.xlu0 %v1962, 112
    %v1966 = vpop.permute.xlu0 %1965
    %1967 = vst [vmem:[#allocation1] ss:$2 sm:$0xff] %v179
    %s1968 = scalar_lea.vmem [#allocation1], 1
    %1969 = vst [vmem:[%s1968] ss:$2 sm:$0xff] %v214
    %s1970 = scalar_lea.vmem [#allocation1], 16
    %1971 = vst [vmem:[%s1970] ss:$2 sm:$0xff] %v182
    %v1972 = vld.sshfl [vmem:[#allocation1] sm:$0xff pattern:$0x75316420]
    %v1973 = vld.sshfl [vmem:[#allocation1 + $0x10] sm:$0xff pattern:$0x75316420]
    %1974 = vrot.lane.b32.xlu0 %v1972, 80
    %v1975 = vpop.permute.xlu0 %1974
    %1976 = vrot.lane.b32.xlu0 %v1973, 80
    %v1977 = vpop.permute.xlu0 %1976
    %v1978 = vsel %vm241, %v1964, 0
    %v1980 = vsel %vm241, %v1966, 0
    %v1982 = vsel %vm241, %v1975, 0
    %v1984 = vsel %vm241, %v1977, 0
    %1986 = vmatpush.xpose.msra.mxu0 0.0
    %1987 = vmatpush.xpose.msra.mxu0 0.0
    %1988 = vmatpush.xpose.msra.mxu0 0.0
    %1989 = vmatpush.xpose.msra.mxu0 0.0
    %1990 = vmatpush.xpose.msra.mxu0 0.0
    %1991 = vmatpush.xpose.msra.mxu0 0.0
    %1992 = vmatpush.xpose.msra.mxu0 0.0
    %1993 = vmatpush.xpose.msra.mxu0 0.0
    %1994 = vmatpush.xpose.msra.mxu0 0.0
    %1995 = vmatpush.xpose.msra.mxu0 0.0
    %1996 = vmatpush.xpose.msra.mxu0 0.0
    %1997 = vmatpush.xpose.msra.mxu0 0.0
    %1998 = vmatpush.xpose.msra.mxu0 0.0
    %1999 = vmatpush.xpose.msra.mxu0 0.0
    %2000 = vmatpush.xpose.msra.mxu0 %v1984
    %2001 = vmatpush.xpose.msra.mxu0 %v1982
    %2002 = vmatmul.f32.gmra.mxu0 %v1978
    %v2003 = vpop.f32.mrf.mxu0
    %v2004 = vadd.f32 0.0, %v2003
    %2005 = vmatmul.f32.gmra.mxu0 %v1980
    %v2006 = vpop.f32.mrf.mxu0
    %v2007 = vadd.f32 0.0, %v2006
    %2008 = vdwg.mxu0
    %2009 = vst [vmem:[#allocation1] ss:$2 sm:$0xff] %v215
    %s2010 = scalar_lea.vmem [#allocation1], 1
    %2011 = vst [vmem:[%s2010] ss:$2 sm:$0xff] %v185
    %s2012 = scalar_lea.vmem [#allocation1], 16
    %2013 = vst [vmem:[%s2012] ss:$2 sm:$0xff] %v216
    %v2014 = vld.sshfl [vmem:[#allocation1] sm:$0xff pattern:$0x75316420]
    %v2015 = vld.sshfl [vmem:[#allocation1 + $0x10] sm:$0xff pattern:$0x75316420]
    %2016 = vrot.lane.b32.xlu0 %v2014, 112
    %v2017 = vpop.permute.xlu0 %2016
    %2018 = vrot.lane.b32.xlu0 %v2015, 112
    %v2019 = vpop.permute.xlu0 %2018
    %2020 = vst [vmem:[#allocation1] ss:$2 sm:$0xff] %v215
    %s2021 = scalar_lea.vmem [#allocation1], 1
    %2022 = vst [vmem:[%s2021] ss:$2 sm:$0xff] %v185
    %s2023 = scalar_lea.vmem [#allocation1], 16
    %2024 = vst [vmem:[%s2023] ss:$2 sm:$0xff] %v216
    %v2025 = vld.sshfl [vmem:[#allocation1] sm:$0xff pattern:$0x75316420]
    %v2026 = vld.sshfl [vmem:[#allocation1 + $0x10] sm:$0xff pattern:$0x75316420]
    %2027 = vrot.lane.b32.xlu0 %v2025, 80
    %v2028 = vpop.permute.xlu0 %2027
    %2029 = vrot.lane.b32.xlu0 %v2026, 80
    %v2030 = vpop.permute.xlu0 %2029
    %v2031 = vsel %vm241, %v2017, 0
    %v2033 = vsel %vm241, %v2019, 0
    %v2035 = vsel %vm241, %v2028, 0
    %v2037 = vsel %vm241, %v2030, 0
    %2039 = vmatpush.xpose.msra.mxu0 0.0
    %2040 = vmatpush.xpose.msra.mxu0 0.0
    %2041 = vmatpush.xpose.msra.mxu0 0.0
    %2042 = vmatpush.xpose.msra.mxu0 0.0
    %2043 = vmatpush.xpose.msra.mxu0 0.0
    %2044 = vmatpush.xpose.msra.mxu0 0.0
    %2045 = vmatpush.xpose.msra.mxu0 0.0
    %2046 = vmatpush.xpose.msra.mxu0 0.0
    %2047 = vmatpush.xpose.msra.mxu0 0.0
    %2048 = vmatpush.xpose.msra.mxu0 0.0
    %2049 = vmatpush.xpose.msra.mxu0 0.0
    %2050 = vmatpush.xpose.msra.mxu0 0.0
    %2051 = vmatpush.xpose.msra.mxu0 0.0
    %2052 = vmatpush.xpose.msra.mxu0 0.0
    %2053 = vmatpush.xpose.msra.mxu0 %v2037
    %2054 = vmatpush.xpose.msra.mxu0 %v2035
    %2055 = vmatmul.f32.gmra.mxu0 %v2031
    %v2056 = vpop.f32.mrf.mxu0
    %v2057 = vadd.f32 0.0, %v2056
    %2058 = vmatmul.f32.gmra.mxu0 %v2033
    %v2059 = vpop.f32.mrf.mxu0
    %v2060 = vadd.f32 0.0, %v2059
    %2061 = vdwg.mxu0
    %2062 = vst [vmem:[#allocation1] ss:$2 sm:$0xff] %v188
    %s2063 = scalar_lea.vmem [#allocation1], 1
    %2064 = vst [vmem:[%s2063] ss:$2 sm:$0xff] %v217
    %s2065 = scalar_lea.vmem [#allocation1], 16
    %2066 = vst [vmem:[%s2065] ss:$2 sm:$0xff] %v191
    %v2067 = vld.sshfl [vmem:[#allocation1] sm:$0xff pattern:$0x75316420]
    %v2068 = vld.sshfl [vmem:[#allocation1 + $0x10] sm:$0xff pattern:$0x75316420]
    %2069 = vrot.lane.b32.xlu0 %v2067, 112
    %v2070 = vpop.permute.xlu0 %2069
    %2071 = vrot.lane.b32.xlu0 %v2068, 112
    %v2072 = vpop.permute.xlu0 %2071
    %2073 = vst [vmem:[#allocation1] ss:$2 sm:$0xff] %v188
    %s2074 = scalar_lea.vmem [#allocation1], 1
    %2075 = vst [vmem:[%s2074] ss:$2 sm:$0xff] %v217
    %s2076 = scalar_lea.vmem [#allocation1], 16
    %2077 = vst [vmem:[%s2076] ss:$2 sm:$0xff] %v191
    %v2078 = vld.sshfl [vmem:[#allocation1] sm:$0xff pattern:$0x75316420]
    %v2079 = vld.sshfl [vmem:[#allocation1 + $0x10] sm:$0xff pattern:$0x75316420]
    %2080 = vrot.lane.b32.xlu0 %v2078, 80
    %v2081 = vpop.permute.xlu0 %2080
    %2082 = vrot.lane.b32.xlu0 %v2079, 80
    %v2083 = vpop.permute.xlu0 %2082
    %v2084 = vsel %vm241, %v2070, 0
    %v2086 = vsel %vm241, %v2072, 0
    %v2088 = vsel %vm241, %v2081, 0
    %v2090 = vsel %vm241, %v2083, 0
    %2092 = vmatpush.xpose.msra.mxu0 0.0
    %2093 = vmatpush.xpose.msra.mxu0 0.0
    %2094 = vmatpush.xpose.msra.mxu0 0.0
    %2095 = vmatpush.xpose.msra.mxu0 0.0
    %2096 = vmatpush.xpose.msra.mxu0 0.0
    %2097 = vmatpush.xpose.msra.mxu0 0.0
    %2098 = vmatpush.xpose.msra.mxu0 0.0
    %2099 = vmatpush.xpose.msra.mxu0 0.0
    %2100 = vmatpush.xpose.msra.mxu0 0.0
    %2101 = vmatpush.xpose.msra.mxu0 0.0
    %2102 = vmatpush.xpose.msra.mxu0 0.0
    %2103 = vmatpush.xpose.msra.mxu0 0.0
    %2104 = vmatpush.xpose.msra.mxu0 0.0
    %2105 = vmatpush.xpose.msra.mxu0 0.0
    %2106 = vmatpush.xpose.msra.mxu0 %v2090
    %2107 = vmatpush.xpose.msra.mxu0 %v2088
    %2108 = vmatmul.f32.gmra.mxu0 %v2084
    %v2109 = vpop.f32.mrf.mxu0
    %v2110 = vadd.f32 0.0, %v2109
    %2111 = vmatmul.f32.gmra.mxu0 %v2086
    %v2112 = vpop.f32.mrf.mxu0
    %v2113 = vadd.f32 0.0, %v2112
    %2114 = vdwg.mxu0
    %2115 = vst [vmem:[#allocation1] ss:$2 sm:$0xff] %v218
    %s2116 = scalar_lea.vmem [#allocation1], 1
    %2117 = vst [vmem:[%s2116] ss:$2 sm:$0xff] %v194
    %s2118 = scalar_lea.vmem [#allocation1], 16
    %2119 = vst [vmem:[%s2118] ss:$2 sm:$0xff] %v219
    %v2120 = vld.sshfl [vmem:[#allocation1] sm:$0xff pattern:$0x75316420]
    %v2121 = vld.sshfl [vmem:[#allocation1 + $0x10] sm:$0xff pattern:$0x75316420]
    %2122 = vrot.lane.b32.xlu0 %v2120, 112
    %v2123 = vpop.permute.xlu0 %2122
    %2124 = vrot.lane.b32.xlu0 %v2121, 112
    %v2125 = vpop.permute.xlu0 %2124
    %2126 = vst [vmem:[#allocation1] ss:$2 sm:$0xff] %v218
    %s2127 = scalar_lea.vmem [#allocation1], 1
    %2128 = vst [vmem:[%s2127] ss:$2 sm:$0xff] %v194
    %s2129 = scalar_lea.vmem [#allocation1], 16
    %2130 = vst [vmem:[%s2129] ss:$2 sm:$0xff] %v219
    %v2131 = vld.sshfl [vmem:[#allocation1] sm:$0xff pattern:$0x75316420]
    %v2132 = vld.sshfl [vmem:[#allocation1 + $0x10] sm:$0xff pattern:$0x75316420]
    %2133 = vrot.lane.b32.xlu0 %v2131, 80
    %v2134 = vpop.permute.xlu0 %2133
    %2135 = vrot.lane.b32.xlu0 %v2132, 80
    %v2136 = vpop.permute.xlu0 %2135
    %v2137 = vsel %vm241, %v2123, 0
    %v2139 = vsel %vm241, %v2125, 0
    %v2141 = vsel %vm241, %v2134, 0
    %v2143 = vsel %vm241, %v2136, 0
    %2145 = vmatpush.xpose.msra.mxu0 0.0
    %2146 = vmatpush.xpose.msra.mxu0 0.0
    %2147 = vmatpush.xpose.msra.mxu0 0.0
    %2148 = vmatpush.xpose.msra.mxu0 0.0
    %2149 = vmatpush.xpose.msra.mxu0 0.0
    %2150 = vmatpush.xpose.msra.mxu0 0.0
    %2151 = vmatpush.xpose.msra.mxu0 0.0
    %2152 = vmatpush.xpose.msra.mxu0 0.0
    %2153 = vmatpush.xpose.msra.mxu0 0.0
    %2154 = vmatpush.xpose.msra.mxu0 0.0
    %2155 = vmatpush.xpose.msra.mxu0 0.0
    %2156 = vmatpush.xpose.msra.mxu0 0.0
    %2157 = vmatpush.xpose.msra.mxu0 0.0
    %2158 = vmatpush.xpose.msra.mxu0 0.0
    %2159 = vmatpush.xpose.msra.mxu0 %v2143
    %2160 = vmatpush.xpose.msra.mxu0 %v2141
    %2161 = vmatmul.f32.gmra.mxu0 %v2137
    %v2162 = vpop.f32.mrf.mxu0
    %v2163 = vadd.f32 0.0, %v2162
    %2164 = vmatmul.f32.gmra.mxu0 %v2139
    %v2165 = vpop.f32.mrf.mxu0
    %v2166 = vadd.f32 0.0, %v2165
    %2167 = vdwg.mxu0
    %2168 = vst [vmem:[#allocation1] ss:$2 sm:$0xff] %v197
    %s2169 = scalar_lea.vmem [#allocation1], 1
    %2170 = vst [vmem:[%s2169] ss:$2 sm:$0xff] %v220
    %s2171 = scalar_lea.vmem [#allocation1], 16
    %2172 = vst [vmem:[%s2171] ss:$2 sm:$0xff] %v200
    %v2173 = vld.sshfl [vmem:[#allocation1] sm:$0xff pattern:$0x75316420]
    %v2174 = vld.sshfl [vmem:[#allocation1 + $0x10] sm:$0xff pattern:$0x75316420]
    %2175 = vrot.lane.b32.xlu0 %v2173, 112
    %v2176 = vpop.permute.xlu0 %2175
    %2177 = vrot.lane.b32.xlu0 %v2174, 112
    %v2178 = vpop.permute.xlu0 %2177
    %2179 = vst [vmem:[#allocation1] ss:$2 sm:$0xff] %v197
    %s2180 = scalar_lea.vmem [#allocation1], 1
    %2181 = vst [vmem:[%s2180] ss:$2 sm:$0xff] %v220
    %s2182 = scalar_lea.vmem [#allocation1], 16
    %2183 = vst [vmem:[%s2182] ss:$2 sm:$0xff] %v200
    %v2184 = vld.sshfl [vmem:[#allocation1] sm:$0xff pattern:$0x75316420]
    %v2185 = vld.sshfl [vmem:[#allocation1 + $0x10] sm:$0xff pattern:$0x75316420]
    %2186 = vrot.lane.b32.xlu0 %v2184, 80
    %v2187 = vpop.permute.xlu0 %2186
    %2188 = vrot.lane.b32.xlu0 %v2185, 80
    %v2189 = vpop.permute.xlu0 %2188
    %v2190 = vsel %vm241, %v2176, 0
    %v2192 = vsel %vm241, %v2178, 0
    %v2194 = vsel %vm241, %v2187, 0
    %v2196 = vsel %vm241, %v2189, 0
    %2198 = vmatpush.xpose.msra.mxu0 0.0
    %2199 = vmatpush.xpose.msra.mxu0 0.0
    %2200 = vmatpush.xpose.msra.mxu0 0.0
    %2201 = vmatpush.xpose.msra.mxu0 0.0
    %2202 = vmatpush.xpose.msra.mxu0 0.0
    %2203 = vmatpush.xpose.msra.mxu0 0.0
    %2204 = vmatpush.xpose.msra.mxu0 0.0
    %2205 = vmatpush.xpose.msra.mxu0 0.0
    %2206 = vmatpush.xpose.msra.mxu0 0.0
    %2207 = vmatpush.xpose.msra.mxu0 0.0
    %2208 = vmatpush.xpose.msra.mxu0 0.0
    %2209 = vmatpush.xpose.msra.mxu0 0.0
    %2210 = vmatpush.xpose.msra.mxu0 0.0
    %2211 = vmatpush.xpose.msra.mxu0 0.0
    %2212 = vmatpush.xpose.msra.mxu0 %v2196
    %2213 = vmatpush.xpose.msra.mxu0 %v2194
    %2214 = vmatmul.f32.gmra.mxu0 %v2190
    %v2215 = vpop.f32.mrf.mxu0
    %v2216 = vadd.f32 0.0, %v2215
    %2217 = vmatmul.f32.gmra.mxu0 %v2192
    %v2218 = vpop.f32.mrf.mxu0
    %v2219 = vadd.f32 0.0, %v2218
    %2220 = vdwg.mxu0
    %2221 = vst [vmem:[#allocation1] ss:$2 sm:$0xff] %v221
    %s2222 = scalar_lea.vmem [#allocation1], 1
    %2223 = vst [vmem:[%s2222] ss:$2 sm:$0xff] %v203
    %s2224 = scalar_lea.vmem [#allocation1], 16
    %2225 = vst [vmem:[%s2224] ss:$2 sm:$0xff] %v222
    %v2226 = vld.sshfl [vmem:[#allocation1] sm:$0xff pattern:$0x75316420]
    %v2227 = vld.sshfl [vmem:[#allocation1 + $0x10] sm:$0xff pattern:$0x75316420]
    %2228 = vrot.lane.b32.xlu0 %v2226, 112
    %v2229 = vpop.permute.xlu0 %2228
    %2230 = vrot.lane.b32.xlu0 %v2227, 112
    %v2231 = vpop.permute.xlu0 %2230
    %2232 = vst [vmem:[#allocation1] ss:$2 sm:$0xff] %v221
    %s2233 = scalar_lea.vmem [#allocation1], 1
    %2234 = vst [vmem:[%s2233] ss:$2 sm:$0xff] %v203
    %s2235 = scalar_lea.vmem [#allocation1], 16
    %2236 = vst [vmem:[%s2235] ss:$2 sm:$0xff] %v222
    %v2237 = vld.sshfl [vmem:[#allocation1] sm:$0xff pattern:$0x75316420]
    %v2238 = vld.sshfl [vmem:[#allocation1 + $0x10] sm:$0xff pattern:$0x75316420]
    %2239 = vrot.lane.b32.xlu0 %v2237, 80
    %v2240 = vpop.permute.xlu0 %2239
    %2241 = vrot.lane.b32.xlu0 %v2238, 80
    %v2242 = vpop.permute.xlu0 %2241
    %v2243 = vsel %vm241, %v2229, 0
    %v2245 = vsel %vm241, %v2231, 0
    %v2247 = vsel %vm241, %v2240, 0
    %v2249 = vsel %vm241, %v2242, 0
    %2251 = vmatpush.xpose.msra.mxu0 0.0
    %2252 = vmatpush.xpose.msra.mxu0 0.0
    %2253 = vmatpush.xpose.msra.mxu0 0.0
    %2254 = vmatpush.xpose.msra.mxu0 0.0
    %2255 = vmatpush.xpose.msra.mxu0 0.0
    %2256 = vmatpush.xpose.msra.mxu0 0.0
    %2257 = vmatpush.xpose.msra.mxu0 0.0
    %2258 = vmatpush.xpose.msra.mxu0 0.0
    %2259 = vmatpush.xpose.msra.mxu0 0.0
    %2260 = vmatpush.xpose.msra.mxu0 0.0
    %2261 = vmatpush.xpose.msra.mxu0 0.0
    %2262 = vmatpush.xpose.msra.mxu0 0.0
    %2263 = vmatpush.xpose.msra.mxu0 0.0
    %2264 = vmatpush.xpose.msra.mxu0 0.0
    %2265 = vmatpush.xpose.msra.mxu0 %v2249
    %2266 = vmatpush.xpose.msra.mxu0 %v2247
    %2267 = vmatmul.f32.gmra.mxu0 %v2243
    %v2268 = vpop.f32.mrf.mxu0
    %v2269 = vadd.f32 0.0, %v2268
    %2270 = vmatmul.f32.gmra.mxu0 %v2245
    %v2271 = vpop.f32.mrf.mxu0
    %v2272 = vadd.f32 0.0, %v2271
    %2273 = vdwg.mxu0
    %v2274 = vsel %vm518, %v2004, -inf
    %2275 = vmax.xlane.f32.xlu0 %v2274
    %v2276 = vpop.xlane.xlu0 %2275
    %v2277 = vsel %vm522, %v2007, -inf
    %2278 = vmax.xlane.f32.xlu0 %v2277
    %v2279 = vpop.xlane.xlu0 %2278
    %v2280 = vsel %vm518, %v2057, -inf
    %2281 = vmax.xlane.f32.xlu0 %v2280
    %v2282 = vpop.xlane.xlu0 %2281
    %v2283 = vsel %vm522, %v2060, -inf
    %2284 = vmax.xlane.f32.xlu0 %v2283
    %v2285 = vpop.xlane.xlu0 %2284
    %v2286 = vsel %vm518, %v2110, -inf
    %2287 = vmax.xlane.f32.xlu0 %v2286
    %v2288 = vpop.xlane.xlu0 %2287
    %v2289 = vsel %vm522, %v2113, -inf
    %2290 = vmax.xlane.f32.xlu0 %v2289
    %v2291 = vpop.xlane.xlu0 %2290
    %v2292 = vsel %vm518, %v2163, -inf
    %2293 = vmax.xlane.f32.xlu0 %v2292
    %v2294 = vpop.xlane.xlu0 %2293
    %v2295 = vsel %vm522, %v2166, -inf
    %2296 = vmax.xlane.f32.xlu0 %v2295
    %v2297 = vpop.xlane.xlu0 %2296
    %v2298 = vsel %vm518, %v2216, -inf
    %2299 = vmax.xlane.f32.xlu0 %v2298
    %v2300 = vpop.xlane.xlu0 %2299
    %v2301 = vsel %vm522, %v2219, -inf
    %2302 = vmax.xlane.f32.xlu0 %v2301
    %v2303 = vpop.xlane.xlu0 %2302
    %v2304 = vsel %vm518, %v2269, -inf
    %2305 = vmax.xlane.f32.xlu0 %v2304
    %v2306 = vpop.xlane.xlu0 %2305
    %v2307 = vsel %vm522, %v2272, -inf
    %2308 = vmax.xlane.f32.xlu0 %v2307
    %v2309 = vpop.xlane.xlu0 %2308
    %v2310 = vsub.f32 %v2004, %v2276
    %v2311 = vsub.f32 %v2007, %v2279
    %v2312 = vsub.f32 %v2057, %v2282
    %v2313 = vsub.f32 %v2060, %v2285
    %v2314 = vsub.f32 %v2110, %v2288
    %v2315 = vsub.f32 %v2113, %v2291
    %v2316 = vsub.f32 %v2163, %v2294
    %v2317 = vsub.f32 %v2166, %v2297
    %v2318 = vsub.f32 %v2216, %v2300
    %v2319 = vsub.f32 %v2219, %v2303
    %v2320 = vsub.f32 %v2269, %v2306
    %v2321 = vsub.f32 %v2272, %v2309
    %v2322 = vmul.f32 %v2310, 1.442695
    %v2323 = vpow.pop %v2322
    %v2324 = vmul.f32 %v2311, 1.442695
    %v2325 = vpow.pop %v2324
    %v2326 = vmul.f32 %v2312, 1.442695
    %v2327 = vpow.pop %v2326
    %v2328 = vmul.f32 %v2313, 1.442695
    %v2329 = vpow.pop %v2328
    %v2330 = vmul.f32 %v2314, 1.442695
    %v2331 = vpow.pop %v2330
    %v2332 = vmul.f32 %v2315, 1.442695
    %v2333 = vpow.pop %v2332
    %v2334 = vmul.f32 %v2316, 1.442695
    %v2335 = vpow.pop %v2334
    %v2336 = vmul.f32 %v2317, 1.442695
    %v2337 = vpow.pop %v2336
    %v2338 = vmul.f32 %v2318, 1.442695
    %v2339 = vpow.pop %v2338
    %v2340 = vmul.f32 %v2319, 1.442695
    %v2341 = vpow.pop %v2340
    %v2342 = vmul.f32 %v2320, 1.442695
    %v2343 = vpow.pop %v2342
    %v2344 = vmul.f32 %v2321, 1.442695
    %v2345 = vpow.pop %v2344
    %v2346 = vsel %vm518, %v2323, 0.0
    %2347 = vadd.xlane.f32.xlu0 %v2346
    %v2348 = vpop.xlane.xlu0 %2347
    %v2349 = vsel %vm522, %v2325, 0.0
    %2350 = vadd.xlane.f32.xlu0 %v2349
    %v2351 = vpop.xlane.xlu0 %2350
    %v2352 = vsel %vm518, %v2327, 0.0
    %2353 = vadd.xlane.f32.xlu0 %v2352
    %v2354 = vpop.xlane.xlu0 %2353
    %v2355 = vsel %vm522, %v2329, 0.0
    %2356 = vadd.xlane.f32.xlu0 %v2355
    %v2357 = vpop.xlane.xlu0 %2356
    %v2358 = vsel %vm518, %v2331, 0.0
    %2359 = vadd.xlane.f32.xlu0 %v2358
    %v2360 = vpop.xlane.xlu0 %2359
    %v2361 = vsel %vm522, %v2333, 0.0
    %2362 = vadd.xlane.f32.xlu0 %v2361
    %v2363 = vpop.xlane.xlu0 %2362
    %v2364 = vsel %vm518, %v2335, 0.0
    %2365 = vadd.xlane.f32.xlu0 %v2364
    %v2366 = vpop.xlane.xlu0 %2365
    %v2367 = vsel %vm522, %v2337, 0.0
    %2368 = vadd.xlane.f32.xlu0 %v2367
    %v2369 = vpop.xlane.xlu0 %2368
    %v2370 = vsel %vm518, %v2339, 0.0
    %2371 = vadd.xlane.f32.xlu0 %v2370
    %v2372 = vpop.xlane.xlu0 %2371
    %v2373 = vsel %vm522, %v2341, 0.0
    %2374 = vadd.xlane.f32.xlu0 %v2373
    %v2375 = vpop.xlane.xlu0 %2374
    %v2376 = vsel %vm518, %v2343, 0.0
    %2377 = vadd.xlane.f32.xlu0 %v2376
    %v2378 = vpop.xlane.xlu0 %2377
    %v2379 = vsel %vm522, %v2345, 0.0
    %2380 = vadd.xlane.f32.xlu0 %v2379
    %v2381 = vpop.xlane.xlu0 %2380
    %v2382 = vrcp.pop %v2348
    %v2383 = vmul.f32 %v2348, %v2382
    %v2384 = vsub.f32 1.0, %v2383
    %v2385 = vmul.f32 %v2382, %v2384
    %v2386 = vadd.f32 %v2382, %v2385
    %vm2387 = vweird.f32 %v2348
    %vm2388 = vweird.f32 %v2382
    %vm2389 = vmor %vm2387, %vm2388
    %v2390 = vsel %vm2389, %v2382, %v2386
    %v2391 = vand.u32 2147483647, %v2348
    %vm2392 = vcmp.eq.f32.partialorder %v2391, 8.507059e+37
    %v2393 = vand.u32 %v2348, 2147483648
    %v2394 = vor.u32 1.1754944e-38, %v2393
    %v2395 = vsel %vm2392, %v2394, %v2390
    %v2396 = vrcp.pop %v2351
    %v2397 = vmul.f32 %v2351, %v2396
    %v2398 = vsub.f32 1.0, %v2397
    %v2399 = vmul.f32 %v2396, %v2398
    %v2400 = vadd.f32 %v2396, %v2399
    %vm2401 = vweird.f32 %v2351
    %vm2402 = vweird.f32 %v2396
    %vm2403 = vmor %vm2401, %vm2402
    %v2404 = vsel %vm2403, %v2396, %v2400
    %v2405 = vand.u32 2147483647, %v2351
    %vm2406 = vcmp.eq.f32.partialorder %v2405, 8.507059e+37
    %v2407 = vand.u32 %v2351, 2147483648
    %v2408 = vor.u32 1.1754944e-38, %v2407
    %v2409 = vsel %vm2406, %v2408, %v2404
    %v2410 = vrcp.pop %v2354
    %v2411 = vmul.f32 %v2354, %v2410
    %v2412 = vsub.f32 1.0, %v2411
    %v2413 = vmul.f32 %v2410, %v2412
    %v2414 = vadd.f32 %v2410, %v2413
    %vm2415 = vweird.f32 %v2354
    %vm2416 = vweird.f32 %v2410
    %vm2417 = vmor %vm2415, %vm2416
    %v2418 = vsel %vm2417, %v2410, %v2414
    %v2419 = vand.u32 2147483647, %v2354
    %vm2420 = vcmp.eq.f32.partialorder %v2419, 8.507059e+37
    %v2421 = vand.u32 %v2354, 2147483648
    %v2422 = vor.u32 1.1754944e-38, %v2421
    %v2423 = vsel %vm2420, %v2422, %v2418
    %v2424 = vrcp.pop %v2357
    %v2425 = vmul.f32 %v2357, %v2424
    %v2426 = vsub.f32 1.0, %v2425
    %v2427 = vmul.f32 %v2424, %v2426
    %v2428 = vadd.f32 %v2424, %v2427
    %vm2429 = vweird.f32 %v2357
    %vm2430 = vweird.f32 %v2424
    %vm2431 = vmor %vm2429, %vm2430
    %v2432 = vsel %vm2431, %v2424, %v2428
    %v2433 = vand.u32 2147483647, %v2357
    %vm2434 = vcmp.eq.f32.partialorder %v2433, 8.507059e+37
    %v2435 = vand.u32 %v2357, 2147483648
    %v2436 = vor.u32 1.1754944e-38, %v2435
    %v2437 = vsel %vm2434, %v2436, %v2432
    %v2438 = vrcp.pop %v2360
    %v2439 = vmul.f32 %v2360, %v2438
    %v2440 = vsub.f32 1.0, %v2439
    %v2441 = vmul.f32 %v2438, %v2440
    %v2442 = vadd.f32 %v2438, %v2441
    %vm2443 = vweird.f32 %v2360
    %vm2444 = vweird.f32 %v2438
    %vm2445 = vmor %vm2443, %vm2444
    %v2446 = vsel %vm2445, %v2438, %v2442
    %v2447 = vand.u32 2147483647, %v2360
    %vm2448 = vcmp.eq.f32.partialorder %v2447, 8.507059e+37
    %v2449 = vand.u32 %v2360, 2147483648
    %v2450 = vor.u32 1.1754944e-38, %v2449
    %v2451 = vsel %vm2448, %v2450, %v2446
    %v2452 = vrcp.pop %v2363
    %v2453 = vmul.f32 %v2363, %v2452
    %v2454 = vsub.f32 1.0, %v2453
    %v2455 = vmul.f32 %v2452, %v2454
    %v2456 = vadd.f32 %v2452, %v2455
    %vm2457 = vweird.f32 %v2363
    %vm2458 = vweird.f32 %v2452
    %vm2459 = vmor %vm2457, %vm2458
    %v2460 = vsel %vm2459, %v2452, %v2456
    %v2461 = vand.u32 2147483647, %v2363
    %vm2462 = vcmp.eq.f32.partialorder %v2461, 8.507059e+37
    %v2463 = vand.u32 %v2363, 2147483648
    %v2464 = vor.u32 1.1754944e-38, %v2463
    %v2465 = vsel %vm2462, %v2464, %v2460
    %v2466 = vrcp.pop %v2366
    %v2467 = vmul.f32 %v2366, %v2466
    %v2468 = vsub.f32 1.0, %v2467
    %v2469 = vmul.f32 %v2466, %v2468
    %v2470 = vadd.f32 %v2466, %v2469
    %vm2471 = vweird.f32 %v2366
    %vm2472 = vweird.f32 %v2466
    %vm2473 = vmor %vm2471, %vm2472
    %v2474 = vsel %vm2473, %v2466, %v2470
    %v2475 = vand.u32 2147483647, %v2366
    %vm2476 = vcmp.eq.f32.partialorder %v2475, 8.507059e+37
    %v2477 = vand.u32 %v2366, 2147483648
    %v2478 = vor.u32 1.1754944e-38, %v2477
    %v2479 = vsel %vm2476, %v2478, %v2474
    %v2480 = vrcp.pop %v2369
    %v2481 = vmul.f32 %v2369, %v2480
    %v2482 = vsub.f32 1.0, %v2481
    %v2483 = vmul.f32 %v2480, %v2482
    %v2484 = vadd.f32 %v2480, %v2483
    %vm2485 = vweird.f32 %v2369
    %vm2486 = vweird.f32 %v2480
    %vm2487 = vmor %vm2485, %vm2486
    %v2488 = vsel %vm2487, %v2480, %v2484
    %v2489 = vand.u32 2147483647, %v2369
    %vm2490 = vcmp.eq.f32.partialorder %v2489, 8.507059e+37
    %v2491 = vand.u32 %v2369, 2147483648
    %v2492 = vor.u32 1.1754944e-38, %v2491
    %v2493 = vsel %vm2490, %v2492, %v2488
    %v2494 = vrcp.pop %v2372
    %v2495 = vmul.f32 %v2372, %v2494
    %v2496 = vsub.f32 1.0, %v2495
    %v2497 = vmul.f32 %v2494, %v2496
    %v2498 = vadd.f32 %v2494, %v2497
    %vm2499 = vweird.f32 %v2372
    %vm2500 = vweird.f32 %v2494
    %vm2501 = vmor %vm2499, %vm2500
    %v2502 = vsel %vm2501, %v2494, %v2498
    %v2503 = vand.u32 2147483647, %v2372
    %vm2504 = vcmp.eq.f32.partialorder %v2503, 8.507059e+37
    %v2505 = vand.u32 %v2372, 2147483648
    %v2506 = vor.u32 1.1754944e-38, %v2505
    %v2507 = vsel %vm2504, %v2506, %v2502
    %v2508 = vrcp.pop %v2375
    %v2509 = vmul.f32 %v2375, %v2508
    %v2510 = vsub.f32 1.0, %v2509
    %v2511 = vmul.f32 %v2508, %v2510
    %v2512 = vadd.f32 %v2508, %v2511
    %vm2513 = vweird.f32 %v2375
    %vm2514 = vweird.f32 %v2508
    %vm2515 = vmor %vm2513, %vm2514
    %v2516 = vsel %vm2515, %v2508, %v2512
    %v2517 = vand.u32 2147483647, %v2375
    %vm2518 = vcmp.eq.f32.partialorder %v2517, 8.507059e+37
    %v2519 = vand.u32 %v2375, 2147483648
    %v2520 = vor.u32 1.1754944e-38, %v2519
    %v2521 = vsel %vm2518, %v2520, %v2516
    %v2522 = vrcp.pop %v2378
    %v2523 = vmul.f32 %v2378, %v2522
    %v2524 = vsub.f32 1.0, %v2523
    %v2525 = vmul.f32 %v2522, %v2524
    %v2526 = vadd.f32 %v2522, %v2525
    %vm2527 = vweird.f32 %v2378
    %vm2528 = vweird.f32 %v2522
    %vm2529 = vmor %vm2527, %vm2528
    %v2530 = vsel %vm2529, %v2522, %v2526
    %v2531 = vand.u32 2147483647, %v2378
    %vm2532 = vcmp.eq.f32.partialorder %v2531, 8.507059e+37
    %v2533 = vand.u32 %v2378, 2147483648
    %v2534 = vor.u32 1.1754944e-38, %v2533
    %v2535 = vsel %vm2532, %v2534, %v2530
    %v2536 = vrcp.pop %v2381
    %v2537 = vmul.f32 %v2381, %v2536
    %v2538 = vsub.f32 1.0, %v2537
    %v2539 = vmul.f32 %v2536, %v2538
    %v2540 = vadd.f32 %v2536, %v2539
    %vm2541 = vweird.f32 %v2381
    %vm2542 = vweird.f32 %v2536
    %vm2543 = vmor %vm2541, %vm2542
    %v2544 = vsel %vm2543, %v2536, %v2540
    %v2545 = vand.u32 2147483647, %v2381
    %vm2546 = vcmp.eq.f32.partialorder %v2545, 8.507059e+37
    %v2547 = vand.u32 %v2381, 2147483648
    %v2548 = vor.u32 1.1754944e-38, %v2547
    %v2549 = vsel %vm2546, %v2548, %v2544
    %v2550 = vmul.f32 %v2323, %v2395
    %v2551 = vmul.f32 %v2325, %v2409
    %v2552 = vmul.f32 %v2327, %v2423
    %v2553 = vmul.f32 %v2329, %v2437
    %v2554 = vmul.f32 %v2331, %v2451
    %v2555 = vmul.f32 %v2333, %v2465
    %v2556 = vmul.f32 %v2335, %v2479
    %v2557 = vmul.f32 %v2337, %v2493
    %v2558 = vmul.f32 %v2339, %v2507
    %v2559 = vmul.f32 %v2341, %v2521
    %v2560 = vmul.f32 %v2343, %v2535
    %v2561 = vmul.f32 %v2345, %v2549
    %s2562 = scalar_lea.vmem %s6, 192
    %2563 = vst.msk [vmem:[%s2562] sm:$0xff] %vm518, %v2550
    %2564 = vst.msk [vmem:[%s2562 + $0x8] sm:$0xf] %vm522, %v2551
    %2565 = vst.msk [vmem:[%s2562 + $0x10] sm:$0xff] %vm518, %v2552
    %2566 = vst.msk [vmem:[%s2562 + $0x18] sm:$0xf] %vm522, %v2553
    %2567 = vst.msk [vmem:[%s2562 + $0x20] sm:$0xff] %vm518, %v2554
    %2568 = vst.msk [vmem:[%s2562 + $0x28] sm:$0xf] %vm522, %v2555
    %2569 = vst.msk [vmem:[%s2562 + $0x30] sm:$0xff] %vm518, %v2556
    %2570 = vst.msk [vmem:[%s2562 + $0x38] sm:$0xf] %vm522, %v2557
    %2571 = vst.msk [vmem:[%s2562 + $0x40] sm:$0xff] %vm518, %v2558
    %2572 = vst.msk [vmem:[%s2562 + $0x48] sm:$0xf] %vm522, %v2559
    %2573 = vst.msk [vmem:[%s2562 + $0x50] sm:$0xff] %vm518, %v2560
    %2574 = vst.msk [vmem:[%s2562 + $0x58] sm:$0xf] %vm522, %v2561
    %2575 = vst [vmem:[#allocation1] ss:$2 sm:$0xff] %v179
    %s2576 = scalar_lea.vmem [#allocation1], 1
    %2577 = vst [vmem:[%s2576] ss:$2 sm:$0xff] %v214
    %s2578 = scalar_lea.vmem [#allocation1], 16
    %2579 = vst [vmem:[%s2578] ss:$2 sm:$0xff] %v182
    %v2580 = vld.sshfl [vmem:[#allocation1] sm:$0xff pattern:$0x75316420]
    %v2581 = vld.sshfl [vmem:[#allocation1 + $0x10] sm:$0xff pattern:$0x75316420]
    %2582 = vrot.lane.b32.xlu0 %v2580, 48
    %v2583 = vpop.permute.xlu0 %2582
    %2584 = vrot.lane.b32.xlu0 %v2581, 48
    %v2585 = vpop.permute.xlu0 %2584
    %v2588 = vsel %vm518, %v2550, 0
    %v2591 = vsel %vm518, %v2551, 0
    %v2593 = vsel %vm838, %v2585, 0
    %2595 = vmatpush.msra.mxu0 0.0
    %2596 = vmatpush.msra.mxu0 0.0
    %2597 = vmatpush.msra.mxu0 0.0
    %2598 = vmatpush.msra.mxu0 0.0
    %2599 = vmatpush.msra.mxu0 0.0
    %2600 = vmatpush.msra.mxu0 0.0
    %2601 = vmatpush.msra.mxu0 0.0
    %2602 = vmatpush.msra.mxu0 0.0
    %2603 = vmatpush.msra.mxu0 0.0
    %2604 = vmatpush.msra.mxu0 0.0
    %2605 = vmatpush.msra.mxu0 0.0
    %2606 = vmatpush.msra.mxu0 0.0
    %2607 = vmatpush.msra.mxu0 0.0
    %2608 = vmatpush.msra.mxu0 0.0
    %2609 = vmatpush.msra.mxu0 %v2593
    %2610 = vmatpush.msra.mxu0 %v2583
    %2611 = vmatmul.f32.gmra.mxu0 %v2588
    %v2612 = vpop.f32.mrf.mxu0
    %v2613 = vadd.f32 0.0, %v2612
    %2614 = vmatmul.f32.gmra.mxu0 %v2591
    %v2615 = vpop.f32.mrf.mxu0
    %v2616 = vadd.f32 0.0, %v2615
    %2617 = vdwg.mxu0
    %2618 = vst [vmem:[#allocation1] ss:$2 sm:$0xff] %v215
    %s2619 = scalar_lea.vmem [#allocation1], 1
    %2620 = vst [vmem:[%s2619] ss:$2 sm:$0xff] %v185
    %s2621 = scalar_lea.vmem [#allocation1], 16
    %2622 = vst [vmem:[%s2621] ss:$2 sm:$0xff] %v216
    %v2623 = vld.sshfl [vmem:[#allocation1] sm:$0xff pattern:$0x75316420]
    %v2624 = vld.sshfl [vmem:[#allocation1 + $0x10] sm:$0xff pattern:$0x75316420]
    %2625 = vrot.lane.b32.xlu0 %v2623, 48
    %v2626 = vpop.permute.xlu0 %2625
    %2627 = vrot.lane.b32.xlu0 %v2624, 48
    %v2628 = vpop.permute.xlu0 %2627
    %v2631 = vsel %vm518, %v2552, 0
    %v2634 = vsel %vm518, %v2553, 0
    %v2636 = vsel %vm838, %v2628, 0
    %2638 = vmatpush.msra.mxu0 0.0
    %2639 = vmatpush.msra.mxu0 0.0
    %2640 = vmatpush.msra.mxu0 0.0
    %2641 = vmatpush.msra.mxu0 0.0
    %2642 = vmatpush.msra.mxu0 0.0
    %2643 = vmatpush.msra.mxu0 0.0
    %2644 = vmatpush.msra.mxu0 0.0
    %2645 = vmatpush.msra.mxu0 0.0
    %2646 = vmatpush.msra.mxu0 0.0
    %2647 = vmatpush.msra.mxu0 0.0
    %2648 = vmatpush.msra.mxu0 0.0
    %2649 = vmatpush.msra.mxu0 0.0
    %2650 = vmatpush.msra.mxu0 0.0
    %2651 = vmatpush.msra.mxu0 0.0
    %2652 = vmatpush.msra.mxu0 %v2636
    %2653 = vmatpush.msra.mxu0 %v2626
    %2654 = vmatmul.f32.gmra.mxu0 %v2631
    %v2655 = vpop.f32.mrf.mxu0
    %v2656 = vadd.f32 0.0, %v2655
    %2657 = vmatmul.f32.gmra.mxu0 %v2634
    %v2658 = vpop.f32.mrf.mxu0
    %v2659 = vadd.f32 0.0, %v2658
    %2660 = vdwg.mxu0
    %2661 = vst [vmem:[#allocation1] ss:$2 sm:$0xff] %v188
    %s2662 = scalar_lea.vmem [#allocation1], 1
    %2663 = vst [vmem:[%s2662] ss:$2 sm:$0xff] %v217
    %s2664 = scalar_lea.vmem [#allocation1], 16
    %2665 = vst [vmem:[%s2664] ss:$2 sm:$0xff] %v191
    %v2666 = vld.sshfl [vmem:[#allocation1] sm:$0xff pattern:$0x75316420]
    %v2667 = vld.sshfl [vmem:[#allocation1 + $0x10] sm:$0xff pattern:$0x75316420]
    %2668 = vrot.lane.b32.xlu0 %v2666, 48
    %v2669 = vpop.permute.xlu0 %2668
    %2670 = vrot.lane.b32.xlu0 %v2667, 48
    %v2671 = vpop.permute.xlu0 %2670
    %v2674 = vsel %vm518, %v2554, 0
    %v2677 = vsel %vm518, %v2555, 0
    %v2679 = vsel %vm838, %v2671, 0
    %2681 = vmatpush.msra.mxu0 0.0
    %2682 = vmatpush.msra.mxu0 0.0
    %2683 = vmatpush.msra.mxu0 0.0
    %2684 = vmatpush.msra.mxu0 0.0
    %2685 = vmatpush.msra.mxu0 0.0
    %2686 = vmatpush.msra.mxu0 0.0
    %2687 = vmatpush.msra.mxu0 0.0
    %2688 = vmatpush.msra.mxu0 0.0
    %2689 = vmatpush.msra.mxu0 0.0
    %2690 = vmatpush.msra.mxu0 0.0
    %2691 = vmatpush.msra.mxu0 0.0
    %2692 = vmatpush.msra.mxu0 0.0
    %2693 = vmatpush.msra.mxu0 0.0
    %2694 = vmatpush.msra.mxu0 0.0
    %2695 = vmatpush.msra.mxu0 %v2679
    %2696 = vmatpush.msra.mxu0 %v2669
    %2697 = vmatmul.f32.gmra.mxu0 %v2674
    %v2698 = vpop.f32.mrf.mxu0
    %v2699 = vadd.f32 0.0, %v2698
    %2700 = vmatmul.f32.gmra.mxu0 %v2677
    %v2701 = vpop.f32.mrf.mxu0
    %v2702 = vadd.f32 0.0, %v2701
    %2703 = vdwg.mxu0
    %2704 = vst [vmem:[#allocation1] ss:$2 sm:$0xff] %v218
    %s2705 = scalar_lea.vmem [#allocation1], 1
    %2706 = vst [vmem:[%s2705] ss:$2 sm:$0xff] %v194
    %s2707 = scalar_lea.vmem [#allocation1], 16
    %2708 = vst [vmem:[%s2707] ss:$2 sm:$0xff] %v219
    %v2709 = vld.sshfl [vmem:[#allocation1] sm:$0xff pattern:$0x75316420]
    %v2710 = vld.sshfl [vmem:[#allocation1 + $0x10] sm:$0xff pattern:$0x75316420]
    %2711 = vrot.lane.b32.xlu0 %v2709, 48
    %v2712 = vpop.permute.xlu0 %2711
    %2713 = vrot.lane.b32.xlu0 %v2710, 48
    %v2714 = vpop.permute.xlu0 %2713
    %v2717 = vsel %vm518, %v2556, 0
    %v2720 = vsel %vm518, %v2557, 0
    %v2722 = vsel %vm838, %v2714, 0
    %2724 = vmatpush.msra.mxu0 0.0
    %2725 = vmatpush.msra.mxu0 0.0
    %2726 = vmatpush.msra.mxu0 0.0
    %2727 = vmatpush.msra.mxu0 0.0
    %2728 = vmatpush.msra.mxu0 0.0
    %2729 = vmatpush.msra.mxu0 0.0
    %2730 = vmatpush.msra.mxu0 0.0
    %2731 = vmatpush.msra.mxu0 0.0
    %2732 = vmatpush.msra.mxu0 0.0
    %2733 = vmatpush.msra.mxu0 0.0
    %2734 = vmatpush.msra.mxu0 0.0
    %2735 = vmatpush.msra.mxu0 0.0
    %2736 = vmatpush.msra.mxu0 0.0
    %2737 = vmatpush.msra.mxu0 0.0
    %2738 = vmatpush.msra.mxu0 %v2722
    %2739 = vmatpush.msra.mxu0 %v2712
    %2740 = vmatmul.f32.gmra.mxu0 %v2717
    %v2741 = vpop.f32.mrf.mxu0
    %v2742 = vadd.f32 0.0, %v2741
    %2743 = vmatmul.f32.gmra.mxu0 %v2720
    %v2744 = vpop.f32.mrf.mxu0
    %v2745 = vadd.f32 0.0, %v2744
    %2746 = vdwg.mxu0
    %2747 = vst [vmem:[#allocation1] ss:$2 sm:$0xff] %v197
    %s2748 = scalar_lea.vmem [#allocation1], 1
    %2749 = vst [vmem:[%s2748] ss:$2 sm:$0xff] %v220
    %s2750 = scalar_lea.vmem [#allocation1], 16
    %2751 = vst [vmem:[%s2750] ss:$2 sm:$0xff] %v200
    %v2752 = vld.sshfl [vmem:[#allocation1] sm:$0xff pattern:$0x75316420]
    %v2753 = vld.sshfl [vmem:[#allocation1 + $0x10] sm:$0xff pattern:$0x75316420]
    %2754 = vrot.lane.b32.xlu0 %v2752, 48
    %v2755 = vpop.permute.xlu0 %2754
    %2756 = vrot.lane.b32.xlu0 %v2753, 48
    %v2757 = vpop.permute.xlu0 %2756
    %v2760 = vsel %vm518, %v2558, 0
    %v2763 = vsel %vm518, %v2559, 0
    %v2765 = vsel %vm838, %v2757, 0
    %2767 = vmatpush.msra.mxu0 0.0
    %2768 = vmatpush.msra.mxu0 0.0
    %2769 = vmatpush.msra.mxu0 0.0
    %2770 = vmatpush.msra.mxu0 0.0
    %2771 = vmatpush.msra.mxu0 0.0
    %2772 = vmatpush.msra.mxu0 0.0
    %2773 = vmatpush.msra.mxu0 0.0
    %2774 = vmatpush.msra.mxu0 0.0
    %2775 = vmatpush.msra.mxu0 0.0
    %2776 = vmatpush.msra.mxu0 0.0
    %2777 = vmatpush.msra.mxu0 0.0
    %2778 = vmatpush.msra.mxu0 0.0
    %2779 = vmatpush.msra.mxu0 0.0
    %2780 = vmatpush.msra.mxu0 0.0
    %2781 = vmatpush.msra.mxu0 %v2765
    %2782 = vmatpush.msra.mxu0 %v2755
    %2783 = vmatmul.f32.gmra.mxu0 %v2760
    %v2784 = vpop.f32.mrf.mxu0
    %v2785 = vadd.f32 0.0, %v2784
    %2786 = vmatmul.f32.gmra.mxu0 %v2763
    %v2787 = vpop.f32.mrf.mxu0
    %v2788 = vadd.f32 0.0, %v2787
    %2789 = vdwg.mxu0
    %2790 = vst [vmem:[#allocation1] ss:$2 sm:$0xff] %v221
    %s2791 = scalar_lea.vmem [#allocation1], 1
    %2792 = vst [vmem:[%s2791] ss:$2 sm:$0xff] %v203
    %s2793 = scalar_lea.vmem [#allocation1], 16
    %2794 = vst [vmem:[%s2793] ss:$2 sm:$0xff] %v222
    %v2795 = vld.sshfl [vmem:[#allocation1] sm:$0xff pattern:$0x75316420]
    %v2796 = vld.sshfl [vmem:[#allocation1 + $0x10] sm:$0xff pattern:$0x75316420]
    %2797 = vrot.lane.b32.xlu0 %v2795, 48
    %v2798 = vpop.permute.xlu0 %2797
    %2799 = vrot.lane.b32.xlu0 %v2796, 48
    %v2800 = vpop.permute.xlu0 %2799
    %v2803 = vsel %vm518, %v2560, 0
    %v2806 = vsel %vm518, %v2561, 0
    %v2808 = vsel %vm838, %v2800, 0
    %2810 = vmatpush.msra.mxu0 0.0
    %2811 = vmatpush.msra.mxu0 0.0
    %2812 = vmatpush.msra.mxu0 0.0
    %2813 = vmatpush.msra.mxu0 0.0
    %2814 = vmatpush.msra.mxu0 0.0
    %2815 = vmatpush.msra.mxu0 0.0
    %2816 = vmatpush.msra.mxu0 0.0
    %2817 = vmatpush.msra.mxu0 0.0
    %2818 = vmatpush.msra.mxu0 0.0
    %2819 = vmatpush.msra.mxu0 0.0
    %2820 = vmatpush.msra.mxu0 0.0
    %2821 = vmatpush.msra.mxu0 0.0
    %2822 = vmatpush.msra.mxu0 0.0
    %2823 = vmatpush.msra.mxu0 0.0
    %2824 = vmatpush.msra.mxu0 %v2808
    %2825 = vmatpush.msra.mxu0 %v2798
    %2826 = vmatmul.f32.gmra.mxu0 %v2803
    %v2827 = vpop.f32.mrf.mxu0
    %v2828 = vadd.f32 0.0, %v2827
    %2829 = vmatmul.f32.gmra.mxu0 %v2806
    %v2830 = vpop.f32.mrf.mxu0
    %v2831 = vadd.f32 0.0, %v2830
    %2832 = vdwg.mxu0
    %2833 = vst [vmem:[#allocation1] ss:$2 sm:$0xff] %v179
    %s2834 = scalar_lea.vmem [#allocation1], 1
    %2835 = vst [vmem:[%s2834] ss:$2 sm:$0xff] %v214
    %s2836 = scalar_lea.vmem [#allocation1], 16
    %2837 = vst [vmem:[%s2836] ss:$2 sm:$0xff] %v182
    %v2838 = vld.sshfl [vmem:[#allocation1] sm:$0xff pattern:$0x75316420]
    %v2839 = vld.sshfl [vmem:[#allocation1 + $0x10] sm:$0xff pattern:$0x75316420]
    %2840 = vrot.lane.b32.xlu0 %v2838, 104
    %v2841 = vpop.permute.xlu0 %2840
    %2842 = vrot.lane.b32.xlu0 %v2839, 104
    %v2843 = vpop.permute.xlu0 %2842
    %2844 = vst [vmem:[#allocation1] ss:$2 sm:$0xff] %v179
    %s2845 = scalar_lea.vmem [#allocation1], 1
    %2846 = vst [vmem:[%s2845] ss:$2 sm:$0xff] %v214
    %s2847 = scalar_lea.vmem [#allocation1], 16
    %2848 = vst [vmem:[%s2847] ss:$2 sm:$0xff] %v182
    %v2849 = vld.sshfl [vmem:[#allocation1] sm:$0xff pattern:$0x75316420]
    %v2850 = vld.sshfl [vmem:[#allocation1 + $0x10] sm:$0xff pattern:$0x75316420]
    %2851 = vrot.lane.b32.xlu0 %v2849, 72
    %v2852 = vpop.permute.xlu0 %2851
    %2853 = vrot.lane.b32.xlu0 %v2850, 72
    %v2854 = vpop.permute.xlu0 %2853
    %v2855 = vsel %vm241, %v2841, 0
    %v2857 = vsel %vm241, %v2843, 0
    %v2859 = vsel %vm241, %v2852, 0
    %v2861 = vsel %vm241, %v2854, 0
    %2863 = vmatpush.xpose.msra.mxu0 0.0
    %2864 = vmatpush.xpose.msra.mxu0 0.0
    %2865 = vmatpush.xpose.msra.mxu0 0.0
    %2866 = vmatpush.xpose.msra.mxu0 0.0
    %2867 = vmatpush.xpose.msra.mxu0 0.0
    %2868 = vmatpush.xpose.msra.mxu0 0.0
    %2869 = vmatpush.xpose.msra.mxu0 0.0
    %2870 = vmatpush.xpose.msra.mxu0 0.0
    %2871 = vmatpush.xpose.msra.mxu0 0.0
    %2872 = vmatpush.xpose.msra.mxu0 0.0
    %2873 = vmatpush.xpose.msra.mxu0 0.0
    %2874 = vmatpush.xpose.msra.mxu0 0.0
    %2875 = vmatpush.xpose.msra.mxu0 0.0
    %2876 = vmatpush.xpose.msra.mxu0 0.0
    %2877 = vmatpush.xpose.msra.mxu0 %v2861
    %2878 = vmatpush.xpose.msra.mxu0 %v2859
    %2879 = vmatmul.f32.gmra.mxu0 %v2855
    %v2880 = vpop.f32.mrf.mxu0
    %v2881 = vadd.f32 0.0, %v2880
    %2882 = vmatmul.f32.gmra.mxu0 %v2857
    %v2883 = vpop.f32.mrf.mxu0
    %v2884 = vadd.f32 0.0, %v2883
    %2885 = vdwg.mxu0
    %2886 = vst [vmem:[#allocation1] ss:$2 sm:$0xff] %v215
    %s2887 = scalar_lea.vmem [#allocation1], 1
    %2888 = vst [vmem:[%s2887] ss:$2 sm:$0xff] %v185
    %s2889 = scalar_lea.vmem [#allocation1], 16
    %2890 = vst [vmem:[%s2889] ss:$2 sm:$0xff] %v216
    %v2891 = vld.sshfl [vmem:[#allocation1] sm:$0xff pattern:$0x75316420]
    %v2892 = vld.sshfl [vmem:[#allocation1 + $0x10] sm:$0xff pattern:$0x75316420]
    %2893 = vrot.lane.b32.xlu0 %v2891, 104
    %v2894 = vpop.permute.xlu0 %2893
    %2895 = vrot.lane.b32.xlu0 %v2892, 104
    %v2896 = vpop.permute.xlu0 %2895
    %2897 = vst [vmem:[#allocation1] ss:$2 sm:$0xff] %v215
    %s2898 = scalar_lea.vmem [#allocation1], 1
    %2899 = vst [vmem:[%s2898] ss:$2 sm:$0xff] %v185
    %s2900 = scalar_lea.vmem [#allocation1], 16
    %2901 = vst [vmem:[%s2900] ss:$2 sm:$0xff] %v216
    %v2902 = vld.sshfl [vmem:[#allocation1] sm:$0xff pattern:$0x75316420]
    %v2903 = vld.sshfl [vmem:[#allocation1 + $0x10] sm:$0xff pattern:$0x75316420]
    %2904 = vrot.lane.b32.xlu0 %v2902, 72
    %v2905 = vpop.permute.xlu0 %2904
    %2906 = vrot.lane.b32.xlu0 %v2903, 72
    %v2907 = vpop.permute.xlu0 %2906
    %v2908 = vsel %vm241, %v2894, 0
    %v2910 = vsel %vm241, %v2896, 0
    %v2912 = vsel %vm241, %v2905, 0
    %v2914 = vsel %vm241, %v2907, 0
    %2916 = vmatpush.xpose.msra.mxu0 0.0
    %2917 = vmatpush.xpose.msra.mxu0 0.0
    %2918 = vmatpush.xpose.msra.mxu0 0.0
    %2919 = vmatpush.xpose.msra.mxu0 0.0
    %2920 = vmatpush.xpose.msra.mxu0 0.0
    %2921 = vmatpush.xpose.msra.mxu0 0.0
    %2922 = vmatpush.xpose.msra.mxu0 0.0
    %2923 = vmatpush.xpose.msra.mxu0 0.0
    %2924 = vmatpush.xpose.msra.mxu0 0.0
    %2925 = vmatpush.xpose.msra.mxu0 0.0
    %2926 = vmatpush.xpose.msra.mxu0 0.0
    %2927 = vmatpush.xpose.msra.mxu0 0.0
    %2928 = vmatpush.xpose.msra.mxu0 0.0
    %2929 = vmatpush.xpose.msra.mxu0 0.0
    %2930 = vmatpush.xpose.msra.mxu0 %v2914
    %2931 = vmatpush.xpose.msra.mxu0 %v2912
    %2932 = vmatmul.f32.gmra.mxu0 %v2908
    %v2933 = vpop.f32.mrf.mxu0
    %v2934 = vadd.f32 0.0, %v2933
    %2935 = vmatmul.f32.gmra.mxu0 %v2910
    %v2936 = vpop.f32.mrf.mxu0
    %v2937 = vadd.f32 0.0, %v2936
    %2938 = vdwg.mxu0
    %2939 = vst [vmem:[#allocation1] ss:$2 sm:$0xff] %v188
    %s2940 = scalar_lea.vmem [#allocation1], 1
    %2941 = vst [vmem:[%s2940] ss:$2 sm:$0xff] %v217
    %s2942 = scalar_lea.vmem [#allocation1], 16
    %2943 = vst [vmem:[%s2942] ss:$2 sm:$0xff] %v191
    %v2944 = vld.sshfl [vmem:[#allocation1] sm:$0xff pattern:$0x75316420]
    %v2945 = vld.sshfl [vmem:[#allocation1 + $0x10] sm:$0xff pattern:$0x75316420]
    %2946 = vrot.lane.b32.xlu0 %v2944, 104
    %v2947 = vpop.permute.xlu0 %2946
    %2948 = vrot.lane.b32.xlu0 %v2945, 104
    %v2949 = vpop.permute.xlu0 %2948
    %2950 = vst [vmem:[#allocation1] ss:$2 sm:$0xff] %v188
    %s2951 = scalar_lea.vmem [#allocation1], 1
    %2952 = vst [vmem:[%s2951] ss:$2 sm:$0xff] %v217
    %s2953 = scalar_lea.vmem [#allocation1], 16
    %2954 = vst [vmem:[%s2953] ss:$2 sm:$0xff] %v191
    %v2955 = vld.sshfl [vmem:[#allocation1] sm:$0xff pattern:$0x75316420]
    %v2956 = vld.sshfl [vmem:[#allocation1 + $0x10] sm:$0xff pattern:$0x75316420]
    %2957 = vrot.lane.b32.xlu0 %v2955, 72
    %v2958 = vpop.permute.xlu0 %2957
    %2959 = vrot.lane.b32.xlu0 %v2956, 72
    %v2960 = vpop.permute.xlu0 %2959
    %v2961 = vsel %vm241, %v2947, 0
    %v2963 = vsel %vm241, %v2949, 0
    %v2965 = vsel %vm241, %v2958, 0
    %v2967 = vsel %vm241, %v2960, 0
    %2969 = vmatpush.xpose.msra.mxu0 0.0
    %2970 = vmatpush.xpose.msra.mxu0 0.0
    %2971 = vmatpush.xpose.msra.mxu0 0.0
    %2972 = vmatpush.xpose.msra.mxu0 0.0
    %2973 = vmatpush.xpose.msra.mxu0 0.0
    %2974 = vmatpush.xpose.msra.mxu0 0.0
    %2975 = vmatpush.xpose.msra.mxu0 0.0
    %2976 = vmatpush.xpose.msra.mxu0 0.0
    %2977 = vmatpush.xpose.msra.mxu0 0.0
    %2978 = vmatpush.xpose.msra.mxu0 0.0
    %2979 = vmatpush.xpose.msra.mxu0 0.0
    %2980 = vmatpush.xpose.msra.mxu0 0.0
    %2981 = vmatpush.xpose.msra.mxu0 0.0
    %2982 = vmatpush.xpose.msra.mxu0 0.0
    %2983 = vmatpush.xpose.msra.mxu0 %v2967
    %2984 = vmatpush.xpose.msra.mxu0 %v2965
    %2985 = vmatmul.f32.gmra.mxu0 %v2961
    %v2986 = vpop.f32.mrf.mxu0
    %v2987 = vadd.f32 0.0, %v2986
    %2988 = vmatmul.f32.gmra.mxu0 %v2963
    %v2989 = vpop.f32.mrf.mxu0
    %v2990 = vadd.f32 0.0, %v2989
    %2991 = vdwg.mxu0
    %2992 = vst [vmem:[#allocation1] ss:$2 sm:$0xff] %v218
    %s2993 = scalar_lea.vmem [#allocation1], 1
    %2994 = vst [vmem:[%s2993] ss:$2 sm:$0xff] %v194
    %s2995 = scalar_lea.vmem [#allocation1], 16
    %2996 = vst [vmem:[%s2995] ss:$2 sm:$0xff] %v219
    %v2997 = vld.sshfl [vmem:[#allocation1] sm:$0xff pattern:$0x75316420]
    %v2998 = vld.sshfl [vmem:[#allocation1 + $0x10] sm:$0xff pattern:$0x75316420]
    %2999 = vrot.lane.b32.xlu0 %v2997, 104
    %v3000 = vpop.permute.xlu0 %2999
    %3001 = vrot.lane.b32.xlu0 %v2998, 104
    %v3002 = vpop.permute.xlu0 %3001
    %3003 = vst [vmem:[#allocation1] ss:$2 sm:$0xff] %v218
    %s3004 = scalar_lea.vmem [#allocation1], 1
    %3005 = vst [vmem:[%s3004] ss:$2 sm:$0xff] %v194
    %s3006 = scalar_lea.vmem [#allocation1], 16
    %3007 = vst [vmem:[%s3006] ss:$2 sm:$0xff] %v219
    %v3008 = vld.sshfl [vmem:[#allocation1] sm:$0xff pattern:$0x75316420]
    %v3009 = vld.sshfl [vmem:[#allocation1 + $0x10] sm:$0xff pattern:$0x75316420]
    %3010 = vrot.lane.b32.xlu0 %v3008, 72
    %v3011 = vpop.permute.xlu0 %3010
    %3012 = vrot.lane.b32.xlu0 %v3009, 72
    %v3013 = vpop.permute.xlu0 %3012
    %v3014 = vsel %vm241, %v3000, 0
    %v3016 = vsel %vm241, %v3002, 0
    %v3018 = vsel %vm241, %v3011, 0
    %v3020 = vsel %vm241, %v3013, 0
    %3022 = vmatpush.xpose.msra.mxu0 0.0
    %3023 = vmatpush.xpose.msra.mxu0 0.0
    %3024 = vmatpush.xpose.msra.mxu0 0.0
    %3025 = vmatpush.xpose.msra.mxu0 0.0
    %3026 = vmatpush.xpose.msra.mxu0 0.0
    %3027 = vmatpush.xpose.msra.mxu0 0.0
    %3028 = vmatpush.xpose.msra.mxu0 0.0
    %3029 = vmatpush.xpose.msra.mxu0 0.0
    %3030 = vmatpush.xpose.msra.mxu0 0.0
    %3031 = vmatpush.xpose.msra.mxu0 0.0
    %3032 = vmatpush.xpose.msra.mxu0 0.0
    %3033 = vmatpush.xpose.msra.mxu0 0.0
    %3034 = vmatpush.xpose.msra.mxu0 0.0
    %3035 = vmatpush.xpose.msra.mxu0 0.0
    %3036 = vmatpush.xpose.msra.mxu0 %v3020
    %3037 = vmatpush.xpose.msra.mxu0 %v3018
    %3038 = vmatmul.f32.gmra.mxu0 %v3014
    %v3039 = vpop.f32.mrf.mxu0
    %v3040 = vadd.f32 0.0, %v3039
    %3041 = vmatmul.f32.gmra.mxu0 %v3016
    %v3042 = vpop.f32.mrf.mxu0
    %v3043 = vadd.f32 0.0, %v3042
    %3044 = vdwg.mxu0
    %3045 = vst [vmem:[#allocation1] ss:$2 sm:$0xff] %v197
    %s3046 = scalar_lea.vmem [#allocation1], 1
    %3047 = vst [vmem:[%s3046] ss:$2 sm:$0xff] %v220
    %s3048 = scalar_lea.vmem [#allocation1], 16
    %3049 = vst [vmem:[%s3048] ss:$2 sm:$0xff] %v200
    %v3050 = vld.sshfl [vmem:[#allocation1] sm:$0xff pattern:$0x75316420]
    %v3051 = vld.sshfl [vmem:[#allocation1 + $0x10] sm:$0xff pattern:$0x75316420]
    %3052 = vrot.lane.b32.xlu0 %v3050, 104
    %v3053 = vpop.permute.xlu0 %3052
    %3054 = vrot.lane.b32.xlu0 %v3051, 104
    %v3055 = vpop.permute.xlu0 %3054
    %3056 = vst [vmem:[#allocation1] ss:$2 sm:$0xff] %v197
    %s3057 = scalar_lea.vmem [#allocation1], 1
    %3058 = vst [vmem:[%s3057] ss:$2 sm:$0xff] %v220
    %s3059 = scalar_lea.vmem [#allocation1], 16
    %3060 = vst [vmem:[%s3059] ss:$2 sm:$0xff] %v200
    %v3061 = vld.sshfl [vmem:[#allocation1] sm:$0xff pattern:$0x75316420]
    %v3062 = vld.sshfl [vmem:[#allocation1 + $0x10] sm:$0xff pattern:$0x75316420]
    %3063 = vrot.lane.b32.xlu0 %v3061, 72
    %v3064 = vpop.permute.xlu0 %3063
    %3065 = vrot.lane.b32.xlu0 %v3062, 72
    %v3066 = vpop.permute.xlu0 %3065
    %v3067 = vsel %vm241, %v3053, 0
    %v3069 = vsel %vm241, %v3055, 0
    %v3071 = vsel %vm241, %v3064, 0
    %v3073 = vsel %vm241, %v3066, 0
    %3075 = vmatpush.xpose.msra.mxu0 0.0
    %3076 = vmatpush.xpose.msra.mxu0 0.0
    %3077 = vmatpush.xpose.msra.mxu0 0.0
    %3078 = vmatpush.xpose.msra.mxu0 0.0
    %3079 = vmatpush.xpose.msra.mxu0 0.0
    %3080 = vmatpush.xpose.msra.mxu0 0.0
    %3081 = vmatpush.xpose.msra.mxu0 0.0
    %3082 = vmatpush.xpose.msra.mxu0 0.0
    %3083 = vmatpush.xpose.msra.mxu0 0.0
    %3084 = vmatpush.xpose.msra.mxu0 0.0
    %3085 = vmatpush.xpose.msra.mxu0 0.0
    %3086 = vmatpush.xpose.msra.mxu0 0.0
    %3087 = vmatpush.xpose.msra.mxu0 0.0
    %3088 = vmatpush.xpose.msra.mxu0 0.0
    %3089 = vmatpush.xpose.msra.mxu0 %v3073
    %3090 = vmatpush.xpose.msra.mxu0 %v3071
    %3091 = vmatmul.f32.gmra.mxu0 %v3067
    %v3092 = vpop.f32.mrf.mxu0
    %v3093 = vadd.f32 0.0, %v3092
    %3094 = vmatmul.f32.gmra.mxu0 %v3069
    %v3095 = vpop.f32.mrf.mxu0
    %v3096 = vadd.f32 0.0, %v3095
    %3097 = vdwg.mxu0
    %3098 = vst [vmem:[#allocation1] ss:$2 sm:$0xff] %v221
    %s3099 = scalar_lea.vmem [#allocation1], 1
    %3100 = vst [vmem:[%s3099] ss:$2 sm:$0xff] %v203
    %s3101 = scalar_lea.vmem [#allocation1], 16
    %3102 = vst [vmem:[%s3101] ss:$2 sm:$0xff] %v222
    %v3103 = vld.sshfl [vmem:[#allocation1] sm:$0xff pattern:$0x75316420]
    %v3104 = vld.sshfl [vmem:[#allocation1 + $0x10] sm:$0xff pattern:$0x75316420]
    %3105 = vrot.lane.b32.xlu0 %v3103, 104
    %v3106 = vpop.permute.xlu0 %3105
    %3107 = vrot.lane.b32.xlu0 %v3104, 104
    %v3108 = vpop.permute.xlu0 %3107
    %3109 = vst [vmem:[#allocation1] ss:$2 sm:$0xff] %v221
    %s3110 = scalar_lea.vmem [#allocation1], 1
    %3111 = vst [vmem:[%s3110] ss:$2 sm:$0xff] %v203
    %s3112 = scalar_lea.vmem [#allocation1], 16
    %3113 = vst [vmem:[%s3112] ss:$2 sm:$0xff] %v222
    %v3114 = vld.sshfl [vmem:[#allocation1] sm:$0xff pattern:$0x75316420]
    %v3115 = vld.sshfl [vmem:[#allocation1 + $0x10] sm:$0xff pattern:$0x75316420]
    %3116 = vrot.lane.b32.xlu0 %v3114, 72
    %v3117 = vpop.permute.xlu0 %3116
    %3118 = vrot.lane.b32.xlu0 %v3115, 72
    %v3119 = vpop.permute.xlu0 %3118
    %v3120 = vsel %vm241, %v3106, 0
    %v3122 = vsel %vm241, %v3108, 0
    %v3124 = vsel %vm241, %v3117, 0
    %v3126 = vsel %vm241, %v3119, 0
    %3128 = vmatpush.xpose.msra.mxu0 0.0
    %3129 = vmatpush.xpose.msra.mxu0 0.0
    %3130 = vmatpush.xpose.msra.mxu0 0.0
    %3131 = vmatpush.xpose.msra.mxu0 0.0
    %3132 = vmatpush.xpose.msra.mxu0 0.0
    %3133 = vmatpush.xpose.msra.mxu0 0.0
    %3134 = vmatpush.xpose.msra.mxu0 0.0
    %3135 = vmatpush.xpose.msra.mxu0 0.0
    %3136 = vmatpush.xpose.msra.mxu0 0.0
    %3137 = vmatpush.xpose.msra.mxu0 0.0
    %3138 = vmatpush.xpose.msra.mxu0 0.0
    %3139 = vmatpush.xpose.msra.mxu0 0.0
    %3140 = vmatpush.xpose.msra.mxu0 0.0
    %3141 = vmatpush.xpose.msra.mxu0 0.0
    %3142 = vmatpush.xpose.msra.mxu0 %v3126
    %3143 = vmatpush.xpose.msra.mxu0 %v3124
    %3144 = vmatmul.f32.gmra.mxu0 %v3120
    %v3145 = vpop.f32.mrf.mxu0
    %v3146 = vadd.f32 0.0, %v3145
    %3147 = vmatmul.f32.gmra.mxu0 %v3122
    %v3148 = vpop.f32.mrf.mxu0
    %v3149 = vadd.f32 0.0, %v3148
    %3150 = vdwg.mxu0
    %v3151 = vsel %vm518, %v2881, -inf
    %3152 = vmax.xlane.f32.xlu0 %v3151
    %v3153 = vpop.xlane.xlu0 %3152
    %v3154 = vsel %vm522, %v2884, -inf
    %3155 = vmax.xlane.f32.xlu0 %v3154
    %v3156 = vpop.xlane.xlu0 %3155
    %v3157 = vsel %vm518, %v2934, -inf
    %3158 = vmax.xlane.f32.xlu0 %v3157
    %v3159 = vpop.xlane.xlu0 %3158
    %v3160 = vsel %vm522, %v2937, -inf
    %3161 = vmax.xlane.f32.xlu0 %v3160
    %v3162 = vpop.xlane.xlu0 %3161
    %v3163 = vsel %vm518, %v2987, -inf
    %3164 = vmax.xlane.f32.xlu0 %v3163
    %v3165 = vpop.xlane.xlu0 %3164
    %v3166 = vsel %vm522, %v2990, -inf
    %3167 = vmax.xlane.f32.xlu0 %v3166
    %v3168 = vpop.xlane.xlu0 %3167
    %v3169 = vsel %vm518, %v3040, -inf
    %3170 = vmax.xlane.f32.xlu0 %v3169
    %v3171 = vpop.xlane.xlu0 %3170
    %v3172 = vsel %vm522, %v3043, -inf
    %3173 = vmax.xlane.f32.xlu0 %v3172
    %v3174 = vpop.xlane.xlu0 %3173
    %v3175 = vsel %vm518, %v3093, -inf
    %3176 = vmax.xlane.f32.xlu0 %v3175
    %v3177 = vpop.xlane.xlu0 %3176
    %v3178 = vsel %vm522, %v3096, -inf
    %3179 = vmax.xlane.f32.xlu0 %v3178
    %v3180 = vpop.xlane.xlu0 %3179
    %v3181 = vsel %vm518, %v3146, -inf
    %3182 = vmax.xlane.f32.xlu0 %v3181
    %v3183 = vpop.xlane.xlu0 %3182
    %v3184 = vsel %vm522, %v3149, -inf
    %3185 = vmax.xlane.f32.xlu0 %v3184
    %v3186 = vpop.xlane.xlu0 %3185
    %v3187 = vsub.f32 %v2881, %v3153
    %v3188 = vsub.f32 %v2884, %v3156
    %v3189 = vsub.f32 %v2934, %v3159
    %v3190 = vsub.f32 %v2937, %v3162
    %v3191 = vsub.f32 %v2987, %v3165
    %v3192 = vsub.f32 %v2990, %v3168
    %v3193 = vsub.f32 %v3040, %v3171
    %v3194 = vsub.f32 %v3043, %v3174
    %v3195 = vsub.f32 %v3093, %v3177
    %v3196 = vsub.f32 %v3096, %v3180
    %v3197 = vsub.f32 %v3146, %v3183
    %v3198 = vsub.f32 %v3149, %v3186
    %v3199 = vmul.f32 %v3187, 1.442695
    %v3200 = vpow.pop %v3199
    %v3201 = vmul.f32 %v3188, 1.442695
    %v3202 = vpow.pop %v3201
    %v3203 = vmul.f32 %v3189, 1.442695
    %v3204 = vpow.pop %v3203
    %v3205 = vmul.f32 %v3190, 1.442695
    %v3206 = vpow.pop %v3205
    %v3207 = vmul.f32 %v3191, 1.442695
    %v3208 = vpow.pop %v3207
    %v3209 = vmul.f32 %v3192, 1.442695
    %v3210 = vpow.pop %v3209
    %v3211 = vmul.f32 %v3193, 1.442695
    %v3212 = vpow.pop %v3211
    %v3213 = vmul.f32 %v3194, 1.442695
    %v3214 = vpow.pop %v3213
    %v3215 = vmul.f32 %v3195, 1.442695
    %v3216 = vpow.pop %v3215
    %v3217 = vmul.f32 %v3196, 1.442695
    %v3218 = vpow.pop %v3217
    %v3219 = vmul.f32 %v3197, 1.442695
    %v3220 = vpow.pop %v3219
    %v3221 = vmul.f32 %v3198, 1.442695
    %v3222 = vpow.pop %v3221
    %v3223 = vsel %vm518, %v3200, 0.0
    %3224 = vadd.xlane.f32.xlu0 %v3223
    %v3225 = vpop.xlane.xlu0 %3224
    %v3226 = vsel %vm522, %v3202, 0.0
    %3227 = vadd.xlane.f32.xlu0 %v3226
    %v3228 = vpop.xlane.xlu0 %3227
    %v3229 = vsel %vm518, %v3204, 0.0
    %3230 = vadd.xlane.f32.xlu0 %v3229
    %v3231 = vpop.xlane.xlu0 %3230
    %v3232 = vsel %vm522, %v3206, 0.0
    %3233 = vadd.xlane.f32.xlu0 %v3232
    %v3234 = vpop.xlane.xlu0 %3233
    %v3235 = vsel %vm518, %v3208, 0.0
    %3236 = vadd.xlane.f32.xlu0 %v3235
    %v3237 = vpop.xlane.xlu0 %3236
    %v3238 = vsel %vm522, %v3210, 0.0
    %3239 = vadd.xlane.f32.xlu0 %v3238
    %v3240 = vpop.xlane.xlu0 %3239
    %v3241 = vsel %vm518, %v3212, 0.0
    %3242 = vadd.xlane.f32.xlu0 %v3241
    %v3243 = vpop.xlane.xlu0 %3242
    %v3244 = vsel %vm522, %v3214, 0.0
    %3245 = vadd.xlane.f32.xlu0 %v3244
    %v3246 = vpop.xlane.xlu0 %3245
    %v3247 = vsel %vm518, %v3216, 0.0
    %3248 = vadd.xlane.f32.xlu0 %v3247
    %v3249 = vpop.xlane.xlu0 %3248
    %v3250 = vsel %vm522, %v3218, 0.0
    %3251 = vadd.xlane.f32.xlu0 %v3250
    %v3252 = vpop.xlane.xlu0 %3251
    %v3253 = vsel %vm518, %v3220, 0.0
    %3254 = vadd.xlane.f32.xlu0 %v3253
    %v3255 = vpop.xlane.xlu0 %3254
    %v3256 = vsel %vm522, %v3222, 0.0
    %3257 = vadd.xlane.f32.xlu0 %v3256
    %v3258 = vpop.xlane.xlu0 %3257
    %v3259 = vrcp.pop %v3225
    %v3260 = vmul.f32 %v3225, %v3259
    %v3261 = vsub.f32 1.0, %v3260
    %v3262 = vmul.f32 %v3259, %v3261
    %v3263 = vadd.f32 %v3259, %v3262
    %vm3264 = vweird.f32 %v3225
    %vm3265 = vweird.f32 %v3259
    %vm3266 = vmor %vm3264, %vm3265
    %v3267 = vsel %vm3266, %v3259, %v3263
    %v3268 = vand.u32 2147483647, %v3225
    %vm3269 = vcmp.eq.f32.partialorder %v3268, 8.507059e+37
    %v3270 = vand.u32 %v3225, 2147483648
    %v3271 = vor.u32 1.1754944e-38, %v3270
    %v3272 = vsel %vm3269, %v3271, %v3267
    %v3273 = vrcp.pop %v3228
    %v3274 = vmul.f32 %v3228, %v3273
    %v3275 = vsub.f32 1.0, %v3274
    %v3276 = vmul.f32 %v3273, %v3275
    %v3277 = vadd.f32 %v3273, %v3276
    %vm3278 = vweird.f32 %v3228
    %vm3279 = vweird.f32 %v3273
    %vm3280 = vmor %vm3278, %vm3279
    %v3281 = vsel %vm3280, %v3273, %v3277
    %v3282 = vand.u32 2147483647, %v3228
    %vm3283 = vcmp.eq.f32.partialorder %v3282, 8.507059e+37
    %v3284 = vand.u32 %v3228, 2147483648
    %v3285 = vor.u32 1.1754944e-38, %v3284
    %v3286 = vsel %vm3283, %v3285, %v3281
    %v3287 = vrcp.pop %v3231
    %v3288 = vmul.f32 %v3231, %v3287
    %v3289 = vsub.f32 1.0, %v3288
    %v3290 = vmul.f32 %v3287, %v3289
    %v3291 = vadd.f32 %v3287, %v3290
    %vm3292 = vweird.f32 %v3231
    %vm3293 = vweird.f32 %v3287
    %vm3294 = vmor %vm3292, %vm3293
    %v3295 = vsel %vm3294, %v3287, %v3291
    %v3296 = vand.u32 2147483647, %v3231
    %vm3297 = vcmp.eq.f32.partialorder %v3296, 8.507059e+37
    %v3298 = vand.u32 %v3231, 2147483648
    %v3299 = vor.u32 1.1754944e-38, %v3298
    %v3300 = vsel %vm3297, %v3299, %v3295
    %v3301 = vrcp.pop %v3234
    %v3302 = vmul.f32 %v3234, %v3301
    %v3303 = vsub.f32 1.0, %v3302
    %v3304 = vmul.f32 %v3301, %v3303
    %v3305 = vadd.f32 %v3301, %v3304
    %vm3306 = vweird.f32 %v3234
    %vm3307 = vweird.f32 %v3301
    %vm3308 = vmor %vm3306, %vm3307
    %v3309 = vsel %vm3308, %v3301, %v3305
    %v3310 = vand.u32 2147483647, %v3234
    %vm3311 = vcmp.eq.f32.partialorder %v3310, 8.507059e+37
    %v3312 = vand.u32 %v3234, 2147483648
    %v3313 = vor.u32 1.1754944e-38, %v3312
    %v3314 = vsel %vm3311, %v3313, %v3309
    %v3315 = vrcp.pop %v3237
    %v3316 = vmul.f32 %v3237, %v3315
    %v3317 = vsub.f32 1.0, %v3316
    %v3318 = vmul.f32 %v3315, %v3317
    %v3319 = vadd.f32 %v3315, %v3318
    %vm3320 = vweird.f32 %v3237
    %vm3321 = vweird.f32 %v3315
    %vm3322 = vmor %vm3320, %vm3321
    %v3323 = vsel %vm3322, %v3315, %v3319
    %v3324 = vand.u32 2147483647, %v3237
    %vm3325 = vcmp.eq.f32.partialorder %v3324, 8.507059e+37
    %v3326 = vand.u32 %v3237, 2147483648
    %v3327 = vor.u32 1.1754944e-38, %v3326
    %v3328 = vsel %vm3325, %v3327, %v3323
    %v3329 = vrcp.pop %v3240
    %v3330 = vmul.f32 %v3240, %v3329
    %v3331 = vsub.f32 1.0, %v3330
    %v3332 = vmul.f32 %v3329, %v3331
    %v3333 = vadd.f32 %v3329, %v3332
    %vm3334 = vweird.f32 %v3240
    %vm3335 = vweird.f32 %v3329
    %vm3336 = vmor %vm3334, %vm3335
    %v3337 = vsel %vm3336, %v3329, %v3333
    %v3338 = vand.u32 2147483647, %v3240
    %vm3339 = vcmp.eq.f32.partialorder %v3338, 8.507059e+37
    %v3340 = vand.u32 %v3240, 2147483648
    %v3341 = vor.u32 1.1754944e-38, %v3340
    %v3342 = vsel %vm3339, %v3341, %v3337
    %v3343 = vrcp.pop %v3243
    %v3344 = vmul.f32 %v3243, %v3343
    %v3345 = vsub.f32 1.0, %v3344
    %v3346 = vmul.f32 %v3343, %v3345
    %v3347 = vadd.f32 %v3343, %v3346
    %vm3348 = vweird.f32 %v3243
    %vm3349 = vweird.f32 %v3343
    %vm3350 = vmor %vm3348, %vm3349
    %v3351 = vsel %vm3350, %v3343, %v3347
    %v3352 = vand.u32 2147483647, %v3243
    %vm3353 = vcmp.eq.f32.partialorder %v3352, 8.507059e+37
    %v3354 = vand.u32 %v3243, 2147483648
    %v3355 = vor.u32 1.1754944e-38, %v3354
    %v3356 = vsel %vm3353, %v3355, %v3351
    %v3357 = vrcp.pop %v3246
    %v3358 = vmul.f32 %v3246, %v3357
    %v3359 = vsub.f32 1.0, %v3358
    %v3360 = vmul.f32 %v3357, %v3359
    %v3361 = vadd.f32 %v3357, %v3360
    %vm3362 = vweird.f32 %v3246
    %vm3363 = vweird.f32 %v3357
    %vm3364 = vmor %vm3362, %vm3363
    %v3365 = vsel %vm3364, %v3357, %v3361
    %v3366 = vand.u32 2147483647, %v3246
    %vm3367 = vcmp.eq.f32.partialorder %v3366, 8.507059e+37
    %v3368 = vand.u32 %v3246, 2147483648
    %v3369 = vor.u32 1.1754944e-38, %v3368
    %v3370 = vsel %vm3367, %v3369, %v3365
    %v3371 = vrcp.pop %v3249
    %v3372 = vmul.f32 %v3249, %v3371
    %v3373 = vsub.f32 1.0, %v3372
    %v3374 = vmul.f32 %v3371, %v3373
    %v3375 = vadd.f32 %v3371, %v3374
    %vm3376 = vweird.f32 %v3249
    %vm3377 = vweird.f32 %v3371
    %vm3378 = vmor %vm3376, %vm3377
    %v3379 = vsel %vm3378, %v3371, %v3375
    %v3380 = vand.u32 2147483647, %v3249
    %vm3381 = vcmp.eq.f32.partialorder %v3380, 8.507059e+37
    %v3382 = vand.u32 %v3249, 2147483648
    %v3383 = vor.u32 1.1754944e-38, %v3382
    %v3384 = vsel %vm3381, %v3383, %v3379
    %v3385 = vrcp.pop %v3252
    %v3386 = vmul.f32 %v3252, %v3385
    %v3387 = vsub.f32 1.0, %v3386
    %v3388 = vmul.f32 %v3385, %v3387
    %v3389 = vadd.f32 %v3385, %v3388
    %vm3390 = vweird.f32 %v3252
    %vm3391 = vweird.f32 %v3385
    %vm3392 = vmor %vm3390, %vm3391
    %v3393 = vsel %vm3392, %v3385, %v3389
    %v3394 = vand.u32 2147483647, %v3252
    %vm3395 = vcmp.eq.f32.partialorder %v3394, 8.507059e+37
    %v3396 = vand.u32 %v3252, 2147483648
    %v3397 = vor.u32 1.1754944e-38, %v3396
    %v3398 = vsel %vm3395, %v3397, %v3393
    %v3399 = vrcp.pop %v3255
    %v3400 = vmul.f32 %v3255, %v3399
    %v3401 = vsub.f32 1.0, %v3400
    %v3402 = vmul.f32 %v3399, %v3401
    %v3403 = vadd.f32 %v3399, %v3402
    %vm3404 = vweird.f32 %v3255
    %vm3405 = vweird.f32 %v3399
    %vm3406 = vmor %vm3404, %vm3405
    %v3407 = vsel %vm3406, %v3399, %v3403
    %v3408 = vand.u32 2147483647, %v3255
    %vm3409 = vcmp.eq.f32.partialorder %v3408, 8.507059e+37
    %v3410 = vand.u32 %v3255, 2147483648
    %v3411 = vor.u32 1.1754944e-38, %v3410
    %v3412 = vsel %vm3409, %v3411, %v3407
    %v3413 = vrcp.pop %v3258
    %v3414 = vmul.f32 %v3258, %v3413
    %v3415 = vsub.f32 1.0, %v3414
    %v3416 = vmul.f32 %v3413, %v3415
    %v3417 = vadd.f32 %v3413, %v3416
    %vm3418 = vweird.f32 %v3258
    %vm3419 = vweird.f32 %v3413
    %vm3420 = vmor %vm3418, %vm3419
    %v3421 = vsel %vm3420, %v3413, %v3417
    %v3422 = vand.u32 2147483647, %v3258
    %vm3423 = vcmp.eq.f32.partialorder %v3422, 8.507059e+37
    %v3424 = vand.u32 %v3258, 2147483648
    %v3425 = vor.u32 1.1754944e-38, %v3424
    %v3426 = vsel %vm3423, %v3425, %v3421
    %v3427 = vmul.f32 %v3200, %v3272
    %v3428 = vmul.f32 %v3202, %v3286
    %v3429 = vmul.f32 %v3204, %v3300
    %v3430 = vmul.f32 %v3206, %v3314
    %v3431 = vmul.f32 %v3208, %v3328
    %v3432 = vmul.f32 %v3210, %v3342
    %v3433 = vmul.f32 %v3212, %v3356
    %v3434 = vmul.f32 %v3214, %v3370
    %v3435 = vmul.f32 %v3216, %v3384
    %v3436 = vmul.f32 %v3218, %v3398
    %v3437 = vmul.f32 %v3220, %v3412
    %v3438 = vmul.f32 %v3222, %v3426
    %s3439 = scalar_lea.vmem %s6, 288
    %3440 = vst.msk [vmem:[%s3439] sm:$0xff] %vm518, %v3427
    %3441 = vst.msk [vmem:[%s3439 + $0x8] sm:$0xf] %vm522, %v3428
    %3442 = vst.msk [vmem:[%s3439 + $0x10] sm:$0xff] %vm518, %v3429
    %3443 = vst.msk [vmem:[%s3439 + $0x18] sm:$0xf] %vm522, %v3430
    %3444 = vst.msk [vmem:[%s3439 + $0x20] sm:$0xff] %vm518, %v3431
    %3445 = vst.msk [vmem:[%s3439 + $0x28] sm:$0xf] %vm522, %v3432
    %3446 = vst.msk [vmem:[%s3439 + $0x30] sm:$0xff] %vm518, %v3433
    %3447 = vst.msk [vmem:[%s3439 + $0x38] sm:$0xf] %vm522, %v3434
    %3448 = vst.msk [vmem:[%s3439 + $0x40] sm:$0xff] %vm518, %v3435
    %3449 = vst.msk [vmem:[%s3439 + $0x48] sm:$0xf] %vm522, %v3436
    %3450 = vst.msk [vmem:[%s3439 + $0x50] sm:$0xff] %vm518, %v3437
    %3451 = vst.msk [vmem:[%s3439 + $0x58] sm:$0xf] %vm522, %v3438
    %3452 = vst [vmem:[#allocation1] ss:$2 sm:$0xff] %v179
    %s3453 = scalar_lea.vmem [#allocation1], 1
    %3454 = vst [vmem:[%s3453] ss:$2 sm:$0xff] %v214
    %s3455 = scalar_lea.vmem [#allocation1], 16
    %3456 = vst [vmem:[%s3455] ss:$2 sm:$0xff] %v182
    %v3457 = vld.sshfl [vmem:[#allocation1] sm:$0xff pattern:$0x75316420]
    %v3458 = vld.sshfl [vmem:[#allocation1 + $0x10] sm:$0xff pattern:$0x75316420]
    %3459 = vrot.lane.b32.xlu0 %v3457, 40
    %v3460 = vpop.permute.xlu0 %3459
    %3461 = vrot.lane.b32.xlu0 %v3458, 40
    %v3462 = vpop.permute.xlu0 %3461
    %v3465 = vsel %vm518, %v3427, 0
    %v3468 = vsel %vm518, %v3428, 0
    %v3470 = vsel %vm838, %v3462, 0
    %3472 = vmatpush.msra.mxu0 0.0
    %3473 = vmatpush.msra.mxu0 0.0
    %3474 = vmatpush.msra.mxu0 0.0
    %3475 = vmatpush.msra.mxu0 0.0
    %3476 = vmatpush.msra.mxu0 0.0
    %3477 = vmatpush.msra.mxu0 0.0
    %3478 = vmatpush.msra.mxu0 0.0
    %3479 = vmatpush.msra.mxu0 0.0
    %3480 = vmatpush.msra.mxu0 0.0
    %3481 = vmatpush.msra.mxu0 0.0
    %3482 = vmatpush.msra.mxu0 0.0
    %3483 = vmatpush.msra.mxu0 0.0
    %3484 = vmatpush.msra.mxu0 0.0
    %3485 = vmatpush.msra.mxu0 0.0
    %3486 = vmatpush.msra.mxu0 %v3470
    %3487 = vmatpush.msra.mxu0 %v3460
    %3488 = vmatmul.f32.gmra.mxu0 %v3465
    %v3489 = vpop.f32.mrf.mxu0
    %v3490 = vadd.f32 0.0, %v3489
    %3491 = vmatmul.f32.gmra.mxu0 %v3468
    %v3492 = vpop.f32.mrf.mxu0
    %v3493 = vadd.f32 0.0, %v3492
    %3494 = vdwg.mxu0
    %3495 = vst [vmem:[#allocation1] ss:$2 sm:$0xff] %v215
    %s3496 = scalar_lea.vmem [#allocation1], 1
    %3497 = vst [vmem:[%s3496] ss:$2 sm:$0xff] %v185
    %s3498 = scalar_lea.vmem [#allocation1], 16
    %3499 = vst [vmem:[%s3498] ss:$2 sm:$0xff] %v216
    %v3500 = vld.sshfl [vmem:[#allocation1] sm:$0xff pattern:$0x75316420]
    %v3501 = vld.sshfl [vmem:[#allocation1 + $0x10] sm:$0xff pattern:$0x75316420]
    %3502 = vrot.lane.b32.xlu0 %v3500, 40
    %v3503 = vpop.permute.xlu0 %3502
    %3504 = vrot.lane.b32.xlu0 %v3501, 40
    %v3505 = vpop.permute.xlu0 %3504
    %v3508 = vsel %vm518, %v3429, 0
    %v3511 = vsel %vm518, %v3430, 0
    %v3513 = vsel %vm838, %v3505, 0
    %3515 = vmatpush.msra.mxu0 0.0
    %3516 = vmatpush.msra.mxu0 0.0
    %3517 = vmatpush.msra.mxu0 0.0
    %3518 = vmatpush.msra.mxu0 0.0
    %3519 = vmatpush.msra.mxu0 0.0
    %3520 = vmatpush.msra.mxu0 0.0
    %3521 = vmatpush.msra.mxu0 0.0
    %3522 = vmatpush.msra.mxu0 0.0
    %3523 = vmatpush.msra.mxu0 0.0
    %3524 = vmatpush.msra.mxu0 0.0
    %3525 = vmatpush.msra.mxu0 0.0
    %3526 = vmatpush.msra.mxu0 0.0
    %3527 = vmatpush.msra.mxu0 0.0
    %3528 = vmatpush.msra.mxu0 0.0
    %3529 = vmatpush.msra.mxu0 %v3513
    %3530 = vmatpush.msra.mxu0 %v3503
    %3531 = vmatmul.f32.gmra.mxu0 %v3508
    %v3532 = vpop.f32.mrf.mxu0
    %v3533 = vadd.f32 0.0, %v3532
    %3534 = vmatmul.f32.gmra.mxu0 %v3511
    %v3535 = vpop.f32.mrf.mxu0
    %v3536 = vadd.f32 0.0, %v3535
    %3537 = vdwg.mxu0
    %3538 = vst [vmem:[#allocation1] ss:$2 sm:$0xff] %v188
    %s3539 = scalar_lea.vmem [#allocation1], 1
    %3540 = vst [vmem:[%s3539] ss:$2 sm:$0xff] %v217
    %s3541 = scalar_lea.vmem [#allocation1], 16
    %3542 = vst [vmem:[%s3541] ss:$2 sm:$0xff] %v191
    %v3543 = vld.sshfl [vmem:[#allocation1] sm:$0xff pattern:$0x75316420]
    %v3544 = vld.sshfl [vmem:[#allocation1 + $0x10] sm:$0xff pattern:$0x75316420]
    %3545 = vrot.lane.b32.xlu0 %v3543, 40
    %v3546 = vpop.permute.xlu0 %3545
    %3547 = vrot.lane.b32.xlu0 %v3544, 40
    %v3548 = vpop.permute.xlu0 %3547
    %v3551 = vsel %vm518, %v3431, 0
    %v3554 = vsel %vm518, %v3432, 0
    %v3556 = vsel %vm838, %v3548, 0
    %3558 = vmatpush.msra.mxu0 0.0
    %3559 = vmatpush.msra.mxu0 0.0
    %3560 = vmatpush.msra.mxu0 0.0
    %3561 = vmatpush.msra.mxu0 0.0
    %3562 = vmatpush.msra.mxu0 0.0
    %3563 = vmatpush.msra.mxu0 0.0
    %3564 = vmatpush.msra.mxu0 0.0
    %3565 = vmatpush.msra.mxu0 0.0
    %3566 = vmatpush.msra.mxu0 0.0
    %3567 = vmatpush.msra.mxu0 0.0
    %3568 = vmatpush.msra.mxu0 0.0
    %3569 = vmatpush.msra.mxu0 0.0
    %3570 = vmatpush.msra.mxu0 0.0
    %3571 = vmatpush.msra.mxu0 0.0
    %3572 = vmatpush.msra.mxu0 %v3556
    %3573 = vmatpush.msra.mxu0 %v3546
    %3574 = vmatmul.f32.gmra.mxu0 %v3551
    %v3575 = vpop.f32.mrf.mxu0
    %v3576 = vadd.f32 0.0, %v3575
    %3577 = vmatmul.f32.gmra.mxu0 %v3554
    %v3578 = vpop.f32.mrf.mxu0
    %v3579 = vadd.f32 0.0, %v3578
    %3580 = vdwg.mxu0
    %3581 = vst [vmem:[#allocation1] ss:$2 sm:$0xff] %v218
    %s3582 = scalar_lea.vmem [#allocation1], 1
    %3583 = vst [vmem:[%s3582] ss:$2 sm:$0xff] %v194
    %s3584 = scalar_lea.vmem [#allocation1], 16
    %3585 = vst [vmem:[%s3584] ss:$2 sm:$0xff] %v219
    %v3586 = vld.sshfl [vmem:[#allocation1] sm:$0xff pattern:$0x75316420]
    %v3587 = vld.sshfl [vmem:[#allocation1 + $0x10] sm:$0xff pattern:$0x75316420]
    %3588 = vrot.lane.b32.xlu0 %v3586, 40
    %v3589 = vpop.permute.xlu0 %3588
    %3590 = vrot.lane.b32.xlu0 %v3587, 40
    %v3591 = vpop.permute.xlu0 %3590
    %v3594 = vsel %vm518, %v3433, 0
    %v3597 = vsel %vm518, %v3434, 0
    %v3599 = vsel %vm838, %v3591, 0
    %3601 = vmatpush.msra.mxu0 0.0
    %3602 = vmatpush.msra.mxu0 0.0
    %3603 = vmatpush.msra.mxu0 0.0
    %3604 = vmatpush.msra.mxu0 0.0
    %3605 = vmatpush.msra.mxu0 0.0
    %3606 = vmatpush.msra.mxu0 0.0
    %3607 = vmatpush.msra.mxu0 0.0
    %3608 = vmatpush.msra.mxu0 0.0
    %3609 = vmatpush.msra.mxu0 0.0
    %3610 = vmatpush.msra.mxu0 0.0
    %3611 = vmatpush.msra.mxu0 0.0
    %3612 = vmatpush.msra.mxu0 0.0
    %3613 = vmatpush.msra.mxu0 0.0
    %3614 = vmatpush.msra.mxu0 0.0
    %3615 = vmatpush.msra.mxu0 %v3599
    %3616 = vmatpush.msra.mxu0 %v3589
    %3617 = vmatmul.f32.gmra.mxu0 %v3594
    %v3618 = vpop.f32.mrf.mxu0
    %v3619 = vadd.f32 0.0, %v3618
    %3620 = vmatmul.f32.gmra.mxu0 %v3597
    %v3621 = vpop.f32.mrf.mxu0
    %v3622 = vadd.f32 0.0, %v3621
    %3623 = vdwg.mxu0
    %3624 = vst [vmem:[#allocation1] ss:$2 sm:$0xff] %v197
    %s3625 = scalar_lea.vmem [#allocation1], 1
    %3626 = vst [vmem:[%s3625] ss:$2 sm:$0xff] %v220
    %s3627 = scalar_lea.vmem [#allocation1], 16
    %3628 = vst [vmem:[%s3627] ss:$2 sm:$0xff] %v200
    %v3629 = vld.sshfl [vmem:[#allocation1] sm:$0xff pattern:$0x75316420]
    %v3630 = vld.sshfl [vmem:[#allocation1 + $0x10] sm:$0xff pattern:$0x75316420]
    %3631 = vrot.lane.b32.xlu0 %v3629, 40
    %v3632 = vpop.permute.xlu0 %3631
    %3633 = vrot.lane.b32.xlu0 %v3630, 40
    %v3634 = vpop.permute.xlu0 %3633
    %v3637 = vsel %vm518, %v3435, 0
    %v3640 = vsel %vm518, %v3436, 0
    %v3642 = vsel %vm838, %v3634, 0
    %3644 = vmatpush.msra.mxu0 0.0
    %3645 = vmatpush.msra.mxu0 0.0
    %3646 = vmatpush.msra.mxu0 0.0
    %3647 = vmatpush.msra.mxu0 0.0
    %3648 = vmatpush.msra.mxu0 0.0
    %3649 = vmatpush.msra.mxu0 0.0
    %3650 = vmatpush.msra.mxu0 0.0
    %3651 = vmatpush.msra.mxu0 0.0
    %3652 = vmatpush.msra.mxu0 0.0
    %3653 = vmatpush.msra.mxu0 0.0
    %3654 = vmatpush.msra.mxu0 0.0
    %3655 = vmatpush.msra.mxu0 0.0
    %3656 = vmatpush.msra.mxu0 0.0
    %3657 = vmatpush.msra.mxu0 0.0
    %3658 = vmatpush.msra.mxu0 %v3642
    %3659 = vmatpush.msra.mxu0 %v3632
    %3660 = vmatmul.f32.gmra.mxu0 %v3637
    %v3661 = vpop.f32.mrf.mxu0
    %v3662 = vadd.f32 0.0, %v3661
    %3663 = vmatmul.f32.gmra.mxu0 %v3640
    %v3664 = vpop.f32.mrf.mxu0
    %v3665 = vadd.f32 0.0, %v3664
    %3666 = vdwg.mxu0
    %3667 = vst [vmem:[#allocation1] ss:$2 sm:$0xff] %v221
    %s3668 = scalar_lea.vmem [#allocation1], 1
    %3669 = vst [vmem:[%s3668] ss:$2 sm:$0xff] %v203
    %s3670 = scalar_lea.vmem [#allocation1], 16
    %3671 = vst [vmem:[%s3670] ss:$2 sm:$0xff] %v222
    %v3672 = vld.sshfl [vmem:[#allocation1] sm:$0xff pattern:$0x75316420]
    %v3673 = vld.sshfl [vmem:[#allocation1 + $0x10] sm:$0xff pattern:$0x75316420]
    %3674 = vrot.lane.b32.xlu0 %v3672, 40
    %v3675 = vpop.permute.xlu0 %3674
    %3676 = vrot.lane.b32.xlu0 %v3673, 40
    %v3677 = vpop.permute.xlu0 %3676
    %v3680 = vsel %vm518, %v3437, 0
    %v3683 = vsel %vm518, %v3438, 0
    %v3685 = vsel %vm838, %v3677, 0
    %3687 = vmatpush.msra.mxu0 0.0
    %3688 = vmatpush.msra.mxu0 0.0
    %3689 = vmatpush.msra.mxu0 0.0
    %3690 = vmatpush.msra.mxu0 0.0
    %3691 = vmatpush.msra.mxu0 0.0
    %3692 = vmatpush.msra.mxu0 0.0
    %3693 = vmatpush.msra.mxu0 0.0
    %3694 = vmatpush.msra.mxu0 0.0
    %3695 = vmatpush.msra.mxu0 0.0
    %3696 = vmatpush.msra.mxu0 0.0
    %3697 = vmatpush.msra.mxu0 0.0
    %3698 = vmatpush.msra.mxu0 0.0
    %3699 = vmatpush.msra.mxu0 0.0
    %3700 = vmatpush.msra.mxu0 0.0
    %3701 = vmatpush.msra.mxu0 %v3685
    %3702 = vmatpush.msra.mxu0 %v3675
    %3703 = vmatmul.f32.gmra.mxu0 %v3680
    %v3704 = vpop.f32.mrf.mxu0
    %v3705 = vadd.f32 0.0, %v3704
    %3706 = vmatmul.f32.gmra.mxu0 %v3683
    %v3707 = vpop.f32.mrf.mxu0
    %v3708 = vadd.f32 0.0, %v3707
    %3709 = vdwg.mxu0
    %3722 = vrot.lane.b32.xlu0 %v1736, 8
    %v3723 = vpop.permute.xlu0 %3722
    %3724 = vrot.lane.b32.xlu0 %v1739, 8
    %v3725 = vpop.permute.xlu0 %3724
    %3726 = vrot.lane.b32.xlu0 %v1779, 8
    %v3727 = vpop.permute.xlu0 %3726
    %3728 = vrot.lane.b32.xlu0 %v1782, 8
    %v3729 = vpop.permute.xlu0 %3728
    %3730 = vrot.lane.b32.xlu0 %v1822, 8
    %v3731 = vpop.permute.xlu0 %3730
    %3732 = vrot.lane.b32.xlu0 %v1825, 8
    %v3733 = vpop.permute.xlu0 %3732
    %3734 = vrot.lane.b32.xlu0 %v1865, 8
    %v3735 = vpop.permute.xlu0 %3734
    %3736 = vrot.lane.b32.xlu0 %v1868, 8
    %v3737 = vpop.permute.xlu0 %3736
    %3738 = vrot.lane.b32.xlu0 %v1908, 8
    %v3739 = vpop.permute.xlu0 %3738
    %3740 = vrot.lane.b32.xlu0 %v1911, 8
    %v3741 = vpop.permute.xlu0 %3740
    %3742 = vrot.lane.b32.xlu0 %v1951, 8
    %v3743 = vpop.permute.xlu0 %3742
    %3744 = vrot.lane.b32.xlu0 %v1954, 8
    %v3745 = vpop.permute.xlu0 %3744
    %3770 = vrot.lane.b32.xlu0 %v2613, 16
    %v3771 = vpop.permute.xlu0 %3770
    %3772 = vrot.lane.b32.xlu0 %v2616, 16
    %v3773 = vpop.permute.xlu0 %3772
    %3774 = vrot.lane.b32.xlu0 %v2656, 16
    %v3775 = vpop.permute.xlu0 %3774
    %3776 = vrot.lane.b32.xlu0 %v2659, 16
    %v3777 = vpop.permute.xlu0 %3776
    %3778 = vrot.lane.b32.xlu0 %v2699, 16
    %v3779 = vpop.permute.xlu0 %3778
    %3780 = vrot.lane.b32.xlu0 %v2702, 16
    %v3781 = vpop.permute.xlu0 %3780
    %3782 = vrot.lane.b32.xlu0 %v2742, 16
    %v3783 = vpop.permute.xlu0 %3782
    %3784 = vrot.lane.b32.xlu0 %v2745, 16
    %v3785 = vpop.permute.xlu0 %3784
    %3786 = vrot.lane.b32.xlu0 %v2785, 16
    %v3787 = vpop.permute.xlu0 %3786
    %3788 = vrot.lane.b32.xlu0 %v2788, 16
    %v3789 = vpop.permute.xlu0 %3788
    %3790 = vrot.lane.b32.xlu0 %v2828, 16
    %v3791 = vpop.permute.xlu0 %3790
    %3792 = vrot.lane.b32.xlu0 %v2831, 16
    %v3793 = vpop.permute.xlu0 %3792
    %3818 = vrot.lane.b32.xlu0 %v3490, 24
    %v3819 = vpop.permute.xlu0 %3818
    %3820 = vrot.lane.b32.xlu0 %v3493, 24
    %v3821 = vpop.permute.xlu0 %3820
    %3822 = vrot.lane.b32.xlu0 %v3533, 24
    %v3823 = vpop.permute.xlu0 %3822
    %3824 = vrot.lane.b32.xlu0 %v3536, 24
    %v3825 = vpop.permute.xlu0 %3824
    %3826 = vrot.lane.b32.xlu0 %v3576, 24
    %v3827 = vpop.permute.xlu0 %3826
    %3828 = vrot.lane.b32.xlu0 %v3579, 24
    %v3829 = vpop.permute.xlu0 %3828
    %3830 = vrot.lane.b32.xlu0 %v3619, 24
    %v3831 = vpop.permute.xlu0 %3830
    %3832 = vrot.lane.b32.xlu0 %v3622, 24
    %v3833 = vpop.permute.xlu0 %3832
    %3834 = vrot.lane.b32.xlu0 %v3662, 24
    %v3835 = vpop.permute.xlu0 %3834
    %3836 = vrot.lane.b32.xlu0 %v3665, 24
    %v3837 = vpop.permute.xlu0 %3836
    %3838 = vrot.lane.b32.xlu0 %v3705, 24
    %v3839 = vpop.permute.xlu0 %3838
    %3840 = vrot.lane.b32.xlu0 %v3708, 24
    %v3841 = vpop.permute.xlu0 %3840
    %v3854 = vsel %vm241, %v859, %v3723
    %v3855 = vsel %vm241, %v862, %v3725
    %v3856 = vsel %vm241, %v902, %v3727
    %v3857 = vsel %vm241, %v905, %v3729
    %v3858 = vsel %vm241, %v945, %v3731
    %v3859 = vsel %vm241, %v948, %v3733
    %v3860 = vsel %vm241, %v988, %v3735
    %v3861 = vsel %vm241, %v991, %v3737
    %v3862 = vsel %vm241, %v1031, %v3739
    %v3863 = vsel %vm241, %v1034, %v3741
    %v3864 = vsel %vm241, %v1074, %v3743
    %v3865 = vsel %vm241, %v1077, %v3745
    %vm3866 = vcmask 130048
    %v3867 = vsel %vm3866, %v3854, %v3771
    %v3868 = vsel %vm3866, %v3855, %v3773
    %v3869 = vsel %vm3866, %v3856, %v3775
    %v3870 = vsel %vm3866, %v3857, %v3777
    %v3871 = vsel %vm3866, %v3858, %v3779
    %v3872 = vsel %vm3866, %v3859, %v3781
    %v3873 = vsel %vm3866, %v3860, %v3783
    %v3874 = vsel %vm3866, %v3861, %v3785
    %v3875 = vsel %vm3866, %v3862, %v3787
    %v3876 = vsel %vm3866, %v3863, %v3789
    %v3877 = vsel %vm3866, %v3864, %v3791
    %v3878 = vsel %vm3866, %v3865, %v3793
    %vm3879 = vcmask 195584
    %v3880 = vsel %vm3879, %v3867, %v3819
    %v3881 = vsel %vm3879, %v3868, %v3821
    %v3882 = vsel %vm3879, %v3869, %v3823
    %v3883 = vsel %vm3879, %v3870, %v3825
    %v3884 = vsel %vm3879, %v3871, %v3827
    %v3885 = vsel %vm3879, %v3872, %v3829
    %v3886 = vsel %vm3879, %v3873, %v3831
    %v3887 = vsel %vm3879, %v3874, %v3833
    %v3888 = vsel %vm3879, %v3875, %v3835
    %v3889 = vsel %vm3879, %v3876, %v3837
    %v3890 = vsel %vm3879, %v3877, %v3839
    %v3891 = vsel %vm3879, %v3878, %v3841
    %v3904 = vrot.slane %v3880, 4
    %v3905 = vrot.slane %v3882, 4
    %v3906 = vrot.slane %v3884, 4
    %v3907 = vrot.slane %v3886, 4
    %v3908 = vrot.slane %v3888, 4
    %v3909 = vrot.slane %v3890, 4
    %v3910 = vld [vmem:[#allocation7] sm:$0xff]
    %v3911 = vld [vmem:[#allocation7 + $0x8] sm:$0xff]
    %v3912 = vld [vmem:[#allocation7 + $0x10] sm:$0xff]
    %v3913 = vld [vmem:[#allocation7 + $0x18] sm:$0xff]
    %v3914 = vld [vmem:[%s4] sm:$0x1]
    %v3916 = vperm.slane %v3914, 0
    %3918 = vst [vmem:[#allocation1] ss:$2 sm:$0xff] %v3880
    %s3919 = scalar_lea.vmem [#allocation1], 1
    %3920 = vst [vmem:[%s3919] ss:$2 sm:$0xff] %v3904
    %s3921 = scalar_lea.vmem [#allocation1], 16
    %3922 = vst [vmem:[%s3921] ss:$2 sm:$0xff] %v3881
    %s3923 = scalar_lea.vmem [#allocation1], 17
    %3924 = vst [vmem:[%s3923] ss:$2 sm:$0xff] %v3882
    %s3925 = scalar_lea.vmem [#allocation1], 32
    %3926 = vst [vmem:[%s3925] ss:$2 sm:$0xff] %v3905
    %s3927 = scalar_lea.vmem [#allocation1], 33
    %3928 = vst [vmem:[%s3927] ss:$2 sm:$0xff] %v3883
    %s3929 = scalar_lea.vmem [#allocation1], 48
    %3930 = vst [vmem:[%s3929] ss:$2 sm:$0xff] %v3884
    %s3931 = scalar_lea.vmem [#allocation1], 49
    %3932 = vst [vmem:[%s3931] ss:$2 sm:$0xff] %v3906
    %v3933 = vld.sshfl [vmem:[#allocation1] sm:$0xff pattern:$0x75316420]
    %v3934 = vld.sshfl [vmem:[#allocation1 + $0x10] sm:$0xff pattern:$0x75316420]
    %v3935 = vld.sshfl [vmem:[#allocation1 + $0x20] sm:$0xff pattern:$0x75316420]
    %v3936 = vld.sshfl [vmem:[#allocation1 + $0x30] sm:$0xff pattern:$0x75316420]
    %3937 = vst [vmem:[#allocation1] ss:$2 sm:$0xff] %v3885
    %3938 = vst [vmem:[%s3919] ss:$2 sm:$0xff] %v3886
    %3939 = vst [vmem:[%s3921] ss:$2 sm:$0xff] %v3907
    %3940 = vst [vmem:[%s3923] ss:$2 sm:$0xff] %v3887
    %3941 = vst [vmem:[%s3925] ss:$2 sm:$0xff] %v3888
    %3942 = vst [vmem:[%s3927] ss:$2 sm:$0xff] %v3908
    %3943 = vst [vmem:[%s3929] ss:$2 sm:$0xff] %v3889
    %3944 = vst [vmem:[%s3931] ss:$2 sm:$0xff] %v3890
    %v3945 = vld.sshfl [vmem:[#allocation1] sm:$0xff pattern:$0x75316420]
    %v3946 = vld.sshfl [vmem:[#allocation1 + $0x10] sm:$0xff pattern:$0x75316420]
    %v3947 = vld.sshfl [vmem:[#allocation1 + $0x20] sm:$0xff pattern:$0x75316420]
    %v3948 = vld.sshfl [vmem:[#allocation1 + $0x30] sm:$0xff pattern:$0x75316420]
    %3949 = vst [vmem:[#allocation1] ss:$2 sm:$0xff] %v3909
    %3950 = vst [vmem:[%s3919] ss:$2 sm:$0xff] %v3891
    %v3951 = vld.sshfl [vmem:[#allocation1] sm:$0xff pattern:$0x75316420]
    %v3952 = vsel %vm142, %v3933, 0
    %v3954 = vsel %vm142, %v3934, 0
    %v3956 = vsel %vm142, %v3935, 0
    %v3958 = vsel %vm142, %v3936, 0
    %v3960 = vsel %vm142, %v3945, 0
    %v3962 = vsel %vm142, %v3946, 0
    %v3964 = vsel %vm142, %v3947, 0
    %v3966 = vsel %vm142, %v3948, 0
    %v3968 = vsel %vm142, %v3951, 0
    %3970 = vmatpush.msra.mxu0 0.0
    %3971 = vmatpush.msra.mxu0 0.0
    %3972 = vmatpush.msra.mxu0 0.0
    %3973 = vmatpush.msra.mxu0 0.0
    %3974 = vmatpush.msra.mxu0 0.0
    %3975 = vmatpush.msra.mxu0 0.0
    %3976 = vmatpush.msra.mxu0 0.0
    %3977 = vmatpush.msra.mxu0 0.0
    %3978 = vmatpush.msra.mxu0 0.0
    %3979 = vmatpush.msra.mxu0 0.0
    %3980 = vmatpush.msra.mxu0 0.0
    %3981 = vmatpush.msra.mxu0 0.0
    %3982 = vmatpush.msra.mxu0 %v3913
    %3983 = vmatpush.msra.mxu0 %v3912
    %3984 = vmatpush.msra.mxu0 %v3911
    %3985 = vmatpush.msra.mxu0 %v3910
    %3986 = vmatmul.f32.gmra.mxu0 %v3952
    %v3987 = vpop.f32.mrf.mxu0
    %v3988 = vadd.f32 %v3916, %v3987
    %3989 = vmatmul.f32.gmra.mxu0 %v3954
    %v3990 = vpop.f32.mrf.mxu0
    %v3991 = vadd.f32 %v3916, %v3990
    %3992 = vmatmul.f32.gmra.mxu0 %v3956
    %v3993 = vpop.f32.mrf.mxu0
    %v3994 = vadd.f32 %v3916, %v3993
    %3995 = vmatmul.f32.gmra.mxu0 %v3958
    %v3996 = vpop.f32.mrf.mxu0
    %v3997 = vadd.f32 %v3916, %v3996
    %3998 = vmatmul.f32.gmra.mxu0 %v3960
    %v3999 = vpop.f32.mrf.mxu0
    %v4000 = vadd.f32 %v3916, %v3999
    %4001 = vmatmul.f32.gmra.mxu0 %v3962
    %v4002 = vpop.f32.mrf.mxu0
    %v4003 = vadd.f32 %v3916, %v4002
    %4004 = vmatmul.f32.gmra.mxu0 %v3964
    %v4005 = vpop.f32.mrf.mxu0
    %v4006 = vadd.f32 %v3916, %v4005
    %4007 = vmatmul.f32.gmra.mxu0 %v3966
    %v4008 = vpop.f32.mrf.mxu0
    %v4009 = vadd.f32 %v3916, %v4008
    %4010 = vmatmul.f32.gmra.mxu0 %v3968
    %v4011 = vpop.f32.mrf.mxu0
    %v4012 = vadd.f32 %v3916, %v4011
    %4013 = vdwg.mxu0
    %v4023 = vrot.slane %v3988, 4
    %v4024 = vrot.slane %v3991, 4
    %v4025 = vrot.slane %v3994, 4
    %v4026 = vrot.slane %v3997, 4
    %v4027 = vrot.slane %v4000, 4
    %v4028 = vrot.slane %v4003, 4
    %v4029 = vrot.slane %v4006, 4
    %v4030 = vrot.slane %v4009, 4
    %v4031 = vrot.slane %v4012, 4
    %4032 = vst [vmem:[#allocation1] ss:$2 sm:$0xff] %v3988
    %s4033 = scalar_lea.vmem [#allocation1], 1
    %4034 = vst [vmem:[%s4033] ss:$2 sm:$0xff] %v4023
    %s4035 = scalar_lea.vmem [#allocation1], 16
    %4036 = vst [vmem:[%s4035] ss:$2 sm:$0xff] %v3991
    %v4037 = vld.sshfl [vmem:[#allocation1] sm:$0xff pattern:$0x75316420]
    %v4038 = vld.sshfl [vmem:[#allocation1 + $0x10] sm:$0xff pattern:$0x75316420]
    %s4039 = scalar_lea.vmem [#allocation1], 32
    %4040 = vst [vmem:[%s4039] ss:$2 sm:$0xff] %v4024
    %s4041 = scalar_lea.vmem [#allocation1], 33
    %4042 = vst [vmem:[%s4041] ss:$2 sm:$0xff] %v3994
    %s4043 = scalar_lea.vmem [#allocation1], 48
    %4044 = vst [vmem:[%s4043] ss:$2 sm:$0xff] %v4025
    %v4045 = vld.sshfl [vmem:[#allocation1 + $0x20] sm:$0xff pattern:$0x75316420]
    %v4046 = vld.sshfl [vmem:[#allocation1 + $0x30] sm:$0xff pattern:$0x75316420]
    %4047 = vst [vmem:[#allocation1] ss:$2 sm:$0xff] %v3997
    %4048 = vst [vmem:[%s4033] ss:$2 sm:$0xff] %v4026
    %4049 = vst [vmem:[%s4035] ss:$2 sm:$0xff] %v4000
    %v4050 = vld.sshfl [vmem:[#allocation1] sm:$0xff pattern:$0x75316420]
    %v4051 = vld.sshfl [vmem:[#allocation1 + $0x10] sm:$0xff pattern:$0x75316420]
    %4052 = vst [vmem:[%s4039] ss:$2 sm:$0xff] %v4027
    %4053 = vst [vmem:[%s4041] ss:$2 sm:$0xff] %v4003
    %4054 = vst [vmem:[%s4043] ss:$2 sm:$0xff] %v4028
    %v4055 = vld.sshfl [vmem:[#allocation1 + $0x20] sm:$0xff pattern:$0x75316420]
    %v4056 = vld.sshfl [vmem:[#allocation1 + $0x30] sm:$0xff pattern:$0x75316420]
    %4057 = vst [vmem:[#allocation1] ss:$2 sm:$0xff] %v4006
    %4058 = vst [vmem:[%s4033] ss:$2 sm:$0xff] %v4029
    %4059 = vst [vmem:[%s4035] ss:$2 sm:$0xff] %v4009
    %v4060 = vld.sshfl [vmem:[#allocation1] sm:$0xff pattern:$0x75316420]
    %v4061 = vld.sshfl [vmem:[#allocation1 + $0x10] sm:$0xff pattern:$0x75316420]
    %4062 = vst [vmem:[%s4039] ss:$2 sm:$0xff] %v4030
    %4063 = vst [vmem:[%s4041] ss:$2 sm:$0xff] %v4012
    %4064 = vst [vmem:[%s4043] ss:$2 sm:$0xff] %v4031
    %v4065 = vld.sshfl [vmem:[#allocation1 + $0x20] sm:$0xff pattern:$0x75316420]
    %v4066 = vld.sshfl [vmem:[#allocation1 + $0x30] sm:$0xff pattern:$0x75316420]
    %4079 = vst.msk [vmem:[#allocation8] sm:$0xff] %vm142, %v4037
    %vm4080 = vcmask 257024
    %4081 = vst.msk [vmem:[#allocation8 + $0x8] sm:$0xf] %vm4080, %v4038
    %4082 = vst.msk [vmem:[#allocation8 + $0x10] sm:$0xff] %vm142, %v4045
    %4083 = vst.msk [vmem:[#allocation8 + $0x18] sm:$0xf] %vm4080, %v4046
    %4084 = vst.msk [vmem:[#allocation8 + $0x20] sm:$0xff] %vm142, %v4050
    %4085 = vst.msk [vmem:[#allocation8 + $0x28] sm:$0xf] %vm4080, %v4051
    %4086 = vst.msk [vmem:[#allocation8 + $0x30] sm:$0xff] %vm142, %v4055
    %4087 = vst.msk [vmem:[#allocation8 + $0x38] sm:$0xf] %vm4080, %v4056
    %4088 = vst.msk [vmem:[#allocation8 + $0x40] sm:$0xff] %vm142, %v4060
    %4089 = vst.msk [vmem:[#allocation8 + $0x48] sm:$0xf] %vm4080, %v4061
    %4090 = vst.msk [vmem:[#allocation8 + $0x50] sm:$0xff] %vm142, %v4065
    %4091 = vst.msk [vmem:[#allocation8 + $0x58] sm:$0xf] %vm4080, %v4066
    // Predicated region
    $region34: #{tpu_custom_call.1} parent=1 // pred_check
      _
    $region35: #{tpu_custom_call.1} parent=1 // pred_check_branch
      %4093 = sbr.rel (0) target = $region37
    $region36: #{tpu_custom_call.1} parent=1 // pred_region
      %4095 = vsyncadd [#allocation4], 0
      %s4096 = sshll.u32 [#allocation8], 4
      %s4097 = int_to_ptr.vmem [resolvable:$true] %s4096
      %s4098 = sshll.u32 %s5, 4
      %s4099 = int_to_ptr.hbm [resolvable:$true] %s4098
      %4104 = dma.vmem_to_hbm [thread:$0]  %s4097, 1536, %s4099, [#allocation4], 128, 128, 8
    $region37: #{tpu_custom_call.1} parent=1 // pred_fallthru
      _
    // Predicated region
    $region38: #{tpu_custom_call.1} parent=1 // pred_check
      _
    $region39: #{tpu_custom_call.1} parent=1 // pred_check_branch
      %4106 = sbr.rel (0) target = $region41
    $region40: #{tpu_custom_call.1} parent=1 // pred_region
      _
    $region41: #{tpu_custom_call.1} parent=1 // pred_fallthru
      _
    // Predicated region
    $region42: #{tpu_custom_call.1} parent=1 // pred_check
      _
    $region43: #{tpu_custom_call.1} parent=1 // pred_check_branch
      %4108 = sbr.rel (0) target = $region45
    $region44: #{tpu_custom_call.1} parent=1 // pred_region
      %4110 = dma.done [#allocation4], 1536
    $region45: #{tpu_custom_call.1} parent=1 // pred_fallthru
      _
    // Predicated region
    $region46: #{tpu_custom_call.1} parent=1 // pred_check
      _
    $region47: #{tpu_custom_call.1} parent=1 // pred_check_branch
      %4112 = sbr.rel (0) target = $region49
    $region48: #{tpu_custom_call.1} parent=1 // pred_region
      _
    $region49: #{tpu_custom_call.1} parent=1 // pred_fallthru
      _
    %4113 = vsyncpa [#allocation3], 1
    %4114 = vsyncpa [#allocation6], 1
    %4115 = vsyncpa [#allocation4], 1

</llo_original>
